<compile_context>
chip_gen: v6e
topology: v6e:2x2x1
jax: 0.10.0
libtpu: 0.0.40
codegen_flags: <defaults>
</compile_context>

<pallas_src>
import numpy as np
import jax
import jax.numpy as jnp
from jax import lax
from jax.experimental import pallas as pl
from jax.experimental.pallas import tpu as pltpu

# ----------------------------- hyper-parameters (small) -----------------------------
B        = 2
N_FFT    = 62
FEAT     = N_FFT // 2 + 1          # 32  (feature_size)
ENC      = 32                      # Encoder.LSTM.Size
T_ENC    = 8                       # encoder time steps
T_DEC    = 8                       # decoder time steps
PRENET   = (32, 32)                # Decoder.Prenet.Sizes
PRE_LSTM = 32                      # Decoder.Pre_LSTM.Size
POST_LSTM = 32                     # Decoder.Post_LSTM.Size
ATT      = 32                      # Decoder.Attention.Channels
LOC_CH   = 8                       # Decoder.Attention.Conv.Channels
LOC_K    = 5                       # Decoder.Attention.Conv.Kernel_Size (odd)


# ----------------------------------- Pallas kernel ----------------------------------
def decoder_kernel(feats_ref, enc_ref, negmask_ref,
                   wp1_ref, wp2_ref,
                   w1_ref, b1_ref,
                   watt_ref, wm_ref, vatt_ref,
                   w2_ref, b2_ref,
                   wproj_ref, bproj_ref,
                   feat_out_ref, align_out_ref):
    f32 = jnp.float32
    T_dec, Bk, F = feats_ref.shape
    _, T_enc, E = enc_ref.shape
    H1 = b1_ref.shape[1] // 4
    H2 = b2_ref.shape[1] // 4
    A = wm_ref.shape[1]

    enc = enc_ref[...]                                   # [B, T_enc, E]
    neg_mask = negmask_ref[...]                          # [B, T_enc] additive (-1e9 masked)
    watt = watt_ref[...]                                 # [H1+2*T_enc, T_enc*A]
    w1 = w1_ref[...]
    w2 = w2_ref[...]
    # hoist loop-invariant broadcasts once (JAX does not CSE broadcast_in_dim)
    b1 = jnp.broadcast_to(b1_ref[...], (Bk, 4 * H1))
    b2 = jnp.broadcast_to(b2_ref[...], (Bk, 4 * H2))
    vatt = jnp.broadcast_to(vatt_ref[...].reshape(1, 1, A), (Bk, T_enc, A))

    # processed memories (Attention.Get_Processed_Memory) -- once per call
    pm = jnp.dot(enc.reshape(Bk * T_enc, E), wm_ref[...],
                 preferred_element_type=f32).reshape(Bk, T_enc, A)

    # ---- Prenet hoisted out of the recurrence (teacher forcing) ----
    x = feats_ref[...].reshape(T_dec * Bk, F)
    h = jnp.maximum(jnp.dot(x, wp1_ref[...], preferred_element_type=f32), 0.0)
    h = jnp.maximum(jnp.dot(h, wp2_ref[...], preferred_element_type=f32), 0.0)
    pre_all = h.reshape(T_dec, Bk, h.shape[-1])          # [T_dec, B, P2]

    def lstm_step(xh, c, w, b, H):
        # single stacked matmul: [x ; h_prev] @ [Wih ; Whh] + (b_ih + b_hh)
        g = jnp.dot(xh, w, preferred_element_type=f32) + b
        i = jax.nn.sigmoid(g[:, 0:H])
        f = jax.nn.sigmoid(g[:, H:2 * H])
        gg = jnp.tanh(g[:, 2 * H:3 * H])
        o = jax.nn.sigmoid(g[:, 3 * H:4 * H])
        c_new = f * c + i * gg
        return o * jnp.tanh(c_new), c_new

    col_idx = lax.broadcasted_iota(jnp.int32, (Bk, T_enc), 1)
    align = jnp.where(col_idx == 0, 1.0, 0.0).astype(f32)
    cum = align
    ctx = jnp.zeros((Bk, E), f32)
    pre_h = jnp.zeros((Bk, H1), f32)
    pre_c = jnp.zeros((Bk, H1), f32)
    post_h = jnp.zeros((Bk, H2), f32)
    post_c = jnp.zeros((Bk, H2), f32)

    dec_steps = []
    align_steps = []
    for step in range(T_dec):                            # static full unroll (T_dec fixed)
        pre_h, pre_c = lstm_step(
            jnp.concatenate([pre_all[step], ctx, pre_h], axis=1), pre_c, w1, b1, H1)

        # location-sensitive attention: query projection + location conv + conv
        # projection folded into ONE banded matmul (W_att built in the wrapper)
        z = jnp.dot(jnp.concatenate([pre_h, align, cum], axis=1), watt,
                    preferred_element_type=f32).reshape(Bk, T_enc, A)
        e = jnp.tanh(z + pm)
        # energies: VPU multiply + lane reduce instead of an N=1 matmul
        energies = jnp.sum(e * vatt, axis=-1) + neg_mask
        energies = energies - jnp.max(energies, axis=1, keepdims=True)
        w = jnp.exp(energies)
        w = w * pl.reciprocal(jnp.sum(w, axis=1, keepdims=True), approx=True)
        ctx = jnp.sum(w[:, :, None] * enc, axis=1)       # [B, E]
        align = w
        cum = cum + align

        post_h, post_c = lstm_step(
            jnp.concatenate([pre_h, ctx, post_h], axis=1), post_c, w2, b2, H2)

        dec_steps.append(jnp.concatenate([post_h, ctx], axis=1))
        align_steps.append(align)

    # ---- output projection hoisted out of the loop: one batched matmul + dense store
    dec_all = jnp.stack(dec_steps, axis=0).reshape(T_dec * Bk, H2 + E)
    proj = jnp.dot(dec_all, wproj_ref[...], preferred_element_type=f32) + bproj_ref[...]
    feat_out_ref[...] = proj.reshape(T_dec, Bk, F)
    align_out_ref[...] = jnp.stack(align_steps, axis=0)


# ------------------------------------- wrapper --------------------------------------
def decoder_train(params, encodings, encoding_lengths, features):
    """encodings: [B, E, T_enc], features: [B, F, T_dec] (PyTorch NCW conventions)."""
    b, e, t_enc = encodings.shape
    f, t_dec = features.shape[1], features.shape[2]
    pad = (LOC_K - 1) // 2

    go = jnp.broadcast_to(params['go_frame'], (b, f, 1))
    feats = jnp.concatenate([go, features[:, :, :-1]], axis=2)     # [B, F, T_dec]
    feats_tm = jnp.transpose(feats, (2, 0, 1))                     # [T_dec, B, F]
    enc = jnp.transpose(encodings, (0, 2, 1))                      # [B, T_enc, E]
    neg_mask = jnp.where(
        jnp.arange(t_enc)[None, :] >= encoding_lengths[:, None],
        jnp.float32(-1e9), jnp.float32(0.0))                       # additive mask bias

    # ---------------- static weight folding (done once, outside the kernel) ---------
    # stacked LSTM weights: one matmul per LSTM step
    w1_st = jnp.concatenate([params['wih1'], params['whh1']], axis=0)
    w2_st = jnp.concatenate([params['wih2'], params['whh2']], axis=0)

    # fold location conv and its projection: wlcp = wlc @ wlp  ([2K, A])
    wlcp = jnp.dot(params['wlc'], params['wlp'], precision=lax.Precision.HIGHEST)
    a_dim = wlcp.shape[1]
    h1 = params['wq'].shape[0]

    # banded matrices turning the (padded) location conv into a single matmul:
    #   ploc[b,t,a] = sum_s prev[b,s]*wlcp[s-t+pad, a] + sum_s cum[b,s]*wlcp[K+s-t+pad, a]
    s_idx = np.arange(t_enc)[:, None]
    t_idx = np.arange(t_enc)[None, :]
    k_idx = s_idx - t_idx + pad
    valid = (k_idx >= 0) & (k_idx < LOC_K)
    k_safe = np.clip(k_idx, 0, LOC_K - 1)
    w_prev = jnp.where(valid[:, :, None], wlcp[k_safe], 0.0)            # [T_enc, T_enc, A]
    w_cum = jnp.where(valid[:, :, None], wlcp[LOC_K + k_safe], 0.0)     # [T_enc, T_enc, A]
    # query projection replicated over encoder time so it rides the same matmul
    w_q = jnp.broadcast_to(params['wq'][:, None, :], (h1, t_enc, a_dim))
    w_att = jnp.concatenate([w_q.reshape(h1, -1),
                             w_prev.reshape(t_enc, -1),
                             w_cum.reshape(t_enc, -1)], axis=0)         # [H1+2T, T*A]

    vatt_r = params['vatt'].reshape(1, a_dim)

    inputs = [feats_tm, enc, neg_mask,
              params['wp1'], params['wp2'],
              w1_st, params['b1'],
              w_att, params['wm'], vatt_r,
              w2_st, params['b2'],
              params['wproj'], params['bproj']]

    vspec = pl.BlockSpec(memory_space=pltpu.MemorySpace.VMEM)
    feat_out, align_out = pl.pallas_call(
        decoder_kernel,
        out_shape=(jax.ShapeDtypeStruct((t_dec, b, f), jnp.float32),
                   jax.ShapeDtypeStruct((t_dec, b, t_enc), jnp.float32)),
        in_specs=[vspec] * len(inputs),
        out_specs=(vspec, vspec),
    )(*inputs)

    features_out = jnp.transpose(feat_out, (1, 2, 0))    # [B, F, T_dec]
    alignments = jnp.transpose(align_out, (1, 2, 0))     # [B, T_enc, T_dec]
    return features_out, alignments


# --------------------------- deterministic parameter init ---------------------------
def init_params(key):
    ks = jax.random.split(key, 16)

    def u(k, shape, scale):
        return jax.random.uniform(k, shape, jnp.float32, -scale, scale)

    p = {}
    p['go_frame'] = jax.random.normal(ks[0], (1, FEAT, 1), jnp.float32)
    # Prenet (bias=False), stored as [in, out]
    p['wp1'] = u(ks[1], (FEAT, PRENET[0]), np.sqrt(2.0) * np.sqrt(6.0 / (FEAT + PRENET[0])))
    p['wp2'] = u(ks[2], (PRENET[0], PRENET[1]), np.sqrt(2.0) * np.sqrt(6.0 / sum(PRENET)))
    # Pre LSTMCell (combined bias = b_ih + b_hh)
    s1 = 1.0 / np.sqrt(PRE_LSTM)
    p['wih1'] = u(ks[3], (PRENET[1] + ENC, 4 * PRE_LSTM), s1)
    p['whh1'] = u(ks[4], (PRE_LSTM, 4 * PRE_LSTM), s1)
    p['b1'] = u(ks[5], (1, 4 * PRE_LSTM), s1)
    # Attention (location-sensitive)
    p['wq'] = u(ks[6], (PRE_LSTM, ATT), np.sqrt(6.0 / (PRE_LSTM + ATT)))
    p['wm'] = u(ks[7], (ENC, ATT), np.sqrt(6.0 / (ENC + ATT)))
    wconv = u(ks[8], (LOC_CH, 2, LOC_K), np.sqrt(6.0 / (2 * LOC_K + LOC_CH)))  # [Cout, Cin, K]
    p['wlc'] = jnp.transpose(wconv, (1, 2, 0)).reshape(2 * LOC_K, LOC_CH)      # flattened conv
    p['wlp'] = u(ks[9], (LOC_CH, ATT), np.sqrt(6.0 / (LOC_CH + ATT)))
    p['vatt'] = u(ks[10], (ATT, 1), np.sqrt(6.0 / (ATT + 1)))
    # Post LSTMCell
    s2 = 1.0 / np.sqrt(POST_LSTM)
    p['wih2'] = u(ks[11], (PRE_LSTM + ENC, 4 * POST_LSTM), s2)
    p['whh2'] = u(ks[12], (POST_LSTM, 4 * POST_LSTM), s2)
    p['b2'] = u(ks[13], (1, 4 * POST_LSTM), s2)
    # Projection (bias zero-initialized, matching Linear.reset_parameters)
    p['wproj'] = u(ks[14], (POST_LSTM + ENC, FEAT), np.sqrt(6.0 / (POST_LSTM + ENC + FEAT)))
    p['bproj'] = jnp.zeros((1, FEAT), jnp.float32)
    return p


# ------------------------------ pure-JAX reference (check) --------------------------
def decoder_train_reference(p, encodings, encoding_lengths, features):
    hp = lax.Precision.HIGHEST
    b, e, t_enc = encodings.shape
    f, t_dec = features.shape[1], features.shape[2]
    PAD = (LOC_K - 1) // 2

    go = jnp.broadcast_to(p['go_frame'], (b, f, 1))
    feats = jnp.transpose(jnp.concatenate([go, features[:, :, :-1]], axis=2), (0, 2, 1))
    enc = jnp.transpose(encodings, (0, 2, 1))
    mask = jnp.arange(t_enc)[None, :] >= encoding_lengths[:, None]
    pm = jnp.einsum('bte,ea->bta', enc, p['wm'], precision=hp)

    def lstm(x, h, c, wih, whh, bias, H):
        g = jnp.dot(x, wih, precision=hp) + jnp.dot(h, whh, precision=hp) + bias
        i, fg, gg, o = (jax.nn.sigmoid(g[:, 0:H]), jax.nn.sigmoid(g[:, H:2 * H]),
                        jnp.tanh(g[:, 2 * H:3 * H]), jax.nn.sigmoid(g[:, 3 * H:4 * H]))
        c_new = fg * c + i * gg
        return o * jnp.tanh(c_new), c_new

    pre_h = pre_c = jnp.zeros((b, PRE_LSTM), jnp.float32)
    post_h = post_c = jnp.zeros((b, POST_LSTM), jnp.float32)
    ctx = jnp.zeros((b, e), jnp.float32)
    align = jnp.zeros((b, t_enc), jnp.float32).at[:, 0].set(1.0)
    cum = align
    feats_list, aligns_list = [], []
    for step in range(t_dec):
        h = jnp.maximum(jnp.dot(feats[:, step], p['wp1'], precision=hp), 0.0)
        h = jnp.maximum(jnp.dot(h, p['wp2'], precision=hp), 0.0)
        pre_h, pre_c = lstm(jnp.concatenate([h, ctx], 1), pre_h, pre_c,
                            p['wih1'], p['whh1'], p['b1'], PRE_LSTM)
        pq = jnp.dot(pre_h, p['wq'], precision=hp)
        zp = jnp.zeros((b, PAD), jnp.float32)
        pa = jnp.concatenate([zp, align, zp], 1)
        ca = jnp.concatenate([zp, cum, zp], 1)
        cols = [pa[:, k:k + t_enc] for k in range(LOC_K)] + [ca[:, k:k + t_enc] for k in range(LOC_K)]
        windows = jnp.stack(cols, axis=-1)
        loc = jnp.einsum('btk,kc->btc', windows, p['wlc'], precision=hp)
        ploc = jnp.einsum('btc,ca->bta', loc, p['wlp'], precision=hp)
        energies = jnp.einsum('bta,ao->bt', jnp.tanh(pq[:, None, :] + pm + ploc),
                              p['vatt'], precision=hp)
        energies = jnp.where(mask, -1e9, energies)
        w = jax.nn.softmax(energies, axis=1)
        ctx = jnp.sum(w[:, :, None] * enc, axis=1)
        align = w
        cum = cum + align
        post_h, post_c = lstm(jnp.concatenate([pre_h, ctx], 1), post_h, post_c,
                              p['wih2'], p['whh2'], p['b2'], POST_LSTM)
        proj = jnp.dot(jnp.concatenate([post_h, ctx], 1), p['wproj'], precision=hp) + p['bproj']
        feats_list.append(proj)
        aligns_list.append(align)
    return jnp.stack(feats_list, axis=2), jnp.stack(aligns_list, axis=2)


# --------------------------------------- main ---------------------------------------
if __name__ == "__main__":
    key = jax.random.PRNGKey(0)
    kp, ke, kf = jax.random.split(key, 3)
    params = init_params(kp)

    encodings = jax.random.normal(ke, (B, ENC, T_ENC), jnp.float32)      # [Batch, Enc_d, Enc_t]
    encoding_lengths = jnp.array([T_ENC, T_ENC - 2], jnp.int32)          # [Batch]
    features = jax.random.normal(kf, (B, FEAT, T_DEC), jnp.float32)      # [Batch, Feature_d, Dec_t]

    run = jax.jit(decoder_train)
    feats_out, aligns_out = jax.block_until_ready(
        run(params, encodings, encoding_lengths, features))

    ref_f, ref_a = decoder_train_reference(params, encodings, encoding_lengths, features)
    # tolerance accounts for the approximate EUP reciprocal in the softmax denominator
    np.testing.assert_allclose(np.asarray(feats_out), np.asarray(ref_f), rtol=3e-3, atol=3e-3)
    np.testing.assert_allclose(np.asarray(aligns_out), np.asarray(ref_a), rtol=3e-3, atol=3e-3)

    assert feats_out.shape == (B, FEAT, T_DEC)
    assert aligns_out.shape == (B, T_ENC, T_DEC)
    print("KERNEL_OK")
</pallas_src>

<mosaic_0001>
module attributes {stable_mosaic.version = 11 : i64} {
  func.func @decoder_kernel(%arg0: memref<8x2x32xf32, #tpu.memory_space<vmem>>, %arg1: memref<2x8x32xf32, #tpu.memory_space<vmem>>, %arg2: memref<2x8xf32, #tpu.memory_space<vmem>>, %arg3: memref<32x32xf32, #tpu.memory_space<vmem>>, %arg4: memref<32x32xf32, #tpu.memory_space<vmem>>, %arg5: memref<96x128xf32, #tpu.memory_space<vmem>>, %arg6: memref<1x128xf32, #tpu.memory_space<vmem>>, %arg7: memref<48x256xf32, #tpu.memory_space<vmem>>, %arg8: memref<32x32xf32, #tpu.memory_space<vmem>>, %arg9: memref<1x32xf32, #tpu.memory_space<vmem>>, %arg10: memref<96x128xf32, #tpu.memory_space<vmem>>, %arg11: memref<1x128xf32, #tpu.memory_space<vmem>>, %arg12: memref<64x32xf32, #tpu.memory_space<vmem>>, %arg13: memref<1x32xf32, #tpu.memory_space<vmem>>, %arg14: memref<8x2x32xf32, #tpu.memory_space<vmem>>, %arg15: memref<8x2x8xf32, #tpu.memory_space<vmem>>) attributes {dimension_semantics = [], scalar_prefetch = 0 : i64, scratch_operands = 0 : i64, tpu.core_type = #tpu.core_type<tc>} {
    %c0 = arith.constant 0 : index
    %c0_0 = arith.constant 0 : index
    %c0_1 = arith.constant 0 : index
    %0 = vector.load %arg1[%c0, %c0_0, %c0_1] : memref<2x8x32xf32, #tpu.memory_space<vmem>>, vector<2x8x32xf32>
    %c0_2 = arith.constant 0 : index
    %c0_3 = arith.constant 0 : index
    %1 = vector.load %arg2[%c0_2, %c0_3] : memref<2x8xf32, #tpu.memory_space<vmem>>, vector<2x8xf32>
    %c0_4 = arith.constant 0 : index
    %c0_5 = arith.constant 0 : index
    %2 = vector.load %arg7[%c0_4, %c0_5] : memref<48x256xf32, #tpu.memory_space<vmem>>, vector<48x256xf32>
    %c0_6 = arith.constant 0 : index
    %c0_7 = arith.constant 0 : index
    %3 = vector.load %arg5[%c0_6, %c0_7] : memref<96x128xf32, #tpu.memory_space<vmem>>, vector<96x128xf32>
    %c0_8 = arith.constant 0 : index
    %c0_9 = arith.constant 0 : index
    %4 = vector.load %arg10[%c0_8, %c0_9] : memref<96x128xf32, #tpu.memory_space<vmem>>, vector<96x128xf32>
    %c0_10 = arith.constant 0 : index
    %c0_11 = arith.constant 0 : index
    %5 = vector.load %arg6[%c0_10, %c0_11] : memref<1x128xf32, #tpu.memory_space<vmem>>, vector<1x128xf32>
    %6 = vector.shape_cast %5 : vector<1x128xf32> to vector<1x128xf32>
    %7 = vector.broadcast %6 : vector<1x128xf32> to vector<2x128xf32>
    %c0_12 = arith.constant 0 : index
    %c0_13 = arith.constant 0 : index
    %8 = vector.load %arg11[%c0_12, %c0_13] : memref<1x128xf32, #tpu.memory_space<vmem>>, vector<1x128xf32>
    %9 = vector.shape_cast %8 : vector<1x128xf32> to vector<1x128xf32>
    %10 = vector.broadcast %9 : vector<1x128xf32> to vector<2x128xf32>
    %c0_14 = arith.constant 0 : index
    %c0_15 = arith.constant 0 : index
    %11 = vector.load %arg9[%c0_14, %c0_15] : memref<1x32xf32, #tpu.memory_space<vmem>>, vector<1x32xf32>
    %12 = vector.shape_cast %11 : vector<1x32xf32> to vector<1x1x32xf32>
    %13 = vector.shape_cast %12 : vector<1x1x32xf32> to vector<1x1x32xf32>
    %14 = vector.broadcast %13 : vector<1x1x32xf32> to vector<2x8x32xf32>
    %15 = vector.shape_cast %0 : vector<2x8x32xf32> to vector<16x32xf32>
    %c0_16 = arith.constant 0 : index
    %c0_17 = arith.constant 0 : index
    %16 = vector.load %arg8[%c0_16, %c0_17] : memref<32x32xf32, #tpu.memory_space<vmem>>, vector<32x32xf32>
    %cst = arith.constant dense<0.000000e+00> : vector<16x32xf32>
    %17 = tpu.matmul %15, %16, %cst {dimension_numbers = #tpu.dot_dimension_numbers<[1], [0], [0], [1], [0, 0, 1, 1], [], []>} : vector<16x32xf32>, vector<32x32xf32>, vector<16x32xf32> -> vector<16x32xf32>
    %18 = vector.shape_cast %17 : vector<16x32xf32> to vector<2x8x32xf32>
    %c0_18 = arith.constant 0 : index
    %c0_19 = arith.constant 0 : index
    %c0_20 = arith.constant 0 : index
    %19 = vector.load %arg0[%c0_18, %c0_19, %c0_20] : memref<8x2x32xf32, #tpu.memory_space<vmem>>, vector<8x2x32xf32>
    %20 = vector.shape_cast %19 : vector<8x2x32xf32> to vector<16x32xf32>
    %c0_21 = arith.constant 0 : index
    %c0_22 = arith.constant 0 : index
    %21 = vector.load %arg3[%c0_21, %c0_22] : memref<32x32xf32, #tpu.memory_space<vmem>>, vector<32x32xf32>
    %cst_23 = arith.constant dense<0.000000e+00> : vector<16x32xf32>
    %22 = tpu.matmul %20, %21, %cst_23 {dimension_numbers = #tpu.dot_dimension_numbers<[1], [0], [0], [1], [0, 0, 1, 1], [], []>} : vector<16x32xf32>, vector<32x32xf32>, vector<16x32xf32> -> vector<16x32xf32>
    %cst_24 = arith.constant 0.000000e+00 : f32
    %23 = vector.broadcast %cst_24 : f32 to vector<16x32xf32>
    %24 = arith.maximumf %22, %23 : vector<16x32xf32>
    %c0_25 = arith.constant 0 : index
    %c0_26 = arith.constant 0 : index
    %25 = vector.load %arg4[%c0_25, %c0_26] : memref<32x32xf32, #tpu.memory_space<vmem>>, vector<32x32xf32>
    %cst_27 = arith.constant dense<0.000000e+00> : vector<16x32xf32>
    %26 = tpu.matmul %24, %25, %cst_27 {dimension_numbers = #tpu.dot_dimension_numbers<[1], [0], [0], [1], [0, 0, 1, 1], [], []>} : vector<16x32xf32>, vector<32x32xf32>, vector<16x32xf32> -> vector<16x32xf32>
    %cst_28 = arith.constant 0.000000e+00 : f32
    %27 = vector.broadcast %cst_28 : f32 to vector<16x32xf32>
    %28 = arith.maximumf %26, %27 : vector<16x32xf32>
    %29 = vector.shape_cast %28 : vector<16x32xf32> to vector<8x2x32xf32>
    %30 = tpu.iota {dimensions = array<i32: 1>} : vector<2x8xi32>
    %c0_i32 = arith.constant 0 : i32
    %31 = vector.broadcast %c0_i32 : i32 to vector<2x8xi32>
    %32 = arith.cmpi eq, %30, %31 : vector<2x8xi32>
    %cst_29 = arith.constant 1.000000e+00 : f32
    %cst_30 = arith.constant 0.000000e+00 : f32
    %33 = vector.broadcast %cst_29 : f32 to vector<2x8xf32>
    %34 = vector.broadcast %cst_30 : f32 to vector<2x8xf32>
    %35 = arith.select %32, %33, %34 : vector<2x8xi1>, vector<2x8xf32>
    %cst_31 = arith.constant 0.000000e+00 : f32
    %36 = vector.broadcast %cst_31 : f32 to vector<2x32xf32>
    %cst_32 = arith.constant 0.000000e+00 : f32
    %37 = vector.broadcast %cst_32 : f32 to vector<2x32xf32>
    %cst_33 = arith.constant 0.000000e+00 : f32
    %38 = vector.broadcast %cst_33 : f32 to vector<2x32xf32>
    %cst_34 = arith.constant 0.000000e+00 : f32
    %39 = vector.broadcast %cst_34 : f32 to vector<2x32xf32>
    %cst_35 = arith.constant 0.000000e+00 : f32
    %40 = vector.broadcast %cst_35 : f32 to vector<2x32xf32>
    %41 = vector.extract_strided_slice %29 {offsets = [0, 0, 0], sizes = [1, 2, 32], strides = [1, 1, 1]} : vector<8x2x32xf32> to vector<1x2x32xf32>
    %42 = vector.shape_cast %41 : vector<1x2x32xf32> to vector<2x32xf32>
    %43 = tpu.concatenate %42, %36, %37 in 1 : vector<2x32xf32>, vector<2x32xf32>, vector<2x32xf32> -> vector<2x96xf32>
    %cst_36 = arith.constant dense<0.000000e+00> : vector<2x128xf32>
    %44 = tpu.matmul %43, %3, %cst_36 {dimension_numbers = #tpu.dot_dimension_numbers<[1], [0], [0], [1], [0, 0, 1, 1], [], []>} : vector<2x96xf32>, vector<96x128xf32>, vector<2x128xf32> -> vector<2x128xf32>
    %45 = arith.addf %44, %7 : vector<2x128xf32>
    %46 = vector.extract_strided_slice %45 {offsets = [0, 0], sizes = [2, 32], strides = [1, 1]} : vector<2x128xf32> to vector<2x32xf32>
    %47 = arith.negf %46 : vector<2x32xf32>
    %48 = math.exp %47 : vector<2x32xf32>
    %cst_37 = arith.constant 1.000000e+00 : f32
    %49 = vector.broadcast %cst_37 : f32 to vector<2x32xf32>
    %50 = arith.addf %49, %48 : vector<2x32xf32>
    %51 = arith.divf %49, %50 : vector<2x32xf32>
    %52 = vector.extract_strided_slice %45 {offsets = [0, 32], sizes = [2, 32], strides = [1, 1]} : vector<2x128xf32> to vector<2x32xf32>
    %53 = arith.negf %52 : vector<2x32xf32>
    %54 = math.exp %53 : vector<2x32xf32>
    %cst_38 = arith.constant 1.000000e+00 : f32
    %55 = vector.broadcast %cst_38 : f32 to vector<2x32xf32>
    %56 = arith.addf %55, %54 : vector<2x32xf32>
    %57 = arith.divf %55, %56 : vector<2x32xf32>
    %58 = vector.extract_strided_slice %45 {offsets = [0, 64], sizes = [2, 32], strides = [1, 1]} : vector<2x128xf32> to vector<2x32xf32>
    %59 = math.tanh %58 : vector<2x32xf32>
    %60 = vector.extract_strided_slice %45 {offsets = [0, 96], sizes = [2, 32], strides = [1, 1]} : vector<2x128xf32> to vector<2x32xf32>
    %61 = arith.negf %60 : vector<2x32xf32>
    %62 = math.exp %61 : vector<2x32xf32>
    %cst_39 = arith.constant 1.000000e+00 : f32
    %63 = vector.broadcast %cst_39 : f32 to vector<2x32xf32>
    %64 = arith.addf %63, %62 : vector<2x32xf32>
    %65 = arith.divf %63, %64 : vector<2x32xf32>
    %66 = arith.mulf %57, %38 : vector<2x32xf32>
    %67 = arith.mulf %51, %59 : vector<2x32xf32>
    %68 = arith.addf %66, %67 : vector<2x32xf32>
    %69 = math.tanh %68 : vector<2x32xf32>
    %70 = arith.mulf %65, %69 : vector<2x32xf32>
    %71 = tpu.concatenate %70, %35, %35 in 1 : vector<2x32xf32>, vector<2x8xf32>, vector<2x8xf32> -> vector<2x48xf32>
    %cst_40 = arith.constant dense<0.000000e+00> : vector<2x256xf32>
    %72 = tpu.matmul %71, %2, %cst_40 {dimension_numbers = #tpu.dot_dimension_numbers<[1], [0], [0], [1], [0, 0, 1, 1], [], []>} : vector<2x48xf32>, vector<48x256xf32>, vector<2x256xf32> -> vector<2x256xf32>
    %73 = vector.shape_cast %72 : vector<2x256xf32> to vector<2x8x32xf32>
    %74 = arith.addf %73, %18 : vector<2x8x32xf32>
    %75 = math.tanh %74 : vector<2x8x32xf32>
    %76 = arith.mulf %75, %14 : vector<2x8x32xf32>
    %cst_41 = arith.constant dense<0.000000e+00> : vector<2x8xf32>
    %77 = vector.multi_reduction <add>, %76, %cst_41 [2] : vector<2x8x32xf32> to vector<2x8xf32>
    %78 = arith.addf %77, %1 : vector<2x8xf32>
    %cst_42 = arith.constant dense<0xFF800000> : vector<2xf32>
    %79 = vector.multi_reduction <maximumf>, %78, %cst_42 [1] : vector<2x8xf32> to vector<2xf32>
    %80 = vector.shape_cast %79 : vector<2xf32> to vector<2x1xf32>
    %81 = vector.broadcast %80 : vector<2x1xf32> to vector<2x8xf32>
    %82 = arith.subf %78, %81 : vector<2x8xf32>
    %83 = math.exp %82 : vector<2x8xf32>
    %cst_43 = arith.constant dense<0.000000e+00> : vector<2xf32>
    %84 = vector.multi_reduction <add>, %83, %cst_43 [1] : vector<2x8xf32> to vector<2xf32>
    %85 = vector.shape_cast %84 : vector<2xf32> to vector<2x1xf32>
    %86 = tpu.reciprocal %85 {approx = true} : vector<2x1xf32> -> vector<2x1xf32>
    %87 = vector.broadcast %86 : vector<2x1xf32> to vector<2x8xf32>
    %88 = arith.mulf %83, %87 : vector<2x8xf32>
    %89 = vector.shape_cast %88 : vector<2x8xf32> to vector<2x8x1xf32>
    %90 = vector.broadcast %89 : vector<2x8x1xf32> to vector<2x8x32xf32>
    %91 = arith.mulf %90, %0 : vector<2x8x32xf32>
    %cst_44 = arith.constant dense<0.000000e+00> : vector<2x32xf32>
    %92 = vector.multi_reduction <add>, %91, %cst_44 [1] : vector<2x8x32xf32> to vector<2x32xf32>
    %93 = arith.addf %35, %88 : vector<2x8xf32>
    %94 = tpu.concatenate %70, %92, %39 in 1 : vector<2x32xf32>, vector<2x32xf32>, vector<2x32xf32> -> vector<2x96xf32>
    %cst_45 = arith.constant dense<0.000000e+00> : vector<2x128xf32>
    %95 = tpu.matmul %94, %4, %cst_45 {dimension_numbers = #tpu.dot_dimension_numbers<[1], [0], [0], [1], [0, 0, 1, 1], [], []>} : vector<2x96xf32>, vector<96x128xf32>, vector<2x128xf32> -> vector<2x128xf32>
    %96 = arith.addf %95, %10 : vector<2x128xf32>
    %97 = vector.extract_strided_slice %96 {offsets = [0, 0], sizes = [2, 32], strides = [1, 1]} : vector<2x128xf32> to vector<2x32xf32>
    %98 = arith.negf %97 : vector<2x32xf32>
    %99 = math.exp %98 : vector<2x32xf32>
    %cst_46 = arith.constant 1.000000e+00 : f32
    %100 = vector.broadcast %cst_46 : f32 to vector<2x32xf32>
    %101 = arith.addf %100, %99 : vector<2x32xf32>
    %102 = arith.divf %100, %101 : vector<2x32xf32>
    %103 = vector.extract_strided_slice %96 {offsets = [0, 32], sizes = [2, 32], strides = [1, 1]} : vector<2x128xf32> to vector<2x32xf32>
    %104 = arith.negf %103 : vector<2x32xf32>
    %105 = math.exp %104 : vector<2x32xf32>
    %cst_47 = arith.constant 1.000000e+00 : f32
    %106 = vector.broadcast %cst_47 : f32 to vector<2x32xf32>
    %107 = arith.addf %106, %105 : vector<2x32xf32>
    %108 = arith.divf %106, %107 : vector<2x32xf32>
    %109 = vector.extract_strided_slice %96 {offsets = [0, 64], sizes = [2, 32], strides = [1, 1]} : vector<2x128xf32> to vector<2x32xf32>
    %110 = math.tanh %109 : vector<2x32xf32>
    %111 = vector.extract_strided_slice %96 {offsets = [0, 96], sizes = [2, 32], strides = [1, 1]} : vector<2x128xf32> to vector<2x32xf32>
    %112 = arith.negf %111 : vector<2x32xf32>
    %113 = math.exp %112 : vector<2x32xf32>
    %cst_48 = arith.constant 1.000000e+00 : f32
    %114 = vector.broadcast %cst_48 : f32 to vector<2x32xf32>
    %115 = arith.addf %114, %113 : vector<2x32xf32>
    %116 = arith.divf %114, %115 : vector<2x32xf32>
    %117 = arith.mulf %108, %40 : vector<2x32xf32>
    %118 = arith.mulf %102, %110 : vector<2x32xf32>
    %119 = arith.addf %117, %118 : vector<2x32xf32>
    %120 = math.tanh %119 : vector<2x32xf32>
    %121 = arith.mulf %116, %120 : vector<2x32xf32>
    %122 = tpu.concatenate %121, %92 in 1 : vector<2x32xf32>, vector<2x32xf32> -> vector<2x64xf32>
    %123 = vector.extract_strided_slice %29 {offsets = [1, 0, 0], sizes = [1, 2, 32], strides = [1, 1, 1]} : vector<8x2x32xf32> to vector<1x2x32xf32>
    %124 = vector.shape_cast %123 : vector<1x2x32xf32> to vector<2x32xf32>
    %125 = tpu.concatenate %124, %92, %70 in 1 : vector<2x32xf32>, vector<2x32xf32>, vector<2x32xf32> -> vector<2x96xf32>
    %cst_49 = arith.constant dense<0.000000e+00> : vector<2x128xf32>
    %126 = tpu.matmul %125, %3, %cst_49 {dimension_numbers = #tpu.dot_dimension_numbers<[1], [0], [0], [1], [0, 0, 1, 1], [], []>} : vector<2x96xf32>, vector<96x128xf32>, vector<2x128xf32> -> vector<2x128xf32>
    %127 = arith.addf %126, %7 : vector<2x128xf32>
    %128 = vector.extract_strided_slice %127 {offsets = [0, 0], sizes = [2, 32], strides = [1, 1]} : vector<2x128xf32> to vector<2x32xf32>
    %129 = arith.negf %128 : vector<2x32xf32>
    %130 = math.exp %129 : vector<2x32xf32>
    %cst_50 = arith.constant 1.000000e+00 : f32
    %131 = vector.broadcast %cst_50 : f32 to vector<2x32xf32>
    %132 = arith.addf %131, %130 : vector<2x32xf32>
    %133 = arith.divf %131, %132 : vector<2x32xf32>
    %134 = vector.extract_strided_slice %127 {offsets = [0, 32], sizes = [2, 32], strides = [1, 1]} : vector<2x128xf32> to vector<2x32xf32>
    %135 = arith.negf %134 : vector<2x32xf32>
    %136 = math.exp %135 : vector<2x32xf32>
    %cst_51 = arith.constant 1.000000e+00 : f32
    %137 = vector.broadcast %cst_51 : f32 to vector<2x32xf32>
    %138 = arith.addf %137, %136 : vector<2x32xf32>
    %139 = arith.divf %137, %138 : vector<2x32xf32>
    %140 = vector.extract_strided_slice %127 {offsets = [0, 64], sizes = [2, 32], strides = [1, 1]} : vector<2x128xf32> to vector<2x32xf32>
    %141 = math.tanh %140 : vector<2x32xf32>
    %142 = vector.extract_strided_slice %127 {offsets = [0, 96], sizes = [2, 32], strides = [1, 1]} : vector<2x128xf32> to vector<2x32xf32>
    %143 = arith.negf %142 : vector<2x32xf32>
    %144 = math.exp %143 : vector<2x32xf32>
    %cst_52 = arith.constant 1.000000e+00 : f32
    %145 = vector.broadcast %cst_52 : f32 to vector<2x32xf32>
    %146 = arith.addf %145, %144 : vector<2x32xf32>
    %147 = arith.divf %145, %146 : vector<2x32xf32>
    %148 = arith.mulf %139, %68 : vector<2x32xf32>
    %149 = arith.mulf %133, %141 : vector<2x32xf32>
    %150 = arith.addf %148, %149 : vector<2x32xf32>
    %151 = math.tanh %150 : vector<2x32xf32>
    %152 = arith.mulf %147, %151 : vector<2x32xf32>
    %153 = tpu.concatenate %152, %88, %93 in 1 : vector<2x32xf32>, vector<2x8xf32>, vector<2x8xf32> -> vector<2x48xf32>
    %cst_53 = arith.constant dense<0.000000e+00> : vector<2x256xf32>
    %154 = tpu.matmul %153, %2, %cst_53 {dimension_numbers = #tpu.dot_dimension_numbers<[1], [0], [0], [1], [0, 0, 1, 1], [], []>} : vector<2x48xf32>, vector<48x256xf32>, vector<2x256xf32> -> vector<2x256xf32>
    %155 = vector.shape_cast %154 : vector<2x256xf32> to vector<2x8x32xf32>
    %156 = arith.addf %155, %18 : vector<2x8x32xf32>
    %157 = math.tanh %156 : vector<2x8x32xf32>
    %158 = arith.mulf %157, %14 : vector<2x8x32xf32>
    %cst_54 = arith.constant dense<0.000000e+00> : vector<2x8xf32>
    %159 = vector.multi_reduction <add>, %158, %cst_54 [2] : vector<2x8x32xf32> to vector<2x8xf32>
    %160 = arith.addf %159, %1 : vector<2x8xf32>
    %cst_55 = arith.constant dense<0xFF800000> : vector<2xf32>
    %161 = vector.multi_reduction <maximumf>, %160, %cst_55 [1] : vector<2x8xf32> to vector<2xf32>
    %162 = vector.shape_cast %161 : vector<2xf32> to vector<2x1xf32>
    %163 = vector.broadcast %162 : vector<2x1xf32> to vector<2x8xf32>
    %164 = arith.subf %160, %163 : vector<2x8xf32>
    %165 = math.exp %164 : vector<2x8xf32>
    %cst_56 = arith.constant dense<0.000000e+00> : vector<2xf32>
    %166 = vector.multi_reduction <add>, %165, %cst_56 [1] : vector<2x8xf32> to vector<2xf32>
    %167 = vector.shape_cast %166 : vector<2xf32> to vector<2x1xf32>
    %168 = tpu.reciprocal %167 {approx = true} : vector<2x1xf32> -> vector<2x1xf32>
    %169 = vector.broadcast %168 : vector<2x1xf32> to vector<2x8xf32>
    %170 = arith.mulf %165, %169 : vector<2x8xf32>
    %171 = vector.shape_cast %170 : vector<2x8xf32> to vector<2x8x1xf32>
    %172 = vector.broadcast %171 : vector<2x8x1xf32> to vector<2x8x32xf32>
    %173 = arith.mulf %172, %0 : vector<2x8x32xf32>
    %cst_57 = arith.constant dense<0.000000e+00> : vector<2x32xf32>
    %174 = vector.multi_reduction <add>, %173, %cst_57 [1] : vector<2x8x32xf32> to vector<2x32xf32>
    %175 = arith.addf %93, %170 : vector<2x8xf32>
    %176 = tpu.concatenate %152, %174, %121 in 1 : vector<2x32xf32>, vector<2x32xf32>, vector<2x32xf32> -> vector<2x96xf32>
    %cst_58 = arith.constant dense<0.000000e+00> : vector<2x128xf32>
    %177 = tpu.matmul %176, %4, %cst_58 {dimension_numbers = #tpu.dot_dimension_numbers<[1], [0], [0], [1], [0, 0, 1, 1], [], []>} : vector<2x96xf32>, vector<96x128xf32>, vector<2x128xf32> -> vector<2x128xf32>
    %178 = arith.addf %177, %10 : vector<2x128xf32>
    %179 = vector.extract_strided_slice %178 {offsets = [0, 0], sizes = [2, 32], strides = [1, 1]} : vector<2x128xf32> to vector<2x32xf32>
    %180 = arith.negf %179 : vector<2x32xf32>
    %181 = math.exp %180 : vector<2x32xf32>
    %cst_59 = arith.constant 1.000000e+00 : f32
    %182 = vector.broadcast %cst_59 : f32 to vector<2x32xf32>
    %183 = arith.addf %182, %181 : vector<2x32xf32>
    %184 = arith.divf %182, %183 : vector<2x32xf32>
    %185 = vector.extract_strided_slice %178 {offsets = [0, 32], sizes = [2, 32], strides = [1, 1]} : vector<2x128xf32> to vector<2x32xf32>
    %186 = arith.negf %185 : vector<2x32xf32>
    %187 = math.exp %186 : vector<2x32xf32>
    %cst_60 = arith.constant 1.000000e+00 : f32
    %188 = vector.broadcast %cst_60 : f32 to vector<2x32xf32>
    %189 = arith.addf %188, %187 : vector<2x32xf32>
    %190 = arith.divf %188, %189 : vector<2x32xf32>
    %191 = vector.extract_strided_slice %178 {offsets = [0, 64], sizes = [2, 32], strides = [1, 1]} : vector<2x128xf32> to vector<2x32xf32>
    %192 = math.tanh %191 : vector<2x32xf32>
    %193 = vector.extract_strided_slice %178 {offsets = [0, 96], sizes = [2, 32], strides = [1, 1]} : vector<2x128xf32> to vector<2x32xf32>
    %194 = arith.negf %193 : vector<2x32xf32>
    %195 = math.exp %194 : vector<2x32xf32>
    %cst_61 = arith.constant 1.000000e+00 : f32
    %196 = vector.broadcast %cst_61 : f32 to vector<2x32xf32>
    %197 = arith.addf %196, %195 : vector<2x32xf32>
    %198 = arith.divf %196, %197 : vector<2x32xf32>
    %199 = arith.mulf %190, %119 : vector<2x32xf32>
    %200 = arith.mulf %184, %192 : vector<2x32xf32>
    %201 = arith.addf %199, %200 : vector<2x32xf32>
    %202 = math.tanh %201 : vector<2x32xf32>
    %203 = arith.mulf %198, %202 : vector<2x32xf32>
    %204 = tpu.concatenate %203, %174 in 1 : vector<2x32xf32>, vector<2x32xf32> -> vector<2x64xf32>
    %205 = vector.extract_strided_slice %29 {offsets = [2, 0, 0], sizes = [1, 2, 32], strides = [1, 1, 1]} : vector<8x2x32xf32> to vector<1x2x32xf32>
    %206 = vector.shape_cast %205 : vector<1x2x32xf32> to vector<2x32xf32>
    %207 = tpu.concatenate %206, %174, %152 in 1 : vector<2x32xf32>, vector<2x32xf32>, vector<2x32xf32> -> vector<2x96xf32>
    %cst_62 = arith.constant dense<0.000000e+00> : vector<2x128xf32>
    %208 = tpu.matmul %207, %3, %cst_62 {dimension_numbers = #tpu.dot_dimension_numbers<[1], [0], [0], [1], [0, 0, 1, 1], [], []>} : vector<2x96xf32>, vector<96x128xf32>, vector<2x128xf32> -> vector<2x128xf32>
    %209 = arith.addf %208, %7 : vector<2x128xf32>
    %210 = vector.extract_strided_slice %209 {offsets = [0, 0], sizes = [2, 32], strides = [1, 1]} : vector<2x128xf32> to vector<2x32xf32>
    %211 = arith.negf %210 : vector<2x32xf32>
    %212 = math.exp %211 : vector<2x32xf32>
    %cst_63 = arith.constant 1.000000e+00 : f32
    %213 = vector.broadcast %cst_63 : f32 to vector<2x32xf32>
    %214 = arith.addf %213, %212 : vector<2x32xf32>
    %215 = arith.divf %213, %214 : vector<2x32xf32>
    %216 = vector.extract_strided_slice %209 {offsets = [0, 32], sizes = [2, 32], strides = [1, 1]} : vector<2x128xf32> to vector<2x32xf32>
    %217 = arith.negf %216 : vector<2x32xf32>
    %218 = math.exp %217 : vector<2x32xf32>
    %cst_64 = arith.constant 1.000000e+00 : f32
    %219 = vector.broadcast %cst_64 : f32 to vector<2x32xf32>
    %220 = arith.addf %219, %218 : vector<2x32xf32>
    %221 = arith.divf %219, %220 : vector<2x32xf32>
    %222 = vector.extract_strided_slice %209 {offsets = [0, 64], sizes = [2, 32], strides = [1, 1]} : vector<2x128xf32> to vector<2x32xf32>
    %223 = math.tanh %222 : vector<2x32xf32>
    %224 = vector.extract_strided_slice %209 {offsets = [0, 96], sizes = [2, 32], strides = [1, 1]} : vector<2x128xf32> to vector<2x32xf32>
    %225 = arith.negf %224 : vector<2x32xf32>
    %226 = math.exp %225 : vector<2x32xf32>
    %cst_65 = arith.constant 1.000000e+00 : f32
    %227 = vector.broadcast %cst_65 : f32 to vector<2x32xf32>
    %228 = arith.addf %227, %226 : vector<2x32xf32>
    %229 = arith.divf %227, %228 : vector<2x32xf32>
    %230 = arith.mulf %221, %150 : vector<2x32xf32>
    %231 = arith.mulf %215, %223 : vector<2x32xf32>
    %232 = arith.addf %230, %231 : vector<2x32xf32>
    %233 = math.tanh %232 : vector<2x32xf32>
    %234 = arith.mulf %229, %233 : vector<2x32xf32>
    %235 = tpu.concatenate %234, %170, %175 in 1 : vector<2x32xf32>, vector<2x8xf32>, vector<2x8xf32> -> vector<2x48xf32>
    %cst_66 = arith.constant dense<0.000000e+00> : vector<2x256xf32>
    %236 = tpu.matmul %235, %2, %cst_66 {dimension_numbers = #tpu.dot_dimension_numbers<[1], [0], [0], [1], [0, 0, 1, 1], [], []>} : vector<2x48xf32>, vector<48x256xf32>, vector<2x256xf32> -> vector<2x256xf32>
    %237 = vector.shape_cast %236 : vector<2x256xf32> to vector<2x8x32xf32>
    %238 = arith.addf %237, %18 : vector<2x8x32xf32>
    %239 = math.tanh %238 : vector<2x8x32xf32>
    %240 = arith.mulf %239, %14 : vector<2x8x32xf32>
    %cst_67 = arith.constant dense<0.000000e+00> : vector<2x8xf32>
    %241 = vector.multi_reduction <add>, %240, %cst_67 [2] : vector<2x8x32xf32> to vector<2x8xf32>
    %242 = arith.addf %241, %1 : vector<2x8xf32>
    %cst_68 = arith.constant dense<0xFF800000> : vector<2xf32>
    %243 = vector.multi_reduction <maximumf>, %242, %cst_68 [1] : vector<2x8xf32> to vector<2xf32>
    %244 = vector.shape_cast %243 : vector<2xf32> to vector<2x1xf32>
    %245 = vector.broadcast %244 : vector<2x1xf32> to vector<2x8xf32>
    %246 = arith.subf %242, %245 : vector<2x8xf32>
    %247 = math.exp %246 : vector<2x8xf32>
    %cst_69 = arith.constant dense<0.000000e+00> : vector<2xf32>
    %248 = vector.multi_reduction <add>, %247, %cst_69 [1] : vector<2x8xf32> to vector<2xf32>
    %249 = vector.shape_cast %248 : vector<2xf32> to vector<2x1xf32>
    %250 = tpu.reciprocal %249 {approx = true} : vector<2x1xf32> -> vector<2x1xf32>
    %251 = vector.broadcast %250 : vector<2x1xf32> to vector<2x8xf32>
    %252 = arith.mulf %247, %251 : vector<2x8xf32>
    %253 = vector.shape_cast %252 : vector<2x8xf32> to vector<2x8x1xf32>
    %254 = vector.broadcast %253 : vector<2x8x1xf32> to vector<2x8x32xf32>
    %255 = arith.mulf %254, %0 : vector<2x8x32xf32>
    %cst_70 = arith.constant dense<0.000000e+00> : vector<2x32xf32>
    %256 = vector.multi_reduction <add>, %255, %cst_70 [1] : vector<2x8x32xf32> to vector<2x32xf32>
    %257 = arith.addf %175, %252 : vector<2x8xf32>
    %258 = tpu.concatenate %234, %256, %203 in 1 : vector<2x32xf32>, vector<2x32xf32>, vector<2x32xf32> -> vector<2x96xf32>
    %cst_71 = arith.constant dense<0.000000e+00> : vector<2x128xf32>
    %259 = tpu.matmul %258, %4, %cst_71 {dimension_numbers = #tpu.dot_dimension_numbers<[1], [0], [0], [1], [0, 0, 1, 1], [], []>} : vector<2x96xf32>, vector<96x128xf32>, vector<2x128xf32> -> vector<2x128xf32>
    %260 = arith.addf %259, %10 : vector<2x128xf32>
    %261 = vector.extract_strided_slice %260 {offsets = [0, 0], sizes = [2, 32], strides = [1, 1]} : vector<2x128xf32> to vector<2x32xf32>
    %262 = arith.negf %261 : vector<2x32xf32>
    %263 = math.exp %262 : vector<2x32xf32>
    %cst_72 = arith.constant 1.000000e+00 : f32
    %264 = vector.broadcast %cst_72 : f32 to vector<2x32xf32>
    %265 = arith.addf %264, %263 : vector<2x32xf32>
    %266 = arith.divf %264, %265 : vector<2x32xf32>
    %267 = vector.extract_strided_slice %260 {offsets = [0, 32], sizes = [2, 32], strides = [1, 1]} : vector<2x128xf32> to vector<2x32xf32>
    %268 = arith.negf %267 : vector<2x32xf32>
    %269 = math.exp %268 : vector<2x32xf32>
    %cst_73 = arith.constant 1.000000e+00 : f32
    %270 = vector.broadcast %cst_73 : f32 to vector<2x32xf32>
    %271 = arith.addf %270, %269 : vector<2x32xf32>
    %272 = arith.divf %270, %271 : vector<2x32xf32>
    %273 = vector.extract_strided_slice %260 {offsets = [0, 64], sizes = [2, 32], strides = [1, 1]} : vector<2x128xf32> to vector<2x32xf32>
    %274 = math.tanh %273 : vector<2x32xf32>
    %275 = vector.extract_strided_slice %260 {offsets = [0, 96], sizes = [2, 32], strides = [1, 1]} : vector<2x128xf32> to vector<2x32xf32>
    %276 = arith.negf %275 : vector<2x32xf32>
    %277 = math.exp %276 : vector<2x32xf32>
    %cst_74 = arith.constant 1.000000e+00 : f32
    %278 = vector.broadcast %cst_74 : f32 to vector<2x32xf32>
    %279 = arith.addf %278, %277 : vector<2x32xf32>
    %280 = arith.divf %278, %279 : vector<2x32xf32>
    %281 = arith.mulf %272, %201 : vector<2x32xf32>
    %282 = arith.mulf %266, %274 : vector<2x32xf32>
    %283 = arith.addf %281, %282 : vector<2x32xf32>
    %284 = math.tanh %283 : vector<2x32xf32>
    %285 = arith.mulf %280, %284 : vector<2x32xf32>
    %286 = tpu.concatenate %285, %256 in 1 : vector<2x32xf32>, vector<2x32xf32> -> vector<2x64xf32>
    %287 = vector.extract_strided_slice %29 {offsets = [3, 0, 0], sizes = [1, 2, 32], strides = [1, 1, 1]} : vector<8x2x32xf32> to vector<1x2x32xf32>
    %288 = vector.shape_cast %287 : vector<1x2x32xf32> to vector<2x32xf32>
    %289 = tpu.concatenate %288, %256, %234 in 1 : vector<2x32xf32>, vector<2x32xf32>, vector<2x32xf32> -> vector<2x96xf32>
    %cst_75 = arith.constant dense<0.000000e+00> : vector<2x128xf32>
    %290 = tpu.matmul %289, %3, %cst_75 {dimension_numbers = #tpu.dot_dimension_numbers<[1], [0], [0], [1], [0, 0, 1, 1], [], []>} : vector<2x96xf32>, vector<96x128xf32>, vector<2x128xf32> -> vector<2x128xf32>
    %291 = arith.addf %290, %7 : vector<2x128xf32>
    %292 = vector.extract_strided_slice %291 {offsets = [0, 0], sizes = [2, 32], strides = [1, 1]} : vector<2x128xf32> to vector<2x32xf32>
    %293 = arith.negf %292 : vector<2x32xf32>
    %294 = math.exp %293 : vector<2x32xf32>
    %cst_76 = arith.constant 1.000000e+00 : f32
    %295 = vector.broadcast %cst_76 : f32 to vector<2x32xf32>
    %296 = arith.addf %295, %294 : vector<2x32xf32>
    %297 = arith.divf %295, %296 : vector<2x32xf32>
    %298 = vector.extract_strided_slice %291 {offsets = [0, 32], sizes = [2, 32], strides = [1, 1]} : vector<2x128xf32> to vector<2x32xf32>
    %299 = arith.negf %298 : vector<2x32xf32>
    %300 = math.exp %299 : vector<2x32xf32>
    %cst_77 = arith.constant 1.000000e+00 : f32
    %301 = vector.broadcast %cst_77 : f32 to vector<2x32xf32>
    %302 = arith.addf %301, %300 : vector<2x32xf32>
    %303 = arith.divf %301, %302 : vector<2x32xf32>
    %304 = vector.extract_strided_slice %291 {offsets = [0, 64], sizes = [2, 32], strides = [1, 1]} : vector<2x128xf32> to vector<2x32xf32>
    %305 = math.tanh %304 : vector<2x32xf32>
    %306 = vector.extract_strided_slice %291 {offsets = [0, 96], sizes = [2, 32], strides = [1, 1]} : vector<2x128xf32> to vector<2x32xf32>
    %307 = arith.negf %306 : vector<2x32xf32>
    %308 = math.exp %307 : vector<2x32xf32>
    %cst_78 = arith.constant 1.000000e+00 : f32
    %309 = vector.broadcast %cst_78 : f32 to vector<2x32xf32>
    %310 = arith.addf %309, %308 : vector<2x32xf32>
    %311 = arith.divf %309, %310 : vector<2x32xf32>
    %312 = arith.mulf %303, %232 : vector<2x32xf32>
    %313 = arith.mulf %297, %305 : vector<2x32xf32>
    %314 = arith.addf %312, %313 : vector<2x32xf32>
    %315 = math.tanh %314 : vector<2x32xf32>
    %316 = arith.mulf %311, %315 : vector<2x32xf32>
    %317 = tpu.concatenate %316, %252, %257 in 1 : vector<2x32xf32>, vector<2x8xf32>, vector<2x8xf32> -> vector<2x48xf32>
    %cst_79 = arith.constant dense<0.000000e+00> : vector<2x256xf32>
    %318 = tpu.matmul %317, %2, %cst_79 {dimension_numbers = #tpu.dot_dimension_numbers<[1], [0], [0], [1], [0, 0, 1, 1], [], []>} : vector<2x48xf32>, vector<48x256xf32>, vector<2x256xf32> -> vector<2x256xf32>
    %319 = vector.shape_cast %318 : vector<2x256xf32> to vector<2x8x32xf32>
    %320 = arith.addf %319, %18 : vector<2x8x32xf32>
    %321 = math.tanh %320 : vector<2x8x32xf32>
    %322 = arith.mulf %321, %14 : vector<2x8x32xf32>
    %cst_80 = arith.constant dense<0.000000e+00> : vector<2x8xf32>
    %323 = vector.multi_reduction <add>, %322, %cst_80 [2] : vector<2x8x32xf32> to vector<2x8xf32>
    %324 = arith.addf %323, %1 : vector<2x8xf32>
    %cst_81 = arith.constant dense<0xFF800000> : vector<2xf32>
    %325 = vector.multi_reduction <maximumf>, %324, %cst_81 [1] : vector<2x8xf32> to vector<2xf32>
    %326 = vector.shape_cast %325 : vector<2xf32> to vector<2x1xf32>
    %327 = vector.broadcast %326 : vector<2x1xf32> to vector<2x8xf32>
    %328 = arith.subf %324, %327 : vector<2x8xf32>
    %329 = math.exp %328 : vector<2x8xf32>
    %cst_82 = arith.constant dense<0.000000e+00> : vector<2xf32>
    %330 = vector.multi_reduction <add>, %329, %cst_82 [1] : vector<2x8xf32> to vector<2xf32>
    %331 = vector.shape_cast %330 : vector<2xf32> to vector<2x1xf32>
    %332 = tpu.reciprocal %331 {approx = true} : vector<2x1xf32> -> vector<2x1xf32>
    %333 = vector.broadcast %332 : vector<2x1xf32> to vector<2x8xf32>
    %334 = arith.mulf %329, %333 : vector<2x8xf32>
    %335 = vector.shape_cast %334 : vector<2x8xf32> to vector<2x8x1xf32>
    %336 = vector.broadcast %335 : vector<2x8x1xf32> to vector<2x8x32xf32>
    %337 = arith.mulf %336, %0 : vector<2x8x32xf32>
    %cst_83 = arith.constant dense<0.000000e+00> : vector<2x32xf32>
    %338 = vector.multi_reduction <add>, %337, %cst_83 [1] : vector<2x8x32xf32> to vector<2x32xf32>
    %339 = arith.addf %257, %334 : vector<2x8xf32>
    %340 = tpu.concatenate %316, %338, %285 in 1 : vector<2x32xf32>, vector<2x32xf32>, vector<2x32xf32> -> vector<2x96xf32>
    %cst_84 = arith.constant dense<0.000000e+00> : vector<2x128xf32>
    %341 = tpu.matmul %340, %4, %cst_84 {dimension_numbers = #tpu.dot_dimension_numbers<[1], [0], [0], [1], [0, 0, 1, 1], [], []>} : vector<2x96xf32>, vector<96x128xf32>, vector<2x128xf32> -> vector<2x128xf32>
    %342 = arith.addf %341, %10 : vector<2x128xf32>
    %343 = vector.extract_strided_slice %342 {offsets = [0, 0], sizes = [2, 32], strides = [1, 1]} : vector<2x128xf32> to vector<2x32xf32>
    %344 = arith.negf %343 : vector<2x32xf32>
    %345 = math.exp %344 : vector<2x32xf32>
    %cst_85 = arith.constant 1.000000e+00 : f32
    %346 = vector.broadcast %cst_85 : f32 to vector<2x32xf32>
    %347 = arith.addf %346, %345 : vector<2x32xf32>
    %348 = arith.divf %346, %347 : vector<2x32xf32>
    %349 = vector.extract_strided_slice %342 {offsets = [0, 32], sizes = [2, 32], strides = [1, 1]} : vector<2x128xf32> to vector<2x32xf32>
    %350 = arith.negf %349 : vector<2x32xf32>
    %351 = math.exp %350 : vector<2x32xf32>
    %cst_86 = arith.constant 1.000000e+00 : f32
    %352 = vector.broadcast %cst_86 : f32 to vector<2x32xf32>
    %353 = arith.addf %352, %351 : vector<2x32xf32>
    %354 = arith.divf %352, %353 : vector<2x32xf32>
    %355 = vector.extract_strided_slice %342 {offsets = [0, 64], sizes = [2, 32], strides = [1, 1]} : vector<2x128xf32> to vector<2x32xf32>
    %356 = math.tanh %355 : vector<2x32xf32>
    %357 = vector.extract_strided_slice %342 {offsets = [0, 96], sizes = [2, 32], strides = [1, 1]} : vector<2x128xf32> to vector<2x32xf32>
    %358 = arith.negf %357 : vector<2x32xf32>
    %359 = math.exp %358 : vector<2x32xf32>
    %cst_87 = arith.constant 1.000000e+00 : f32
    %360 = vector.broadcast %cst_87 : f32 to vector<2x32xf32>
    %361 = arith.addf %360, %359 : vector<2x32xf32>
    %362 = arith.divf %360, %361 : vector<2x32xf32>
    %363 = arith.mulf %354, %283 : vector<2x32xf32>
    %364 = arith.mulf %348, %356 : vector<2x32xf32>
    %365 = arith.addf %363, %364 : vector<2x32xf32>
    %366 = math.tanh %365 : vector<2x32xf32>
    %367 = arith.mulf %362, %366 : vector<2x32xf32>
    %368 = tpu.concatenate %367, %338 in 1 : vector<2x32xf32>, vector<2x32xf32> -> vector<2x64xf32>
    %369 = vector.extract_strided_slice %29 {offsets = [4, 0, 0], sizes = [1, 2, 32], strides = [1, 1, 1]} : vector<8x2x32xf32> to vector<1x2x32xf32>
    %370 = vector.shape_cast %369 : vector<1x2x32xf32> to vector<2x32xf32>
    %371 = tpu.concatenate %370, %338, %316 in 1 : vector<2x32xf32>, vector<2x32xf32>, vector<2x32xf32> -> vector<2x96xf32>
    %cst_88 = arith.constant dense<0.000000e+00> : vector<2x128xf32>
    %372 = tpu.matmul %371, %3, %cst_88 {dimension_numbers = #tpu.dot_dimension_numbers<[1], [0], [0], [1], [0, 0, 1, 1], [], []>} : vector<2x96xf32>, vector<96x128xf32>, vector<2x128xf32> -> vector<2x128xf32>
    %373 = arith.addf %372, %7 : vector<2x128xf32>
    %374 = vector.extract_strided_slice %373 {offsets = [0, 0], sizes = [2, 32], strides = [1, 1]} : vector<2x128xf32> to vector<2x32xf32>
    %375 = arith.negf %374 : vector<2x32xf32>
    %376 = math.exp %375 : vector<2x32xf32>
    %cst_89 = arith.constant 1.000000e+00 : f32
    %377 = vector.broadcast %cst_89 : f32 to vector<2x32xf32>
    %378 = arith.addf %377, %376 : vector<2x32xf32>
    %379 = arith.divf %377, %378 : vector<2x32xf32>
    %380 = vector.extract_strided_slice %373 {offsets = [0, 32], sizes = [2, 32], strides = [1, 1]} : vector<2x128xf32> to vector<2x32xf32>
    %381 = arith.negf %380 : vector<2x32xf32>
    %382 = math.exp %381 : vector<2x32xf32>
    %cst_90 = arith.constant 1.000000e+00 : f32
    %383 = vector.broadcast %cst_90 : f32 to vector<2x32xf32>
    %384 = arith.addf %383, %382 : vector<2x32xf32>
    %385 = arith.divf %383, %384 : vector<2x32xf32>
    %386 = vector.extract_strided_slice %373 {offsets = [0, 64], sizes = [2, 32], strides = [1, 1]} : vector<2x128xf32> to vector<2x32xf32>
    %387 = math.tanh %386 : vector<2x32xf32>
    %388 = vector.extract_strided_slice %373 {offsets = [0, 96], sizes = [2, 32], strides = [1, 1]} : vector<2x128xf32> to vector<2x32xf32>
    %389 = arith.negf %388 : vector<2x32xf32>
    %390 = math.exp %389 : vector<2x32xf32>
    %cst_91 = arith.constant 1.000000e+00 : f32
    %391 = vector.broadcast %cst_91 : f32 to vector<2x32xf32>
    %392 = arith.addf %391, %390 : vector<2x32xf32>
    %393 = arith.divf %391, %392 : vector<2x32xf32>
    %394 = arith.mulf %385, %314 : vector<2x32xf32>
    %395 = arith.mulf %379, %387 : vector<2x32xf32>
    %396 = arith.addf %394, %395 : vector<2x32xf32>
    %397 = math.tanh %396 : vector<2x32xf32>
    %398 = arith.mulf %393, %397 : vector<2x32xf32>
    %399 = tpu.concatenate %398, %334, %339 in 1 : vector<2x32xf32>, vector<2x8xf32>, vector<2x8xf32> -> vector<2x48xf32>
    %cst_92 = arith.constant dense<0.000000e+00> : vector<2x256xf32>
    %400 = tpu.matmul %399, %2, %cst_92 {dimension_numbers = #tpu.dot_dimension_numbers<[1], [0], [0], [1], [0, 0, 1, 1], [], []>} : vector<2x48xf32>, vector<48x256xf32>, vector<2x256xf32> -> vector<2x256xf32>
    %401 = vector.shape_cast %400 : vector<2x256xf32> to vector<2x8x32xf32>
    %402 = arith.addf %401, %18 : vector<2x8x32xf32>
    %403 = math.tanh %402 : vector<2x8x32xf32>
    %404 = arith.mulf %403, %14 : vector<2x8x32xf32>
    %cst_93 = arith.constant dense<0.000000e+00> : vector<2x8xf32>
    %405 = vector.multi_reduction <add>, %404, %cst_93 [2] : vector<2x8x32xf32> to vector<2x8xf32>
    %406 = arith.addf %405, %1 : vector<2x8xf32>
    %cst_94 = arith.constant dense<0xFF800000> : vector<2xf32>
    %407 = vector.multi_reduction <maximumf>, %406, %cst_94 [1] : vector<2x8xf32> to vector<2xf32>
    %408 = vector.shape_cast %407 : vector<2xf32> to vector<2x1xf32>
    %409 = vector.broadcast %408 : vector<2x1xf32> to vector<2x8xf32>
    %410 = arith.subf %406, %409 : vector<2x8xf32>
    %411 = math.exp %410 : vector<2x8xf32>
    %cst_95 = arith.constant dense<0.000000e+00> : vector<2xf32>
    %412 = vector.multi_reduction <add>, %411, %cst_95 [1] : vector<2x8xf32> to vector<2xf32>
    %413 = vector.shape_cast %412 : vector<2xf32> to vector<2x1xf32>
    %414 = tpu.reciprocal %413 {approx = true} : vector<2x1xf32> -> vector<2x1xf32>
    %415 = vector.broadcast %414 : vector<2x1xf32> to vector<2x8xf32>
    %416 = arith.mulf %411, %415 : vector<2x8xf32>
    %417 = vector.shape_cast %416 : vector<2x8xf32> to vector<2x8x1xf32>
    %418 = vector.broadcast %417 : vector<2x8x1xf32> to vector<2x8x32xf32>
    %419 = arith.mulf %418, %0 : vector<2x8x32xf32>
    %cst_96 = arith.constant dense<0.000000e+00> : vector<2x32xf32>
    %420 = vector.multi_reduction <add>, %419, %cst_96 [1] : vector<2x8x32xf32> to vector<2x32xf32>
    %421 = arith.addf %339, %416 : vector<2x8xf32>
    %422 = tpu.concatenate %398, %420, %367 in 1 : vector<2x32xf32>, vector<2x32xf32>, vector<2x32xf32> -> vector<2x96xf32>
    %cst_97 = arith.constant dense<0.000000e+00> : vector<2x128xf32>
    %423 = tpu.matmul %422, %4, %cst_97 {dimension_numbers = #tpu.dot_dimension_numbers<[1], [0], [0], [1], [0, 0, 1, 1], [], []>} : vector<2x96xf32>, vector<96x128xf32>, vector<2x128xf32> -> vector<2x128xf32>
    %424 = arith.addf %423, %10 : vector<2x128xf32>
    %425 = vector.extract_strided_slice %424 {offsets = [0, 0], sizes = [2, 32], strides = [1, 1]} : vector<2x128xf32> to vector<2x32xf32>
    %426 = arith.negf %425 : vector<2x32xf32>
    %427 = math.exp %426 : vector<2x32xf32>
    %cst_98 = arith.constant 1.000000e+00 : f32
    %428 = vector.broadcast %cst_98 : f32 to vector<2x32xf32>
    %429 = arith.addf %428, %427 : vector<2x32xf32>
    %430 = arith.divf %428, %429 : vector<2x32xf32>
    %431 = vector.extract_strided_slice %424 {offsets = [0, 32], sizes = [2, 32], strides = [1, 1]} : vector<2x128xf32> to vector<2x32xf32>
    %432 = arith.negf %431 : vector<2x32xf32>
    %433 = math.exp %432 : vector<2x32xf32>
    %cst_99 = arith.constant 1.000000e+00 : f32
    %434 = vector.broadcast %cst_99 : f32 to vector<2x32xf32>
    %435 = arith.addf %434, %433 : vector<2x32xf32>
    %436 = arith.divf %434, %435 : vector<2x32xf32>
    %437 = vector.extract_strided_slice %424 {offsets = [0, 64], sizes = [2, 32], strides = [1, 1]} : vector<2x128xf32> to vector<2x32xf32>
    %438 = math.tanh %437 : vector<2x32xf32>
    %439 = vector.extract_strided_slice %424 {offsets = [0, 96], sizes = [2, 32], strides = [1, 1]} : vector<2x128xf32> to vector<2x32xf32>
    %440 = arith.negf %439 : vector<2x32xf32>
    %441 = math.exp %440 : vector<2x32xf32>
    %cst_100 = arith.constant 1.000000e+00 : f32
    %442 = vector.broadcast %cst_100 : f32 to vector<2x32xf32>
    %443 = arith.addf %442, %441 : vector<2x32xf32>
    %444 = arith.divf %442, %443 : vector<2x32xf32>
    %445 = arith.mulf %436, %365 : vector<2x32xf32>
    %446 = arith.mulf %430, %438 : vector<2x32xf32>
    %447 = arith.addf %445, %446 : vector<2x32xf32>
    %448 = math.tanh %447 : vector<2x32xf32>
    %449 = arith.mulf %444, %448 : vector<2x32xf32>
    %450 = tpu.concatenate %449, %420 in 1 : vector<2x32xf32>, vector<2x32xf32> -> vector<2x64xf32>
    %451 = vector.extract_strided_slice %29 {offsets = [5, 0, 0], sizes = [1, 2, 32], strides = [1, 1, 1]} : vector<8x2x32xf32> to vector<1x2x32xf32>
    %452 = vector.shape_cast %451 : vector<1x2x32xf32> to vector<2x32xf32>
    %453 = tpu.concatenate %452, %420, %398 in 1 : vector<2x32xf32>, vector<2x32xf32>, vector<2x32xf32> -> vector<2x96xf32>
    %cst_101 = arith.constant dense<0.000000e+00> : vector<2x128xf32>
    %454 = tpu.matmul %453, %3, %cst_101 {dimension_numbers = #tpu.dot_dimension_numbers<[1], [0], [0], [1], [0, 0, 1, 1], [], []>} : vector<2x96xf32>, vector<96x128xf32>, vector<2x128xf32> -> vector<2x128xf32>
    %455 = arith.addf %454, %7 : vector<2x128xf32>
    %456 = vector.extract_strided_slice %455 {offsets = [0, 0], sizes = [2, 32], strides = [1, 1]} : vector<2x128xf32> to vector<2x32xf32>
    %457 = arith.negf %456 : vector<2x32xf32>
    %458 = math.exp %457 : vector<2x32xf32>
    %cst_102 = arith.constant 1.000000e+00 : f32
    %459 = vector.broadcast %cst_102 : f32 to vector<2x32xf32>
    %460 = arith.addf %459, %458 : vector<2x32xf32>
    %461 = arith.divf %459, %460 : vector<2x32xf32>
    %462 = vector.extract_strided_slice %455 {offsets = [0, 32], sizes = [2, 32], strides = [1, 1]} : vector<2x128xf32> to vector<2x32xf32>
    %463 = arith.negf %462 : vector<2x32xf32>
    %464 = math.exp %463 : vector<2x32xf32>
    %cst_103 = arith.constant 1.000000e+00 : f32
    %465 = vector.broadcast %cst_103 : f32 to vector<2x32xf32>
    %466 = arith.addf %465, %464 : vector<2x32xf32>
    %467 = arith.divf %465, %466 : vector<2x32xf32>
    %468 = vector.extract_strided_slice %455 {offsets = [0, 64], sizes = [2, 32], strides = [1, 1]} : vector<2x128xf32> to vector<2x32xf32>
    %469 = math.tanh %468 : vector<2x32xf32>
    %470 = vector.extract_strided_slice %455 {offsets = [0, 96], sizes = [2, 32], strides = [1, 1]} : vector<2x128xf32> to vector<2x32xf32>
    %471 = arith.negf %470 : vector<2x32xf32>
    %472 = math.exp %471 : vector<2x32xf32>
    %cst_104 = arith.constant 1.000000e+00 : f32
    %473 = vector.broadcast %cst_104 : f32 to vector<2x32xf32>
    %474 = arith.addf %473, %472 : vector<2x32xf32>
    %475 = arith.divf %473, %474 : vector<2x32xf32>
    %476 = arith.mulf %467, %396 : vector<2x32xf32>
    %477 = arith.mulf %461, %469 : vector<2x32xf32>
    %478 = arith.addf %476, %477 : vector<2x32xf32>
    %479 = math.tanh %478 : vector<2x32xf32>
    %480 = arith.mulf %475, %479 : vector<2x32xf32>
    %481 = tpu.concatenate %480, %416, %421 in 1 : vector<2x32xf32>, vector<2x8xf32>, vector<2x8xf32> -> vector<2x48xf32>
    %cst_105 = arith.constant dense<0.000000e+00> : vector<2x256xf32>
    %482 = tpu.matmul %481, %2, %cst_105 {dimension_numbers = #tpu.dot_dimension_numbers<[1], [0], [0], [1], [0, 0, 1, 1], [], []>} : vector<2x48xf32>, vector<48x256xf32>, vector<2x256xf32> -> vector<2x256xf32>
    %483 = vector.shape_cast %482 : vector<2x256xf32> to vector<2x8x32xf32>
    %484 = arith.addf %483, %18 : vector<2x8x32xf32>
    %485 = math.tanh %484 : vector<2x8x32xf32>
    %486 = arith.mulf %485, %14 : vector<2x8x32xf32>
    %cst_106 = arith.constant dense<0.000000e+00> : vector<2x8xf32>
    %487 = vector.multi_reduction <add>, %486, %cst_106 [2] : vector<2x8x32xf32> to vector<2x8xf32>
    %488 = arith.addf %487, %1 : vector<2x8xf32>
    %cst_107 = arith.constant dense<0xFF800000> : vector<2xf32>
    %489 = vector.multi_reduction <maximumf>, %488, %cst_107 [1] : vector<2x8xf32> to vector<2xf32>
    %490 = vector.shape_cast %489 : vector<2xf32> to vector<2x1xf32>
    %491 = vector.broadcast %490 : vector<2x1xf32> to vector<2x8xf32>
    %492 = arith.subf %488, %491 : vector<2x8xf32>
    %493 = math.exp %492 : vector<2x8xf32>
    %cst_108 = arith.constant dense<0.000000e+00> : vector<2xf32>
    %494 = vector.multi_reduction <add>, %493, %cst_108 [1] : vector<2x8xf32> to vector<2xf32>
    %495 = vector.shape_cast %494 : vector<2xf32> to vector<2x1xf32>
    %496 = tpu.reciprocal %495 {approx = true} : vector<2x1xf32> -> vector<2x1xf32>
    %497 = vector.broadcast %496 : vector<2x1xf32> to vector<2x8xf32>
    %498 = arith.mulf %493, %497 : vector<2x8xf32>
    %499 = vector.shape_cast %498 : vector<2x8xf32> to vector<2x8x1xf32>
    %500 = vector.broadcast %499 : vector<2x8x1xf32> to vector<2x8x32xf32>
    %501 = arith.mulf %500, %0 : vector<2x8x32xf32>
    %cst_109 = arith.constant dense<0.000000e+00> : vector<2x32xf32>
    %502 = vector.multi_reduction <add>, %501, %cst_109 [1] : vector<2x8x32xf32> to vector<2x32xf32>
    %503 = arith.addf %421, %498 : vector<2x8xf32>
    %504 = tpu.concatenate %480, %502, %449 in 1 : vector<2x32xf32>, vector<2x32xf32>, vector<2x32xf32> -> vector<2x96xf32>
    %cst_110 = arith.constant dense<0.000000e+00> : vector<2x128xf32>
    %505 = tpu.matmul %504, %4, %cst_110 {dimension_numbers = #tpu.dot_dimension_numbers<[1], [0], [0], [1], [0, 0, 1, 1], [], []>} : vector<2x96xf32>, vector<96x128xf32>, vector<2x128xf32> -> vector<2x128xf32>
    %506 = arith.addf %505, %10 : vector<2x128xf32>
    %507 = vector.extract_strided_slice %506 {offsets = [0, 0], sizes = [2, 32], strides = [1, 1]} : vector<2x128xf32> to vector<2x32xf32>
    %508 = arith.negf %507 : vector<2x32xf32>
    %509 = math.exp %508 : vector<2x32xf32>
    %cst_111 = arith.constant 1.000000e+00 : f32
    %510 = vector.broadcast %cst_111 : f32 to vector<2x32xf32>
    %511 = arith.addf %510, %509 : vector<2x32xf32>
    %512 = arith.divf %510, %511 : vector<2x32xf32>
    %513 = vector.extract_strided_slice %506 {offsets = [0, 32], sizes = [2, 32], strides = [1, 1]} : vector<2x128xf32> to vector<2x32xf32>
    %514 = arith.negf %513 : vector<2x32xf32>
    %515 = math.exp %514 : vector<2x32xf32>
    %cst_112 = arith.constant 1.000000e+00 : f32
    %516 = vector.broadcast %cst_112 : f32 to vector<2x32xf32>
    %517 = arith.addf %516, %515 : vector<2x32xf32>
    %518 = arith.divf %516, %517 : vector<2x32xf32>
    %519 = vector.extract_strided_slice %506 {offsets = [0, 64], sizes = [2, 32], strides = [1, 1]} : vector<2x128xf32> to vector<2x32xf32>
    %520 = math.tanh %519 : vector<2x32xf32>
    %521 = vector.extract_strided_slice %506 {offsets = [0, 96], sizes = [2, 32], strides = [1, 1]} : vector<2x128xf32> to vector<2x32xf32>
    %522 = arith.negf %521 : vector<2x32xf32>
    %523 = math.exp %522 : vector<2x32xf32>
    %cst_113 = arith.constant 1.000000e+00 : f32
    %524 = vector.broadcast %cst_113 : f32 to vector<2x32xf32>
    %525 = arith.addf %524, %523 : vector<2x32xf32>
    %526 = arith.divf %524, %525 : vector<2x32xf32>
    %527 = arith.mulf %518, %447 : vector<2x32xf32>
    %528 = arith.mulf %512, %520 : vector<2x32xf32>
    %529 = arith.addf %527, %528 : vector<2x32xf32>
    %530 = math.tanh %529 : vector<2x32xf32>
    %531 = arith.mulf %526, %530 : vector<2x32xf32>
    %532 = tpu.concatenate %531, %502 in 1 : vector<2x32xf32>, vector<2x32xf32> -> vector<2x64xf32>
    %533 = vector.extract_strided_slice %29 {offsets = [6, 0, 0], sizes = [1, 2, 32], strides = [1, 1, 1]} : vector<8x2x32xf32> to vector<1x2x32xf32>
    %534 = vector.shape_cast %533 : vector<1x2x32xf32> to vector<2x32xf32>
    %535 = tpu.concatenate %534, %502, %480 in 1 : vector<2x32xf32>, vector<2x32xf32>, vector<2x32xf32> -> vector<2x96xf32>
    %cst_114 = arith.constant dense<0.000000e+00> : vector<2x128xf32>
    %536 = tpu.matmul %535, %3, %cst_114 {dimension_numbers = #tpu.dot_dimension_numbers<[1], [0], [0], [1], [0, 0, 1, 1], [], []>} : vector<2x96xf32>, vector<96x128xf32>, vector<2x128xf32> -> vector<2x128xf32>
    %537 = arith.addf %536, %7 : vector<2x128xf32>
    %538 = vector.extract_strided_slice %537 {offsets = [0, 0], sizes = [2, 32], strides = [1, 1]} : vector<2x128xf32> to vector<2x32xf32>
    %539 = arith.negf %538 : vector<2x32xf32>
    %540 = math.exp %539 : vector<2x32xf32>
    %cst_115 = arith.constant 1.000000e+00 : f32
    %541 = vector.broadcast %cst_115 : f32 to vector<2x32xf32>
    %542 = arith.addf %541, %540 : vector<2x32xf32>
    %543 = arith.divf %541, %542 : vector<2x32xf32>
    %544 = vector.extract_strided_slice %537 {offsets = [0, 32], sizes = [2, 32], strides = [1, 1]} : vector<2x128xf32> to vector<2x32xf32>
    %545 = arith.negf %544 : vector<2x32xf32>
    %546 = math.exp %545 : vector<2x32xf32>
    %cst_116 = arith.constant 1.000000e+00 : f32
    %547 = vector.broadcast %cst_116 : f32 to vector<2x32xf32>
    %548 = arith.addf %547, %546 : vector<2x32xf32>
    %549 = arith.divf %547, %548 : vector<2x32xf32>
    %550 = vector.extract_strided_slice %537 {offsets = [0, 64], sizes = [2, 32], strides = [1, 1]} : vector<2x128xf32> to vector<2x32xf32>
    %551 = math.tanh %550 : vector<2x32xf32>
    %552 = vector.extract_strided_slice %537 {offsets = [0, 96], sizes = [2, 32], strides = [1, 1]} : vector<2x128xf32> to vector<2x32xf32>
    %553 = arith.negf %552 : vector<2x32xf32>
    %554 = math.exp %553 : vector<2x32xf32>
    %cst_117 = arith.constant 1.000000e+00 : f32
    %555 = vector.broadcast %cst_117 : f32 to vector<2x32xf32>
    %556 = arith.addf %555, %554 : vector<2x32xf32>
    %557 = arith.divf %555, %556 : vector<2x32xf32>
    %558 = arith.mulf %549, %478 : vector<2x32xf32>
    %559 = arith.mulf %543, %551 : vector<2x32xf32>
    %560 = arith.addf %558, %559 : vector<2x32xf32>
    %561 = math.tanh %560 : vector<2x32xf32>
    %562 = arith.mulf %557, %561 : vector<2x32xf32>
    %563 = tpu.concatenate %562, %498, %503 in 1 : vector<2x32xf32>, vector<2x8xf32>, vector<2x8xf32> -> vector<2x48xf32>
    %cst_118 = arith.constant dense<0.000000e+00> : vector<2x256xf32>
    %564 = tpu.matmul %563, %2, %cst_118 {dimension_numbers = #tpu.dot_dimension_numbers<[1], [0], [0], [1], [0, 0, 1, 1], [], []>} : vector<2x48xf32>, vector<48x256xf32>, vector<2x256xf32> -> vector<2x256xf32>
    %565 = vector.shape_cast %564 : vector<2x256xf32> to vector<2x8x32xf32>
    %566 = arith.addf %565, %18 : vector<2x8x32xf32>
    %567 = math.tanh %566 : vector<2x8x32xf32>
    %568 = arith.mulf %567, %14 : vector<2x8x32xf32>
    %cst_119 = arith.constant dense<0.000000e+00> : vector<2x8xf32>
    %569 = vector.multi_reduction <add>, %568, %cst_119 [2] : vector<2x8x32xf32> to vector<2x8xf32>
    %570 = arith.addf %569, %1 : vector<2x8xf32>
    %cst_120 = arith.constant dense<0xFF800000> : vector<2xf32>
    %571 = vector.multi_reduction <maximumf>, %570, %cst_120 [1] : vector<2x8xf32> to vector<2xf32>
    %572 = vector.shape_cast %571 : vector<2xf32> to vector<2x1xf32>
    %573 = vector.broadcast %572 : vector<2x1xf32> to vector<2x8xf32>
    %574 = arith.subf %570, %573 : vector<2x8xf32>
    %575 = math.exp %574 : vector<2x8xf32>
    %cst_121 = arith.constant dense<0.000000e+00> : vector<2xf32>
    %576 = vector.multi_reduction <add>, %575, %cst_121 [1] : vector<2x8xf32> to vector<2xf32>
    %577 = vector.shape_cast %576 : vector<2xf32> to vector<2x1xf32>
    %578 = tpu.reciprocal %577 {approx = true} : vector<2x1xf32> -> vector<2x1xf32>
    %579 = vector.broadcast %578 : vector<2x1xf32> to vector<2x8xf32>
    %580 = arith.mulf %575, %579 : vector<2x8xf32>
    %581 = vector.shape_cast %580 : vector<2x8xf32> to vector<2x8x1xf32>
    %582 = vector.broadcast %581 : vector<2x8x1xf32> to vector<2x8x32xf32>
    %583 = arith.mulf %582, %0 : vector<2x8x32xf32>
    %cst_122 = arith.constant dense<0.000000e+00> : vector<2x32xf32>
    %584 = vector.multi_reduction <add>, %583, %cst_122 [1] : vector<2x8x32xf32> to vector<2x32xf32>
    %585 = arith.addf %503, %580 : vector<2x8xf32>
    %586 = tpu.concatenate %562, %584, %531 in 1 : vector<2x32xf32>, vector<2x32xf32>, vector<2x32xf32> -> vector<2x96xf32>
    %cst_123 = arith.constant dense<0.000000e+00> : vector<2x128xf32>
    %587 = tpu.matmul %586, %4, %cst_123 {dimension_numbers = #tpu.dot_dimension_numbers<[1], [0], [0], [1], [0, 0, 1, 1], [], []>} : vector<2x96xf32>, vector<96x128xf32>, vector<2x128xf32> -> vector<2x128xf32>
    %588 = arith.addf %587, %10 : vector<2x128xf32>
    %589 = vector.extract_strided_slice %588 {offsets = [0, 0], sizes = [2, 32], strides = [1, 1]} : vector<2x128xf32> to vector<2x32xf32>
    %590 = arith.negf %589 : vector<2x32xf32>
    %591 = math.exp %590 : vector<2x32xf32>
    %cst_124 = arith.constant 1.000000e+00 : f32
    %592 = vector.broadcast %cst_124 : f32 to vector<2x32xf32>
    %593 = arith.addf %592, %591 : vector<2x32xf32>
    %594 = arith.divf %592, %593 : vector<2x32xf32>
    %595 = vector.extract_strided_slice %588 {offsets = [0, 32], sizes = [2, 32], strides = [1, 1]} : vector<2x128xf32> to vector<2x32xf32>
    %596 = arith.negf %595 : vector<2x32xf32>
    %597 = math.exp %596 : vector<2x32xf32>
    %cst_125 = arith.constant 1.000000e+00 : f32
    %598 = vector.broadcast %cst_125 : f32 to vector<2x32xf32>
    %599 = arith.addf %598, %597 : vector<2x32xf32>
    %600 = arith.divf %598, %599 : vector<2x32xf32>
    %601 = vector.extract_strided_slice %588 {offsets = [0, 64], sizes = [2, 32], strides = [1, 1]} : vector<2x128xf32> to vector<2x32xf32>
    %602 = math.tanh %601 : vector<2x32xf32>
    %603 = vector.extract_strided_slice %588 {offsets = [0, 96], sizes = [2, 32], strides = [1, 1]} : vector<2x128xf32> to vector<2x32xf32>
    %604 = arith.negf %603 : vector<2x32xf32>
    %605 = math.exp %604 : vector<2x32xf32>
    %cst_126 = arith.constant 1.000000e+00 : f32
    %606 = vector.broadcast %cst_126 : f32 to vector<2x32xf32>
    %607 = arith.addf %606, %605 : vector<2x32xf32>
    %608 = arith.divf %606, %607 : vector<2x32xf32>
    %609 = arith.mulf %600, %529 : vector<2x32xf32>
    %610 = arith.mulf %594, %602 : vector<2x32xf32>
    %611 = arith.addf %609, %610 : vector<2x32xf32>
    %612 = math.tanh %611 : vector<2x32xf32>
    %613 = arith.mulf %608, %612 : vector<2x32xf32>
    %614 = tpu.concatenate %613, %584 in 1 : vector<2x32xf32>, vector<2x32xf32> -> vector<2x64xf32>
    %615 = vector.extract_strided_slice %29 {offsets = [7, 0, 0], sizes = [1, 2, 32], strides = [1, 1, 1]} : vector<8x2x32xf32> to vector<1x2x32xf32>
    %616 = vector.shape_cast %615 : vector<1x2x32xf32> to vector<2x32xf32>
    %617 = tpu.concatenate %616, %584, %562 in 1 : vector<2x32xf32>, vector<2x32xf32>, vector<2x32xf32> -> vector<2x96xf32>
    %cst_127 = arith.constant dense<0.000000e+00> : vector<2x128xf32>
    %618 = tpu.matmul %617, %3, %cst_127 {dimension_numbers = #tpu.dot_dimension_numbers<[1], [0], [0], [1], [0, 0, 1, 1], [], []>} : vector<2x96xf32>, vector<96x128xf32>, vector<2x128xf32> -> vector<2x128xf32>
    %619 = arith.addf %618, %7 : vector<2x128xf32>
    %620 = vector.extract_strided_slice %619 {offsets = [0, 0], sizes = [2, 32], strides = [1, 1]} : vector<2x128xf32> to vector<2x32xf32>
    %621 = arith.negf %620 : vector<2x32xf32>
    %622 = math.exp %621 : vector<2x32xf32>
    %cst_128 = arith.constant 1.000000e+00 : f32
    %623 = vector.broadcast %cst_128 : f32 to vector<2x32xf32>
    %624 = arith.addf %623, %622 : vector<2x32xf32>
    %625 = arith.divf %623, %624 : vector<2x32xf32>
    %626 = vector.extract_strided_slice %619 {offsets = [0, 32], sizes = [2, 32], strides = [1, 1]} : vector<2x128xf32> to vector<2x32xf32>
    %627 = arith.negf %626 : vector<2x32xf32>
    %628 = math.exp %627 : vector<2x32xf32>
    %cst_129 = arith.constant 1.000000e+00 : f32
    %629 = vector.broadcast %cst_129 : f32 to vector<2x32xf32>
    %630 = arith.addf %629, %628 : vector<2x32xf32>
    %631 = arith.divf %629, %630 : vector<2x32xf32>
    %632 = vector.extract_strided_slice %619 {offsets = [0, 64], sizes = [2, 32], strides = [1, 1]} : vector<2x128xf32> to vector<2x32xf32>
    %633 = math.tanh %632 : vector<2x32xf32>
    %634 = vector.extract_strided_slice %619 {offsets = [0, 96], sizes = [2, 32], strides = [1, 1]} : vector<2x128xf32> to vector<2x32xf32>
    %635 = arith.negf %634 : vector<2x32xf32>
    %636 = math.exp %635 : vector<2x32xf32>
    %cst_130 = arith.constant 1.000000e+00 : f32
    %637 = vector.broadcast %cst_130 : f32 to vector<2x32xf32>
    %638 = arith.addf %637, %636 : vector<2x32xf32>
    %639 = arith.divf %637, %638 : vector<2x32xf32>
    %640 = arith.mulf %631, %560 : vector<2x32xf32>
    %641 = arith.mulf %625, %633 : vector<2x32xf32>
    %642 = arith.addf %640, %641 : vector<2x32xf32>
    %643 = math.tanh %642 : vector<2x32xf32>
    %644 = arith.mulf %639, %643 : vector<2x32xf32>
    %645 = tpu.concatenate %644, %580, %585 in 1 : vector<2x32xf32>, vector<2x8xf32>, vector<2x8xf32> -> vector<2x48xf32>
    %cst_131 = arith.constant dense<0.000000e+00> : vector<2x256xf32>
    %646 = tpu.matmul %645, %2, %cst_131 {dimension_numbers = #tpu.dot_dimension_numbers<[1], [0], [0], [1], [0, 0, 1, 1], [], []>} : vector<2x48xf32>, vector<48x256xf32>, vector<2x256xf32> -> vector<2x256xf32>
    %647 = vector.shape_cast %646 : vector<2x256xf32> to vector<2x8x32xf32>
    %648 = arith.addf %647, %18 : vector<2x8x32xf32>
    %649 = math.tanh %648 : vector<2x8x32xf32>
    %650 = arith.mulf %649, %14 : vector<2x8x32xf32>
    %cst_132 = arith.constant dense<0.000000e+00> : vector<2x8xf32>
    %651 = vector.multi_reduction <add>, %650, %cst_132 [2] : vector<2x8x32xf32> to vector<2x8xf32>
    %652 = arith.addf %651, %1 : vector<2x8xf32>
    %cst_133 = arith.constant dense<0xFF800000> : vector<2xf32>
    %653 = vector.multi_reduction <maximumf>, %652, %cst_133 [1] : vector<2x8xf32> to vector<2xf32>
    %654 = vector.shape_cast %653 : vector<2xf32> to vector<2x1xf32>
    %655 = vector.broadcast %654 : vector<2x1xf32> to vector<2x8xf32>
    %656 = arith.subf %652, %655 : vector<2x8xf32>
    %657 = math.exp %656 : vector<2x8xf32>
    %cst_134 = arith.constant dense<0.000000e+00> : vector<2xf32>
    %658 = vector.multi_reduction <add>, %657, %cst_134 [1] : vector<2x8xf32> to vector<2xf32>
    %659 = vector.shape_cast %658 : vector<2xf32> to vector<2x1xf32>
    %660 = tpu.reciprocal %659 {approx = true} : vector<2x1xf32> -> vector<2x1xf32>
    %661 = vector.broadcast %660 : vector<2x1xf32> to vector<2x8xf32>
    %662 = arith.mulf %657, %661 : vector<2x8xf32>
    %663 = vector.shape_cast %662 : vector<2x8xf32> to vector<2x8x1xf32>
    %664 = vector.broadcast %663 : vector<2x8x1xf32> to vector<2x8x32xf32>
    %665 = arith.mulf %664, %0 : vector<2x8x32xf32>
    %cst_135 = arith.constant dense<0.000000e+00> : vector<2x32xf32>
    %666 = vector.multi_reduction <add>, %665, %cst_135 [1] : vector<2x8x32xf32> to vector<2x32xf32>
    %667 = tpu.concatenate %644, %666, %613 in 1 : vector<2x32xf32>, vector<2x32xf32>, vector<2x32xf32> -> vector<2x96xf32>
    %cst_136 = arith.constant dense<0.000000e+00> : vector<2x128xf32>
    %668 = tpu.matmul %667, %4, %cst_136 {dimension_numbers = #tpu.dot_dimension_numbers<[1], [0], [0], [1], [0, 0, 1, 1], [], []>} : vector<2x96xf32>, vector<96x128xf32>, vector<2x128xf32> -> vector<2x128xf32>
    %669 = arith.addf %668, %10 : vector<2x128xf32>
    %670 = vector.extract_strided_slice %669 {offsets = [0, 0], sizes = [2, 32], strides = [1, 1]} : vector<2x128xf32> to vector<2x32xf32>
    %671 = arith.negf %670 : vector<2x32xf32>
    %672 = math.exp %671 : vector<2x32xf32>
    %cst_137 = arith.constant 1.000000e+00 : f32
    %673 = vector.broadcast %cst_137 : f32 to vector<2x32xf32>
    %674 = arith.addf %673, %672 : vector<2x32xf32>
    %675 = arith.divf %673, %674 : vector<2x32xf32>
    %676 = vector.extract_strided_slice %669 {offsets = [0, 32], sizes = [2, 32], strides = [1, 1]} : vector<2x128xf32> to vector<2x32xf32>
    %677 = arith.negf %676 : vector<2x32xf32>
    %678 = math.exp %677 : vector<2x32xf32>
    %cst_138 = arith.constant 1.000000e+00 : f32
    %679 = vector.broadcast %cst_138 : f32 to vector<2x32xf32>
    %680 = arith.addf %679, %678 : vector<2x32xf32>
    %681 = arith.divf %679, %680 : vector<2x32xf32>
    %682 = vector.extract_strided_slice %669 {offsets = [0, 64], sizes = [2, 32], strides = [1, 1]} : vector<2x128xf32> to vector<2x32xf32>
    %683 = math.tanh %682 : vector<2x32xf32>
    %684 = vector.extract_strided_slice %669 {offsets = [0, 96], sizes = [2, 32], strides = [1, 1]} : vector<2x128xf32> to vector<2x32xf32>
    %685 = arith.negf %684 : vector<2x32xf32>
    %686 = math.exp %685 : vector<2x32xf32>
    %cst_139 = arith.constant 1.000000e+00 : f32
    %687 = vector.broadcast %cst_139 : f32 to vector<2x32xf32>
    %688 = arith.addf %687, %686 : vector<2x32xf32>
    %689 = arith.divf %687, %688 : vector<2x32xf32>
    %690 = arith.mulf %681, %611 : vector<2x32xf32>
    %691 = arith.mulf %675, %683 : vector<2x32xf32>
    %692 = arith.addf %690, %691 : vector<2x32xf32>
    %693 = math.tanh %692 : vector<2x32xf32>
    %694 = arith.mulf %689, %693 : vector<2x32xf32>
    %695 = tpu.concatenate %694, %666 in 1 : vector<2x32xf32>, vector<2x32xf32> -> vector<2x64xf32>
    %696 = vector.shape_cast %122 : vector<2x64xf32> to vector<1x2x64xf32>
    %697 = vector.shape_cast %204 : vector<2x64xf32> to vector<1x2x64xf32>
    %698 = vector.shape_cast %286 : vector<2x64xf32> to vector<1x2x64xf32>
    %699 = vector.shape_cast %368 : vector<2x64xf32> to vector<1x2x64xf32>
    %700 = vector.shape_cast %450 : vector<2x64xf32> to vector<1x2x64xf32>
    %701 = vector.shape_cast %532 : vector<2x64xf32> to vector<1x2x64xf32>
    %702 = vector.shape_cast %614 : vector<2x64xf32> to vector<1x2x64xf32>
    %703 = vector.shape_cast %695 : vector<2x64xf32> to vector<1x2x64xf32>
    %704 = tpu.concatenate %696, %697, %698, %699, %700, %701, %702, %703 in 0 : vector<1x2x64xf32>, vector<1x2x64xf32>, vector<1x2x64xf32>, vector<1x2x64xf32>, vector<1x2x64xf32>, vector<1x2x64xf32>, vector<1x2x64xf32>, vector<1x2x64xf32> -> vector<8x2x64xf32>
    %705 = vector.shape_cast %704 : vector<8x2x64xf32> to vector<16x64xf32>
    %c0_140 = arith.constant 0 : index
    %c0_141 = arith.constant 0 : index
    %706 = vector.load %arg12[%c0_140, %c0_141] : memref<64x32xf32, #tpu.memory_space<vmem>>, vector<64x32xf32>
    %cst_142 = arith.constant dense<0.000000e+00> : vector<16x32xf32>
    %707 = tpu.matmul %705, %706, %cst_142 {dimension_numbers = #tpu.dot_dimension_numbers<[1], [0], [0], [1], [0, 0, 1, 1], [], []>} : vector<16x64xf32>, vector<64x32xf32>, vector<16x32xf32> -> vector<16x32xf32>
    %c0_143 = arith.constant 0 : index
    %c0_144 = arith.constant 0 : index
    %708 = vector.load %arg13[%c0_143, %c0_144] : memref<1x32xf32, #tpu.memory_space<vmem>>, vector<1x32xf32>
    %709 = vector.broadcast %708 : vector<1x32xf32> to vector<16x32xf32>
    %710 = arith.addf %707, %709 : vector<16x32xf32>
    %711 = vector.shape_cast %710 : vector<16x32xf32> to vector<8x2x32xf32>
    %c0_145 = arith.constant 0 : index
    %c0_146 = arith.constant 0 : index
    %c0_147 = arith.constant 0 : index
    %712 = vector.load %arg14[%c0_145, %c0_146, %c0_147] : memref<8x2x32xf32, #tpu.memory_space<vmem>>, vector<8x2x32xf32>
    tpu.vector_store %arg14[%c0_145, %c0_146, %c0_147], %711 {strides = array<i32>} : memref<8x2x32xf32, #tpu.memory_space<vmem>>, vector<8x2x32xf32>,
    %713 = vector.shape_cast %88 : vector<2x8xf32> to vector<1x2x8xf32>
    %714 = vector.shape_cast %170 : vector<2x8xf32> to vector<1x2x8xf32>
    %715 = vector.shape_cast %252 : vector<2x8xf32> to vector<1x2x8xf32>
    %716 = vector.shape_cast %334 : vector<2x8xf32> to vector<1x2x8xf32>
    %717 = vector.shape_cast %416 : vector<2x8xf32> to vector<1x2x8xf32>
    %718 = vector.shape_cast %498 : vector<2x8xf32> to vector<1x2x8xf32>
    %719 = vector.shape_cast %580 : vector<2x8xf32> to vector<1x2x8xf32>
    %720 = vector.shape_cast %662 : vector<2x8xf32> to vector<1x2x8xf32>
    %721 = tpu.concatenate %713, %714, %715, %716, %717, %718, %719, %720 in 0 : vector<1x2x8xf32>, vector<1x2x8xf32>, vector<1x2x8xf32>, vector<1x2x8xf32>, vector<1x2x8xf32>, vector<1x2x8xf32>, vector<1x2x8xf32>, vector<1x2x8xf32> -> vector<8x2x8xf32>
    %c0_148 = arith.constant 0 : index
    %c0_149 = arith.constant 0 : index
    %c0_150 = arith.constant 0 : index
    %722 = vector.load %arg15[%c0_148, %c0_149, %c0_150] : memref<8x2x8xf32, #tpu.memory_space<vmem>>, vector<8x2x8xf32>
    tpu.vector_store %arg15[%c0_148, %c0_149, %c0_150], %721 {strides = array<i32>} : memref<8x2x8xf32, #tpu.memory_space<vmem>>, vector<8x2x8xf32>,
    return
  }
}

</mosaic_0001>

<llo_original>
// kernel: decoder_train.1
$region0: #{decoder_train.1}
  #allocation0 [shape = 'u32[]', space=smem, size = 0x4, offset = 0x4, fixed_abs, tag = 'smem constant byte address 0x4 - core index']
  #allocation1 [shape = 'u32[144,128]{1,0:T(1,128)}', space=vmem, size = 0x12000, scoped, tag = 'internal scratch']
  %s0 = inlined_call_operand.vmem [shape: f32[8,2,32], index: 0, kind: input, shape index: {}]
  %s1 = inlined_call_operand.vmem [shape: f32[2,8,32], index: 1, kind: input, shape index: {}]
  %s2 = inlined_call_operand.vmem [shape: f32[2,8], index: 2, kind: input, shape index: {}]
  %s3 = inlined_call_operand.vmem [shape: f32[32,32], index: 3, kind: input, shape index: {}]
  %s4 = inlined_call_operand.vmem [shape: f32[32,32], index: 4, kind: input, shape index: {}]
  %s5 = inlined_call_operand.vmem [shape: f32[96,128], index: 5, kind: input, shape index: {}]
  %s6 = inlined_call_operand.vmem [shape: f32[1,128], index: 6, kind: input, shape index: {}]
  %s7 = inlined_call_operand.vmem [shape: f32[48,256], index: 7, kind: input, shape index: {}]
  %s8 = inlined_call_operand.vmem [shape: f32[32,32], index: 8, kind: input, shape index: {}]
  %s9 = inlined_call_operand.vmem [shape: f32[1,32], index: 9, kind: input, shape index: {}]
  %s10 = inlined_call_operand.vmem [shape: f32[96,128], index: 10, kind: input, shape index: {}]
  %s11 = inlined_call_operand.vmem [shape: f32[1,128], index: 11, kind: input, shape index: {}]
  %s12 = inlined_call_operand.vmem [shape: f32[64,32], index: 12, kind: input, shape index: {}]
  %s13 = inlined_call_operand.vmem [shape: f32[1,32], index: 13, kind: input, shape index: {}]
  %s14 = inlined_call_operand.vmem [shape: f32[8,2,32], index: 14, kind: output, shape index: {0}]
  %s15 = inlined_call_operand.vmem [shape: f32[8,2,8], index: 15, kind: output, shape index: {1}]
  %16 = xla_tuple %s14, %s15
  %s17 = sld [smem:[#allocation0]]
  $region74: #{decoder_train.1} parent=0
    _
  %s19 = ssub.s32 1, %s17
  %s20 = scalar_select 0, %s19, %s17
  // Predicated region
  $region2: #{decoder_train.1} parent=0 // pred_check
    _
  $region3: #{decoder_train.1} parent=0 // pred_check_branch
    %22 = sbr.rel (0) target = $region5
  $region4: #{decoder_train.1} parent=0 // pred_region
    _
  $region5: #{decoder_train.1} parent=0 // pred_fallthru
    _
  // Predicated region
  $region6: #{decoder_train.1} parent=0 // pred_check
    _
  $region7: #{decoder_train.1} parent=0 // pred_check_branch
    %24 = sbr.rel (0) target = $region9
  $region8: #{decoder_train.1} parent=0 // pred_region
    _
  $region9: #{decoder_train.1} parent=0 // pred_fallthru
    _
  // Predicated region
  $region10: #{decoder_train.1} parent=0 // pred_check
    _
  $region11: #{decoder_train.1} parent=0 // pred_check_branch
    %26 = sbr.rel (0) target = $region13
  $region12: #{decoder_train.1} parent=0 // pred_region
    _
  $region13: #{decoder_train.1} parent=0 // pred_fallthru
    _
  // Predicated region
  $region14: #{decoder_train.1} parent=0 // pred_check
    _
  $region15: #{decoder_train.1} parent=0 // pred_check_branch
    %28 = sbr.rel (0) target = $region17
  $region16: #{decoder_train.1} parent=0 // pred_region
    _
  $region17: #{decoder_train.1} parent=0 // pred_fallthru
    _
  // Predicated region
  $region18: #{decoder_train.1} parent=0 // pred_check
    _
  $region19: #{decoder_train.1} parent=0 // pred_check_branch
    %30 = sbr.rel (0) target = $region21
  $region20: #{decoder_train.1} parent=0 // pred_region
    _
  $region21: #{decoder_train.1} parent=0 // pred_fallthru
    _
  // Predicated region
  $region22: #{decoder_train.1} parent=0 // pred_check
    _
  $region23: #{decoder_train.1} parent=0 // pred_check_branch
    %32 = sbr.rel (0) target = $region25
  $region24: #{decoder_train.1} parent=0 // pred_region
    _
  $region25: #{decoder_train.1} parent=0 // pred_fallthru
    _
  // Predicated region
  $region26: #{decoder_train.1} parent=0 // pred_check
    _
  $region27: #{decoder_train.1} parent=0 // pred_check_branch
    %34 = sbr.rel (0) target = $region29
  $region28: #{decoder_train.1} parent=0 // pred_region
    _
  $region29: #{decoder_train.1} parent=0 // pred_fallthru
    _
  // Predicated region
  $region30: #{decoder_train.1} parent=0 // pred_check
    _
  $region31: #{decoder_train.1} parent=0 // pred_check_branch
    %36 = sbr.rel (0) target = $region33
  $region32: #{decoder_train.1} parent=0 // pred_region
    _
  $region33: #{decoder_train.1} parent=0 // pred_fallthru
    _
  // Predicated region
  $region34: #{decoder_train.1} parent=0 // pred_check
    _
  $region35: #{decoder_train.1} parent=0 // pred_check_branch
    %38 = sbr.rel (0) target = $region37
  $region36: #{decoder_train.1} parent=0 // pred_region
    _
  $region37: #{decoder_train.1} parent=0 // pred_fallthru
    _
  // Predicated region
  $region38: #{decoder_train.1} parent=0 // pred_check
    _
  $region39: #{decoder_train.1} parent=0 // pred_check_branch
    %40 = sbr.rel (0) target = $region41
  $region40: #{decoder_train.1} parent=0 // pred_region
    _
  $region41: #{decoder_train.1} parent=0 // pred_fallthru
    _
  // Predicated region
  $region42: #{decoder_train.1} parent=0 // pred_check
    _
  $region43: #{decoder_train.1} parent=0 // pred_check_branch
    %42 = sbr.rel (0) target = $region45
  $region44: #{decoder_train.1} parent=0 // pred_region
    _
  $region45: #{decoder_train.1} parent=0 // pred_fallthru
    _
  // Predicated region
  $region46: #{decoder_train.1} parent=0 // pred_check
    _
  $region47: #{decoder_train.1} parent=0 // pred_check_branch
    %44 = sbr.rel (0) target = $region49
  $region48: #{decoder_train.1} parent=0 // pred_region
    _
  $region49: #{decoder_train.1} parent=0 // pred_fallthru
    _
  // Predicated region
  $region50: #{decoder_train.1} parent=0 // pred_check
    _
  $region51: #{decoder_train.1} parent=0 // pred_check_branch
    %46 = sbr.rel (0) target = $region53
  $region52: #{decoder_train.1} parent=0 // pred_region
    _
  $region53: #{decoder_train.1} parent=0 // pred_fallthru
    _
  // Predicated region
  $region54: #{decoder_train.1} parent=0 // pred_check
    _
  $region55: #{decoder_train.1} parent=0 // pred_check_branch
    %48 = sbr.rel (0) target = $region57
  $region56: #{decoder_train.1} parent=0 // pred_region
    _
  $region57: #{decoder_train.1} parent=0 // pred_fallthru
    _
  %v49 = vld [vmem:[%s1] sm:$0xff]
  %v50 = vld [vmem:[%s1 + $0x8] sm:$0xff]
  %v51 = vld [vmem:[%s2] sm:$0x3]
  %v52 = vld [vmem:[%s7] sm:$0xff]
  %v53 = vld [vmem:[%s7 + $0x8] sm:$0xff]
  %v54 = vld [vmem:[%s7 + $0x10] sm:$0xff]
  %v55 = vld [vmem:[%s7 + $0x18] sm:$0xff]
  %v56 = vld [vmem:[%s7 + $0x20] sm:$0xff]
  %v57 = vld [vmem:[%s7 + $0x28] sm:$0xff]
  %v58 = vld [vmem:[%s7 + $0x30] sm:$0xff]
  %v59 = vld [vmem:[%s7 + $0x38] sm:$0xff]
  %v60 = vld [vmem:[%s7 + $0x40] sm:$0xff]
  %v61 = vld [vmem:[%s7 + $0x48] sm:$0xff]
  %v62 = vld [vmem:[%s7 + $0x50] sm:$0xff]
  %v63 = vld [vmem:[%s7 + $0x58] sm:$0xff]
  %v64 = vld [vmem:[%s5] sm:$0xff]
  %v65 = vld [vmem:[%s5 + $0x8] sm:$0xff]
  %v66 = vld [vmem:[%s5 + $0x10] sm:$0xff]
  %v67 = vld [vmem:[%s5 + $0x18] sm:$0xff]
  %v68 = vld [vmem:[%s5 + $0x20] sm:$0xff]
  %v69 = vld [vmem:[%s5 + $0x28] sm:$0xff]
  %v70 = vld [vmem:[%s5 + $0x30] sm:$0xff]
  %v71 = vld [vmem:[%s5 + $0x38] sm:$0xff]
  %v72 = vld [vmem:[%s5 + $0x40] sm:$0xff]
  %v73 = vld [vmem:[%s5 + $0x48] sm:$0xff]
  %v74 = vld [vmem:[%s5 + $0x50] sm:$0xff]
  %v75 = vld [vmem:[%s5 + $0x58] sm:$0xff]
  %v76 = vld [vmem:[%s10] sm:$0xff]
  %v77 = vld [vmem:[%s10 + $0x8] sm:$0xff]
  %v78 = vld [vmem:[%s10 + $0x10] sm:$0xff]
  %v79 = vld [vmem:[%s10 + $0x18] sm:$0xff]
  %v80 = vld [vmem:[%s10 + $0x20] sm:$0xff]
  %v81 = vld [vmem:[%s10 + $0x28] sm:$0xff]
  %v82 = vld [vmem:[%s10 + $0x30] sm:$0xff]
  %v83 = vld [vmem:[%s10 + $0x38] sm:$0xff]
  %v84 = vld [vmem:[%s10 + $0x40] sm:$0xff]
  %v85 = vld [vmem:[%s10 + $0x48] sm:$0xff]
  %v86 = vld [vmem:[%s10 + $0x50] sm:$0xff]
  %v87 = vld [vmem:[%s10 + $0x58] sm:$0xff]
  %v88 = vld [vmem:[%s6] sm:$0x1]
  %v90 = vlaneseq
  %v91 = vshrl.u32 %v90, 7
  %v92 = vsub.s32 0, %v91
  %v93 = vrot.slane %v88, %v92
  %v95 = vld [vmem:[%s11] sm:$0x1]
  %v97 = vlaneseq
  %v98 = vshrl.u32 %v97, 7
  %v99 = vsub.s32 0, %v98
  %v100 = vrot.slane %v95, %v99
  %v102 = vld [vmem:[%s9] sm:$0x1]
  %v104 = vlaneseq
  %v105 = vshrl.u32 %v104, 7
  %v106 = vsub.s32 0, %v105
  %v107 = vrot.slane %v102, %v106
  %v109 = vld [vmem:[%s8] sm:$0xff]
  %v110 = vld [vmem:[%s8 + $0x8] sm:$0xff]
  %v111 = vld [vmem:[%s8 + $0x10] sm:$0xff]
  %v112 = vld [vmem:[%s8 + $0x18] sm:$0xff]
  %vm113 = vcmask 261120
  %v115 = vsel %vm113, %v49, 0
  %v118 = vsel %vm113, %v50, 0
  %120 = vmatprep.subr.mxu0 0.0
  %121 = vmatpush1.msra.mxu0 0.0
  %122 = vmatprep.subr.mxu0 0.0
  %123 = vmatpush1.msra.mxu0 0.0
  %124 = vmatprep.subr.mxu0 0.0
  %125 = vmatpush1.msra.mxu0 0.0
  %126 = vmatprep.subr.mxu0 0.0
  %127 = vmatpush1.msra.mxu0 0.0
  %128 = vmatprep.subr.mxu0 0.0
  %129 = vmatpush1.msra.mxu0 0.0
  %130 = vmatprep.subr.mxu0 0.0
  %131 = vmatpush1.msra.mxu0 0.0
  %132 = vmatprep.subr.mxu0 0.0
  %133 = vmatpush1.msra.mxu0 0.0
  %134 = vmatprep.subr.mxu0 0.0
  %135 = vmatpush1.msra.mxu0 0.0
  %136 = vmatprep.subr.mxu0 0.0
  %137 = vmatpush1.msra.mxu0 0.0
  %138 = vmatprep.subr.mxu0 0.0
  %139 = vmatpush1.msra.mxu0 0.0
  %140 = vmatprep.subr.mxu0 0.0
  %141 = vmatpush1.msra.mxu0 0.0
  %142 = vmatprep.subr.mxu0 0.0
  %143 = vmatpush1.msra.mxu0 0.0
  %144 = vmatprep.subr.mxu0 0.0
  %145 = vmatpush1.msra.mxu0 %v112
  %146 = vmatprep.subr.mxu0 0.0
  %147 = vmatpush1.msra.mxu0 %v111
  %148 = vmatprep.subr.mxu0 0.0
  %149 = vmatpush1.msra.mxu0 %v110
  %150 = vmatprep.subr.mxu0 0.0
  %151 = vmatpush1.msra.mxu0 %v109
  %152 = vmatprep.subr.mxu0 0.0
  %153 = vmatpush2.msra.mxu0 0.0
  %154 = vmatprep.subr.mxu0 0.0
  %155 = vmatpush2.msra.mxu0 0.0
  %156 = vmatprep.subr.mxu0 0.0
  %157 = vmatpush2.msra.mxu0 0.0
  %158 = vmatprep.subr.mxu0 0.0
  %159 = vmatpush2.msra.mxu0 0.0
  %160 = vmatprep.subr.mxu0 0.0
  %161 = vmatpush2.msra.mxu0 0.0
  %162 = vmatprep.subr.mxu0 0.0
  %163 = vmatpush2.msra.mxu0 0.0
  %164 = vmatprep.subr.mxu0 0.0
  %165 = vmatpush2.msra.mxu0 0.0
  %166 = vmatprep.subr.mxu0 0.0
  %167 = vmatpush2.msra.mxu0 0.0
  %168 = vmatprep.subr.mxu0 0.0
  %169 = vmatpush2.msra.mxu0 0.0
  %170 = vmatprep.subr.mxu0 0.0
  %171 = vmatpush2.msra.mxu0 0.0
  %172 = vmatprep.subr.mxu0 0.0
  %173 = vmatpush2.msra.mxu0 0.0
  %174 = vmatprep.subr.mxu0 0.0
  %175 = vmatpush2.msra.mxu0 0.0
  %176 = vmatprep.subr.mxu0 0.0
  %177 = vmatpush2.msra.mxu0 0.0
  %178 = vmatprep.subr.mxu0 0.0
  %179 = vmatpush2.msra.mxu0 0.0
  %180 = vmatprep.subr.mxu0 0.0
  %181 = vmatpush2.msra.mxu0 0.0
  %182 = vmatprep.subr.mxu0 0.0
  %183 = vmatpush2.msra.mxu0 0.0
  %184 = vmatprep.mubr.f32.mxu0 0.0
  %185 = vmatmul.mubr.f32.gmra.mxu0 %v115
  %v186 = vpop.f32.mrf.mxu0
  %v187 = vadd.f32 0.0, %v186
  %v188 = vpop.f32.mrf.mxu0
  %189 = vmatprep.mubr.f32.mxu0 0.0
  %190 = vmatmul.mubr.f32.gmra.mxu0 %v118
  %v191 = vpop.f32.mrf.mxu0
  %v192 = vadd.f32 0.0, %v191
  %v193 = vpop.f32.mrf.mxu0
  %194 = vdwg.mxu0
  %v195 = vld [vmem:[%s0] sm:$0x3]
  %v196 = vld [vmem:[%s0 + $0x2] sm:$0x3]
  %v197 = vld [vmem:[%s0 + $0x4] sm:$0x3]
  %v198 = vld [vmem:[%s0 + $0x6] sm:$0x3]
  %v199 = vld [vmem:[%s0 + $0x8] sm:$0x3]
  %v200 = vld [vmem:[%s0 + $0xa] sm:$0x3]
  %v201 = vld [vmem:[%s0 + $0xc] sm:$0x3]
  %v202 = vld [vmem:[%s0 + $0xe] sm:$0x3]
  %v203 = vld [vmem:[%s3] sm:$0xff]
  %v204 = vld [vmem:[%s3 + $0x8] sm:$0xff]
  %v205 = vld [vmem:[%s3 + $0x10] sm:$0xff]
  %v206 = vld [vmem:[%s3 + $0x18] sm:$0xff]
  %v215 = vcombine.low %v195, %v196
  %v216 = vcombine.low %v197, %v198
  %v218 = vunpack.c.l.s4 1983009808
  %v219 = vunpack.c.0.s8 %v218
  %v220 = vlaneseq
  %v221 = vshrl.u32 %v220, 7
  %v222 = vsub.s32 %v219, %v221
  %v223 = vrot.slane %v215, %v222
  %v225 = vunpack.c.l.s4 1983009808
  %v226 = vunpack.c.0.s8 %v225
  %v227 = vlaneseq
  %v228 = vshrl.u32 %v227, 7
  %v229 = vsub.s32 %v226, %v228
  %v230 = vrot.slane %v216, %v229
  %v231 = vcombine.low %v223, %v230
  %v232 = vcombine.low %v199, %v200
  %v233 = vcombine.low %v201, %v202
  %v235 = vunpack.c.l.s4 1983009808
  %v236 = vunpack.c.0.s8 %v235
  %v237 = vlaneseq
  %v238 = vshrl.u32 %v237, 7
  %v239 = vsub.s32 %v236, %v238
  %v240 = vrot.slane %v232, %v239
  %v242 = vunpack.c.l.s4 1983009808
  %v243 = vunpack.c.0.s8 %v242
  %v244 = vlaneseq
  %v245 = vshrl.u32 %v244, 7
  %v246 = vsub.s32 %v243, %v245
  %v247 = vrot.slane %v233, %v246
  %v248 = vcombine.low %v240, %v247
  %v249 = vsel %vm113, %v231, 0
  %v251 = vsel %vm113, %v248, 0
  %253 = vmatprep.subr.mxu0 0.0
  %254 = vmatpush1.msra.mxu0 0.0
  %255 = vmatprep.subr.mxu0 0.0
  %256 = vmatpush1.msra.mxu0 0.0
  %257 = vmatprep.subr.mxu0 0.0
  %258 = vmatpush1.msra.mxu0 0.0
  %259 = vmatprep.subr.mxu0 0.0
  %260 = vmatpush1.msra.mxu0 0.0
  %261 = vmatprep.subr.mxu0 0.0
  %262 = vmatpush1.msra.mxu0 0.0
  %263 = vmatprep.subr.mxu0 0.0
  %264 = vmatpush1.msra.mxu0 0.0
  %265 = vmatprep.subr.mxu0 0.0
  %266 = vmatpush1.msra.mxu0 0.0
  %267 = vmatprep.subr.mxu0 0.0
  %268 = vmatpush1.msra.mxu0 0.0
  %269 = vmatprep.subr.mxu0 0.0
  %270 = vmatpush1.msra.mxu0 0.0
  %271 = vmatprep.subr.mxu0 0.0
  %272 = vmatpush1.msra.mxu0 0.0
  %273 = vmatprep.subr.mxu0 0.0
  %274 = vmatpush1.msra.mxu0 0.0
  %275 = vmatprep.subr.mxu0 0.0
  %276 = vmatpush1.msra.mxu0 0.0
  %277 = vmatprep.subr.mxu0 0.0
  %278 = vmatpush1.msra.mxu0 %v206
  %279 = vmatprep.subr.mxu0 0.0
  %280 = vmatpush1.msra.mxu0 %v205
  %281 = vmatprep.subr.mxu0 0.0
  %282 = vmatpush1.msra.mxu0 %v204
  %283 = vmatprep.subr.mxu0 0.0
  %284 = vmatpush1.msra.mxu0 %v203
  %285 = vmatprep.subr.mxu0 0.0
  %286 = vmatpush2.msra.mxu0 0.0
  %287 = vmatprep.subr.mxu0 0.0
  %288 = vmatpush2.msra.mxu0 0.0
  %289 = vmatprep.subr.mxu0 0.0
  %290 = vmatpush2.msra.mxu0 0.0
  %291 = vmatprep.subr.mxu0 0.0
  %292 = vmatpush2.msra.mxu0 0.0
  %293 = vmatprep.subr.mxu0 0.0
  %294 = vmatpush2.msra.mxu0 0.0
  %295 = vmatprep.subr.mxu0 0.0
  %296 = vmatpush2.msra.mxu0 0.0
  %297 = vmatprep.subr.mxu0 0.0
  %298 = vmatpush2.msra.mxu0 0.0
  %299 = vmatprep.subr.mxu0 0.0
  %300 = vmatpush2.msra.mxu0 0.0
  %301 = vmatprep.subr.mxu0 0.0
  %302 = vmatpush2.msra.mxu0 0.0
  %303 = vmatprep.subr.mxu0 0.0
  %304 = vmatpush2.msra.mxu0 0.0
  %305 = vmatprep.subr.mxu0 0.0
  %306 = vmatpush2.msra.mxu0 0.0
  %307 = vmatprep.subr.mxu0 0.0
  %308 = vmatpush2.msra.mxu0 0.0
  %309 = vmatprep.subr.mxu0 0.0
  %310 = vmatpush2.msra.mxu0 0.0
  %311 = vmatprep.subr.mxu0 0.0
  %312 = vmatpush2.msra.mxu0 0.0
  %313 = vmatprep.subr.mxu0 0.0
  %314 = vmatpush2.msra.mxu0 0.0
  %315 = vmatprep.subr.mxu0 0.0
  %316 = vmatpush2.msra.mxu0 0.0
  %317 = vmatprep.mubr.f32.mxu0 0.0
  %318 = vmatmul.mubr.f32.gmra.mxu0 %v249
  %v319 = vpop.f32.mrf.mxu0
  %v320 = vadd.f32 0.0, %v319
  %v321 = vpop.f32.mrf.mxu0
  %322 = vmatprep.mubr.f32.mxu0 0.0
  %323 = vmatmul.mubr.f32.gmra.mxu0 %v251
  %v324 = vpop.f32.mrf.mxu0
  %v325 = vadd.f32 0.0, %v324
  %v326 = vpop.f32.mrf.mxu0
  %327 = vdwg.mxu0
  %v328 = vmax.f32 %v320, 0.0
  %v329 = vmax.f32 %v325, 0.0
  %v330 = vld [vmem:[%s4] sm:$0xff]
  %v331 = vld [vmem:[%s4 + $0x8] sm:$0xff]
  %v332 = vld [vmem:[%s4 + $0x10] sm:$0xff]
  %v333 = vld [vmem:[%s4 + $0x18] sm:$0xff]
  %v335 = vsel %vm113, %v328, 0
  %v338 = vsel %vm113, %v329, 0
  %340 = vmatprep.subr.mxu0 0.0
  %341 = vmatpush1.msra.mxu0 0.0
  %342 = vmatprep.subr.mxu0 0.0
  %343 = vmatpush1.msra.mxu0 0.0
  %344 = vmatprep.subr.mxu0 0.0
  %345 = vmatpush1.msra.mxu0 0.0
  %346 = vmatprep.subr.mxu0 0.0
  %347 = vmatpush1.msra.mxu0 0.0
  %348 = vmatprep.subr.mxu0 0.0
  %349 = vmatpush1.msra.mxu0 0.0
  %350 = vmatprep.subr.mxu0 0.0
  %351 = vmatpush1.msra.mxu0 0.0
  %352 = vmatprep.subr.mxu0 0.0
  %353 = vmatpush1.msra.mxu0 0.0
  %354 = vmatprep.subr.mxu0 0.0
  %355 = vmatpush1.msra.mxu0 0.0
  %356 = vmatprep.subr.mxu0 0.0
  %357 = vmatpush1.msra.mxu0 0.0
  %358 = vmatprep.subr.mxu0 0.0
  %359 = vmatpush1.msra.mxu0 0.0
  %360 = vmatprep.subr.mxu0 0.0
  %361 = vmatpush1.msra.mxu0 0.0
  %362 = vmatprep.subr.mxu0 0.0
  %363 = vmatpush1.msra.mxu0 0.0
  %364 = vmatprep.subr.mxu0 0.0
  %365 = vmatpush1.msra.mxu0 %v333
  %366 = vmatprep.subr.mxu0 0.0
  %367 = vmatpush1.msra.mxu0 %v332
  %368 = vmatprep.subr.mxu0 0.0
  %369 = vmatpush1.msra.mxu0 %v331
  %370 = vmatprep.subr.mxu0 0.0
  %371 = vmatpush1.msra.mxu0 %v330
  %372 = vmatprep.subr.mxu0 0.0
  %373 = vmatpush2.msra.mxu0 0.0
  %374 = vmatprep.subr.mxu0 0.0
  %375 = vmatpush2.msra.mxu0 0.0
  %376 = vmatprep.subr.mxu0 0.0
  %377 = vmatpush2.msra.mxu0 0.0
  %378 = vmatprep.subr.mxu0 0.0
  %379 = vmatpush2.msra.mxu0 0.0
  %380 = vmatprep.subr.mxu0 0.0
  %381 = vmatpush2.msra.mxu0 0.0
  %382 = vmatprep.subr.mxu0 0.0
  %383 = vmatpush2.msra.mxu0 0.0
  %384 = vmatprep.subr.mxu0 0.0
  %385 = vmatpush2.msra.mxu0 0.0
  %386 = vmatprep.subr.mxu0 0.0
  %387 = vmatpush2.msra.mxu0 0.0
  %388 = vmatprep.subr.mxu0 0.0
  %389 = vmatpush2.msra.mxu0 0.0
  %390 = vmatprep.subr.mxu0 0.0
  %391 = vmatpush2.msra.mxu0 0.0
  %392 = vmatprep.subr.mxu0 0.0
  %393 = vmatpush2.msra.mxu0 0.0
  %394 = vmatprep.subr.mxu0 0.0
  %395 = vmatpush2.msra.mxu0 0.0
  %396 = vmatprep.subr.mxu0 0.0
  %397 = vmatpush2.msra.mxu0 0.0
  %398 = vmatprep.subr.mxu0 0.0
  %399 = vmatpush2.msra.mxu0 0.0
  %400 = vmatprep.subr.mxu0 0.0
  %401 = vmatpush2.msra.mxu0 0.0
  %402 = vmatprep.subr.mxu0 0.0
  %403 = vmatpush2.msra.mxu0 0.0
  %404 = vmatprep.mubr.f32.mxu0 0.0
  %405 = vmatmul.mubr.f32.gmra.mxu0 %v335
  %v406 = vpop.f32.mrf.mxu0
  %v407 = vadd.f32 0.0, %v406
  %v408 = vpop.f32.mrf.mxu0
  %409 = vmatprep.mubr.f32.mxu0 0.0
  %410 = vmatmul.mubr.f32.gmra.mxu0 %v338
  %v411 = vpop.f32.mrf.mxu0
  %v412 = vadd.f32 0.0, %v411
  %v413 = vpop.f32.mrf.mxu0
  %414 = vdwg.mxu0
  %v415 = vmax.f32 %v407, 0.0
  %v416 = vmax.f32 %v412, 0.0
  %v419 = vcombine.high %v415, %v415
  %v421 = vunpack.c.l.s4 1983009808
  %v422 = vunpack.c.0.s8 %v421
  %v423 = vlaneseq
  %v424 = vshrl.u32 %v423, 7
  %v425 = vsub.s32 %v422, %v424
  %v426 = vrot.slane %v415, %v425
  %v428 = vunpack.c.l.s4 1983009808
  %v429 = vunpack.c.0.s8 %v428
  %v430 = vlaneseq
  %v431 = vshrl.u32 %v430, 7
  %v432 = vsub.s32 %v429, %v431
  %v433 = vrot.slane %v419, %v432
  %v434 = vcombine.high %v426, %v426
  %v435 = vcombine.high %v433, %v433
  %v436 = vcombine.high %v416, %v416
  %v438 = vunpack.c.l.s4 1983009808
  %v439 = vunpack.c.0.s8 %v438
  %v440 = vlaneseq
  %v441 = vshrl.u32 %v440, 7
  %v442 = vsub.s32 %v439, %v441
  %v443 = vrot.slane %v416, %v442
  %v445 = vunpack.c.l.s4 1983009808
  %v446 = vunpack.c.0.s8 %v445
  %v447 = vlaneseq
  %v448 = vshrl.u32 %v447, 7
  %v449 = vsub.s32 %v446, %v448
  %v450 = vrot.slane %v436, %v449
  %v451 = vcombine.high %v443, %v443
  %v452 = vcombine.high %v450, %v450
  %v461 = vlaneseq
  %v462 = vand.u32 %v461, 127
  %vm463 = vcmp.eq.s32.totalorder %v462, 0
  %v464 = vsel %vm463, 1.0, 0.0
  %v465 = vsel %vm113, %v426, 0.0
  %vm466 = vcmask 523264
  %v467 = vsel %vm466, %v465, 0.0
  %vm468 = vcmask 785408
  %v470 = vsel %vm468, %v467, 0
  %472 = vmatprep.subr.mxu0 0.0
  %473 = vmatpush1.msra.mxu0 0.0
  %474 = vmatprep.subr.mxu0 0.0
  %475 = vmatpush1.msra.mxu0 0.0
  %476 = vmatprep.subr.mxu0 0.0
  %477 = vmatpush1.msra.mxu0 0.0
  %478 = vmatprep.subr.mxu0 0.0
  %479 = vmatpush1.msra.mxu0 0.0
  %480 = vmatprep.subr.mxu0 0.0
  %481 = vmatpush1.msra.mxu0 %v75
  %482 = vmatprep.subr.mxu0 0.0
  %483 = vmatpush1.msra.mxu0 %v74
  %484 = vmatprep.subr.mxu0 0.0
  %485 = vmatpush1.msra.mxu0 %v73
  %486 = vmatprep.subr.mxu0 0.0
  %487 = vmatpush1.msra.mxu0 %v72
  %488 = vmatprep.subr.mxu0 0.0
  %489 = vmatpush1.msra.mxu0 %v71
  %490 = vmatprep.subr.mxu0 0.0
  %491 = vmatpush1.msra.mxu0 %v70
  %492 = vmatprep.subr.mxu0 0.0
  %493 = vmatpush1.msra.mxu0 %v69
  %494 = vmatprep.subr.mxu0 0.0
  %495 = vmatpush1.msra.mxu0 %v68
  %496 = vmatprep.subr.mxu0 0.0
  %497 = vmatpush1.msra.mxu0 %v67
  %498 = vmatprep.subr.mxu0 0.0
  %499 = vmatpush1.msra.mxu0 %v66
  %500 = vmatprep.subr.mxu0 0.0
  %501 = vmatpush1.msra.mxu0 %v65
  %502 = vmatprep.subr.mxu0 0.0
  %503 = vmatpush1.msra.mxu0 %v64
  %504 = vmatprep.subr.mxu0 0.0
  %505 = vmatpush2.msra.mxu0 0.0
  %506 = vmatprep.subr.mxu0 0.0
  %507 = vmatpush2.msra.mxu0 0.0
  %508 = vmatprep.subr.mxu0 0.0
  %509 = vmatpush2.msra.mxu0 0.0
  %510 = vmatprep.subr.mxu0 0.0
  %511 = vmatpush2.msra.mxu0 0.0
  %512 = vmatprep.subr.mxu0 0.0
  %513 = vmatpush2.msra.mxu0 0.0
  %514 = vmatprep.subr.mxu0 0.0
  %515 = vmatpush2.msra.mxu0 0.0
  %516 = vmatprep.subr.mxu0 0.0
  %517 = vmatpush2.msra.mxu0 0.0
  %518 = vmatprep.subr.mxu0 0.0
  %519 = vmatpush2.msra.mxu0 0.0
  %520 = vmatprep.subr.mxu0 0.0
  %521 = vmatpush2.msra.mxu0 0.0
  %522 = vmatprep.subr.mxu0 0.0
  %523 = vmatpush2.msra.mxu0 0.0
  %524 = vmatprep.subr.mxu0 0.0
  %525 = vmatpush2.msra.mxu0 0.0
  %526 = vmatprep.subr.mxu0 0.0
  %527 = vmatpush2.msra.mxu0 0.0
  %528 = vmatprep.subr.mxu0 0.0
  %529 = vmatpush2.msra.mxu0 0.0
  %530 = vmatprep.subr.mxu0 0.0
  %531 = vmatpush2.msra.mxu0 0.0
  %532 = vmatprep.subr.mxu0 0.0
  %533 = vmatpush2.msra.mxu0 0.0
  %534 = vmatprep.subr.mxu0 0.0
  %535 = vmatpush2.msra.mxu0 0.0
  %536 = vmatprep.mubr.f32.mxu0 0.0
  %537 = vmatmul.mubr.f32.gmra.mxu0 %v470
  %v538 = vpop.f32.mrf.mxu0
  %v539 = vadd.f32 %v93, %v538
  %v540 = vpop.f32.mrf.mxu0
  %541 = vdwg.mxu0
  %v542 = vxor.u32 %v539, 2147483648
  %v543 = vmul.f32 %v542, 1.442695
  %v544 = vpow.pop %v543
  %v545 = vadd.f32 %v544, 1.0
  %v546 = vrcp.pop %v545
  %v547 = vmul.f32 1.0, %v546
  %v548 = vtanh.pop %v539
  %v549 = vmul.f32 %v547, 0.0
  %551 = vrot.lane.b32.xlu0 %v548, 64
  %v552 = vpop.permute.xlu0 %551
  %v554 = vmul.f32 %v547, %v552
  %556 = vrot.lane.b32.xlu0 %v554, 32
  %v557 = vpop.permute.xlu0 %556
  %v559 = vadd.f32 %v549, %v557
  %v560 = vtanh.pop %v559
  %562 = vrot.lane.b32.xlu0 %v560, 64
  %v563 = vpop.permute.xlu0 %562
  %v565 = vmul.f32 %v547, %v563
  %567 = vrot.lane.b32.xlu0 %v565, 32
  %v568 = vpop.permute.xlu0 %567
  %571 = vrot.lane.b32.xlu0 %v464, 32
  %v572 = vpop.permute.xlu0 %571
  %574 = vrot.lane.b32.xlu0 %v464, 40
  %v575 = vpop.permute.xlu0 %574
  %v577 = vsel %vm113, %v568, %v572
  %vm578 = vcmask 326656
  %v579 = vsel %vm578, %v577, %v575
  %vm580 = vcmask 392192
  %v582 = vsel %vm580, %v579, 0
  %584 = vmatprep.subr.mxu0 0.0
  %585 = vmatpush1.msra.mxu0 0.0
  %586 = vmatprep.subr.mxu0 0.0
  %587 = vmatpush1.msra.mxu0 0.0
  %588 = vmatprep.subr.mxu0 0.0
  %589 = vmatpush1.msra.mxu0 0.0
  %590 = vmatprep.subr.mxu0 0.0
  %591 = vmatpush1.msra.mxu0 0.0
  %592 = vmatprep.subr.mxu0 0.0
  %593 = vmatpush1.msra.mxu0 0.0
  %594 = vmatprep.subr.mxu0 0.0
  %595 = vmatpush1.msra.mxu0 0.0
  %596 = vmatprep.subr.mxu0 0.0
  %597 = vmatpush1.msra.mxu0 0.0
  %598 = vmatprep.subr.mxu0 0.0
  %599 = vmatpush1.msra.mxu0 0.0
  %600 = vmatprep.subr.mxu0 0.0
  %601 = vmatpush1.msra.mxu0 0.0
  %602 = vmatprep.subr.mxu0 0.0
  %603 = vmatpush1.msra.mxu0 0.0
  %604 = vmatprep.subr.mxu0 %v63
  %605 = vmatpush1.msra.mxu0 %v62
  %606 = vmatprep.subr.mxu0 %v61
  %607 = vmatpush1.msra.mxu0 %v60
  %608 = vmatprep.subr.mxu0 %v59
  %609 = vmatpush1.msra.mxu0 %v58
  %610 = vmatprep.subr.mxu0 %v57
  %611 = vmatpush1.msra.mxu0 %v56
  %612 = vmatprep.subr.mxu0 %v55
  %613 = vmatpush1.msra.mxu0 %v54
  %614 = vmatprep.subr.mxu0 %v53
  %615 = vmatpush1.msra.mxu0 %v52
  %616 = vmatprep.subr.mxu0 0.0
  %617 = vmatpush2.msra.mxu0 0.0
  %618 = vmatprep.subr.mxu0 0.0
  %619 = vmatpush2.msra.mxu0 0.0
  %620 = vmatprep.subr.mxu0 0.0
  %621 = vmatpush2.msra.mxu0 0.0
  %622 = vmatprep.subr.mxu0 0.0
  %623 = vmatpush2.msra.mxu0 0.0
  %624 = vmatprep.subr.mxu0 0.0
  %625 = vmatpush2.msra.mxu0 0.0
  %626 = vmatprep.subr.mxu0 0.0
  %627 = vmatpush2.msra.mxu0 0.0
  %628 = vmatprep.subr.mxu0 0.0
  %629 = vmatpush2.msra.mxu0 0.0
  %630 = vmatprep.subr.mxu0 0.0
  %631 = vmatpush2.msra.mxu0 0.0
  %632 = vmatprep.subr.mxu0 0.0
  %633 = vmatpush2.msra.mxu0 0.0
  %634 = vmatprep.subr.mxu0 0.0
  %635 = vmatpush2.msra.mxu0 0.0
  %636 = vmatprep.subr.mxu0 0.0
  %637 = vmatpush2.msra.mxu0 0.0
  %638 = vmatprep.subr.mxu0 0.0
  %639 = vmatpush2.msra.mxu0 0.0
  %640 = vmatprep.subr.mxu0 0.0
  %641 = vmatpush2.msra.mxu0 0.0
  %642 = vmatprep.subr.mxu0 0.0
  %643 = vmatpush2.msra.mxu0 0.0
  %644 = vmatprep.subr.mxu0 0.0
  %645 = vmatpush2.msra.mxu0 0.0
  %646 = vmatprep.subr.mxu0 0.0
  %647 = vmatpush2.msra.mxu0 0.0
  %648 = vmatprep.mubr.f32.mxu0 0.0
  %649 = vmatmul.mubr.f32.gmra.mxu0 %v582
  %v650 = vpop.f32.mrf.mxu0
  %v651 = vadd.f32 0.0, %v650
  %v652 = vpop.f32.mrf.mxu0
  %v653 = vadd.f32 0.0, %v652
  %654 = vdwg.mxu0
  %656 = vrot.lane.b32.xlu0 %v651, 96
  %v657 = vpop.permute.xlu0 %656
  %659 = vrot.lane.b32.xlu0 %v651, 64
  %v660 = vpop.permute.xlu0 %659
  %662 = vrot.lane.b32.xlu0 %v651, 32
  %v663 = vpop.permute.xlu0 %662
  %666 = vrot.lane.b32.xlu0 %v653, 96
  %v667 = vpop.permute.xlu0 %666
  %669 = vrot.lane.b32.xlu0 %v653, 64
  %v670 = vpop.permute.xlu0 %669
  %672 = vrot.lane.b32.xlu0 %v653, 32
  %v673 = vpop.permute.xlu0 %672
  %v675 = vcombine.low %v651, %v660
  %v677 = vunpack.c.l.s4 1983009808
  %v678 = vunpack.c.0.s8 %v677
  %v679 = vlaneseq
  %v680 = vshrl.u32 %v679, 7
  %v681 = vsub.s32 %v678, %v680
  %v682 = vrot.slane %v675, %v681
  %v683 = vcombine.low %v657, %v663
  %v685 = vunpack.c.l.s4 1983009808
  %v686 = vunpack.c.0.s8 %v685
  %v687 = vlaneseq
  %v688 = vshrl.u32 %v687, 7
  %v689 = vsub.s32 %v686, %v688
  %v690 = vrot.slane %v683, %v689
  %v691 = vcombine.low %v653, %v670
  %v693 = vunpack.c.l.s4 1983009808
  %v694 = vunpack.c.0.s8 %v693
  %v695 = vlaneseq
  %v696 = vshrl.u32 %v695, 7
  %v697 = vsub.s32 %v694, %v696
  %v698 = vrot.slane %v691, %v697
  %v699 = vcombine.low %v667, %v673
  %v701 = vunpack.c.l.s4 1983009808
  %v702 = vunpack.c.0.s8 %v701
  %v703 = vlaneseq
  %v704 = vshrl.u32 %v703, 7
  %v705 = vsub.s32 %v702, %v704
  %v706 = vrot.slane %v699, %v705
  %v707 = vcombine.low %v682, %v690
  %v709 = vunpack.c.l.s4 1934713408
  %v710 = vunpack.c.0.s8 %v709
  %v711 = vlaneseq
  %v712 = vshrl.u32 %v711, 7
  %v713 = vsub.s32 %v710, %v712
  %v714 = vrot.slane %v707, %v713
  %v715 = vcombine.low %v698, %v706
  %v717 = vunpack.c.l.s4 1934713408
  %v718 = vunpack.c.0.s8 %v717
  %v719 = vlaneseq
  %v720 = vshrl.u32 %v719, 7
  %v721 = vsub.s32 %v718, %v720
  %v722 = vrot.slane %v715, %v721
  %v723 = vcombine.low %v714, %v722
  %v724 = vcombine.high %v714, %v722
  %v725 = vadd.f32 %v723, %v187
  %v726 = vadd.f32 %v724, %v192
  %v727 = vtanh.pop %v725
  %v728 = vtanh.pop %v726
  %v729 = vmul.f32 %v727, %v107
  %v730 = vmul.f32 %v728, %v107
  %v731 = vsel %vm113, %v729, 0.0
  %732 = vadd.xlane.f32.xlu0 %v731
  %v733 = vpop.xlane.xlu0 %732
  %v734 = vsel %vm113, %v730, 0.0
  %735 = vadd.xlane.f32.xlu0 %v734
  %v736 = vpop.xlane.xlu0 %735
  %v738 = vlaneseq
  %v739 = vshrl.u32 %v738, 7
  %v740 = vsub.s32 0, %v739
  %v741 = vrot.slane %v51, %v740
  %743 = vbcast.lane.b32.xlu0 %v741, 256
  %v744 = vpop.permute.xlu0 %743
  %v745 = vlaneseq
  %v746 = vshrl.u32 %v745, 7
  %v747 = vsub.s32 1, %v746
  %v748 = vrot.slane %v51, %v747
  %750 = vbcast.lane.b32.xlu0 %v748, 256
  %v751 = vpop.permute.xlu0 %750
  %v754 = vadd.f32 %v733, %v744
  %v755 = vadd.f32 %v736, %v751
  %758 = vset.pattern.permute.xlu0 0
  %759 = vperm.xlu0 %758, %v754
  %v760 = vpop.permute.xlu0 %759
  %761 = vset.pattern.permute.xlu0 0
  %762 = vperm.xlu0 %761, %v755
  %v763 = vpop.permute.xlu0 %762
  %v764 = vlaneseq
  %v765 = vshrl.u32 %v764, 7
  %v766 = vsub.s32 %v462, %v765
  %v767 = vrot.slane %v760, %v766
  %v768 = vlaneseq
  %v769 = vshrl.u32 %v768, 7
  %v770 = vsub.s32 %v462, %v769
  %v771 = vrot.slane %v763, %v770
  %vm772 = vcmask 1041409
  %v773 = vsel %vm772, %v771, %v767
  %vm775 = vcmask 58368
  %v776 = vsel %vm775, %v773, -inf
  %777 = vmax.xlane.f32.xlu0 %v776
  %v778 = vpop.xlane.xlu0 %777
  %v780 = vlaneseq
  %v781 = vshrl.u32 %v780, 7
  %v782 = vsub.s32 0, %v781
  %v783 = vrot.slane %v778, %v782
  %v784 = vlaneseq
  %v785 = vshrl.u32 %v784, 7
  %v786 = vsub.s32 1, %v785
  %v787 = vrot.slane %v778, %v786
  %v790 = vsub.f32 %v754, %v783
  %v791 = vsub.f32 %v755, %v787
  %v792 = vmul.f32 %v790, 1.442695
  %v793 = vpow.pop %v792
  %v794 = vmul.f32 %v791, 1.442695
  %v795 = vpow.pop %v794
  %798 = vset.pattern.permute.xlu0 0
  %799 = vperm.xlu0 %798, %v793
  %v800 = vpop.permute.xlu0 %799
  %801 = vset.pattern.permute.xlu0 0
  %802 = vperm.xlu0 %801, %v795
  %v803 = vpop.permute.xlu0 %802
  %v804 = vlaneseq
  %v805 = vshrl.u32 %v804, 7
  %v806 = vsub.s32 %v462, %v805
  %v807 = vrot.slane %v800, %v806
  %v808 = vlaneseq
  %v809 = vshrl.u32 %v808, 7
  %v810 = vsub.s32 %v462, %v809
  %v811 = vrot.slane %v803, %v810
  %v812 = vsel %vm772, %v811, %v807
  %v814 = vsel %vm775, %v812, 0.0
  %815 = vadd.xlane.f32.xlu0 %v814
  %v816 = vpop.xlane.xlu0 %815
  %v817 = vrcp.pop %v816
  %v819 = vlaneseq
  %v820 = vshrl.u32 %v819, 7
  %v821 = vsub.s32 0, %v820
  %v822 = vrot.slane %v817, %v821
  %v823 = vlaneseq
  %v824 = vshrl.u32 %v823, 7
  %v825 = vsub.s32 1, %v824
  %v826 = vrot.slane %v817, %v825
  %v829 = vmul.f32 %v793, %v822
  %v830 = vmul.f32 %v795, %v826
  %832 = vset.pattern.permute.xlu0 0
  %833 = vperm.xlu0 %832, %v829
  %v834 = vpop.permute.xlu0 %833
  %837 = vset.pattern.permute.xlu0 0
  %838 = vperm.xlu0 %837, %v830
  %v839 = vpop.permute.xlu0 %838
  %v841 = vmul.f32 %v834, %v49
  %v842 = vmul.f32 %v839, %v50
  %v843 = vsel %vm113, %v841, 0.0
  %v844 = vrot.slane %v843, 4
  %v845 = vadd.f32 %v843, %v844
  %v846 = vrot.slane %v845, 2
  %v847 = vadd.f32 %v845, %v846
  %v848 = vrot.slane %v847, 1
  %v849 = vadd.f32 %v847, %v848
  %v850 = vsel %vm113, %v842, 0.0
  %v851 = vrot.slane %v850, 4
  %v852 = vadd.f32 %v850, %v851
  %v853 = vrot.slane %v852, 2
  %v854 = vadd.f32 %v852, %v853
  %v855 = vrot.slane %v854, 1
  %v856 = vadd.f32 %v854, %v855
  %v857 = vlaneseq
  %v858 = vshrl.u32 %v857, 7
  %v859 = vsub.s32 %v462, %v858
  %v860 = vrot.slane %v834, %v859
  %v861 = vlaneseq
  %v862 = vshrl.u32 %v861, 7
  %v863 = vsub.s32 %v462, %v862
  %v864 = vrot.slane %v839, %v863
  %v865 = vsel %vm772, %v864, %v860
  %v867 = vadd.f32 %v464, %v865
  %v870 = vsel %vm772, %v856, %v849
  %871 = vrot.lane.b32.xlu0 %v870, 32
  %v872 = vpop.permute.xlu0 %871
  %v874 = vsel %vm113, %v568, %v872
  %v875 = vsel %vm466, %v874, 0.0
  %v877 = vsel %vm468, %v875, 0
  %879 = vmatprep.subr.mxu0 0.0
  %880 = vmatpush1.msra.mxu0 0.0
  %881 = vmatprep.subr.mxu0 0.0
  %882 = vmatpush1.msra.mxu0 0.0
  %883 = vmatprep.subr.mxu0 0.0
  %884 = vmatpush1.msra.mxu0 0.0
  %885 = vmatprep.subr.mxu0 0.0
  %886 = vmatpush1.msra.mxu0 0.0
  %887 = vmatprep.subr.mxu0 0.0
  %888 = vmatpush1.msra.mxu0 %v87
  %889 = vmatprep.subr.mxu0 0.0
  %890 = vmatpush1.msra.mxu0 %v86
  %891 = vmatprep.subr.mxu0 0.0
  %892 = vmatpush1.msra.mxu0 %v85
  %893 = vmatprep.subr.mxu0 0.0
  %894 = vmatpush1.msra.mxu0 %v84
  %895 = vmatprep.subr.mxu0 0.0
  %896 = vmatpush1.msra.mxu0 %v83
  %897 = vmatprep.subr.mxu0 0.0
  %898 = vmatpush1.msra.mxu0 %v82
  %899 = vmatprep.subr.mxu0 0.0
  %900 = vmatpush1.msra.mxu0 %v81
  %901 = vmatprep.subr.mxu0 0.0
  %902 = vmatpush1.msra.mxu0 %v80
  %903 = vmatprep.subr.mxu0 0.0
  %904 = vmatpush1.msra.mxu0 %v79
  %905 = vmatprep.subr.mxu0 0.0
  %906 = vmatpush1.msra.mxu0 %v78
  %907 = vmatprep.subr.mxu0 0.0
  %908 = vmatpush1.msra.mxu0 %v77
  %909 = vmatprep.subr.mxu0 0.0
  %910 = vmatpush1.msra.mxu0 %v76
  %911 = vmatprep.subr.mxu0 0.0
  %912 = vmatpush2.msra.mxu0 0.0
  %913 = vmatprep.subr.mxu0 0.0
  %914 = vmatpush2.msra.mxu0 0.0
  %915 = vmatprep.subr.mxu0 0.0
  %916 = vmatpush2.msra.mxu0 0.0
  %917 = vmatprep.subr.mxu0 0.0
  %918 = vmatpush2.msra.mxu0 0.0
  %919 = vmatprep.subr.mxu0 0.0
  %920 = vmatpush2.msra.mxu0 0.0
  %921 = vmatprep.subr.mxu0 0.0
  %922 = vmatpush2.msra.mxu0 0.0
  %923 = vmatprep.subr.mxu0 0.0
  %924 = vmatpush2.msra.mxu0 0.0
  %925 = vmatprep.subr.mxu0 0.0
  %926 = vmatpush2.msra.mxu0 0.0
  %927 = vmatprep.subr.mxu0 0.0
  %928 = vmatpush2.msra.mxu0 0.0
  %929 = vmatprep.subr.mxu0 0.0
  %930 = vmatpush2.msra.mxu0 0.0
  %931 = vmatprep.subr.mxu0 0.0
  %932 = vmatpush2.msra.mxu0 0.0
  %933 = vmatprep.subr.mxu0 0.0
  %934 = vmatpush2.msra.mxu0 0.0
  %935 = vmatprep.subr.mxu0 0.0
  %936 = vmatpush2.msra.mxu0 0.0
  %937 = vmatprep.subr.mxu0 0.0
  %938 = vmatpush2.msra.mxu0 0.0
  %939 = vmatprep.subr.mxu0 0.0
  %940 = vmatpush2.msra.mxu0 0.0
  %941 = vmatprep.subr.mxu0 0.0
  %942 = vmatpush2.msra.mxu0 0.0
  %943 = vmatprep.mubr.f32.mxu0 0.0
  %944 = vmatmul.mubr.f32.gmra.mxu0 %v877
  %v945 = vpop.f32.mrf.mxu0
  %v946 = vadd.f32 %v100, %v945
  %v947 = vpop.f32.mrf.mxu0
  %948 = vdwg.mxu0
  %v949 = vxor.u32 %v946, 2147483648
  %v950 = vmul.f32 %v949, 1.442695
  %v951 = vpow.pop %v950
  %v952 = vadd.f32 %v951, 1.0
  %v953 = vrcp.pop %v952
  %v954 = vmul.f32 1.0, %v953
  %v955 = vtanh.pop %v946
  %v956 = vmul.f32 %v954, 0.0
  %958 = vrot.lane.b32.xlu0 %v955, 64
  %v959 = vpop.permute.xlu0 %958
  %v961 = vmul.f32 %v954, %v959
  %963 = vrot.lane.b32.xlu0 %v961, 32
  %v964 = vpop.permute.xlu0 %963
  %v966 = vadd.f32 %v956, %v964
  %v967 = vtanh.pop %v966
  %969 = vrot.lane.b32.xlu0 %v967, 64
  %v970 = vpop.permute.xlu0 %969
  %v972 = vmul.f32 %v954, %v970
  %974 = vrot.lane.b32.xlu0 %v972, 32
  %v975 = vpop.permute.xlu0 %974
  %v977 = vsel %vm113, %v975, %v872
  %978 = vrot.lane.b32.xlu0 %v565, 96
  %v979 = vpop.permute.xlu0 %978
  %v981 = vsel %vm113, %v434, %v872
  %v982 = vsel %vm466, %v981, %v979
  %v984 = vsel %vm468, %v982, 0
  %986 = vmatprep.subr.mxu0 0.0
  %987 = vmatpush1.msra.mxu0 0.0
  %988 = vmatprep.subr.mxu0 0.0
  %989 = vmatpush1.msra.mxu0 0.0
  %990 = vmatprep.subr.mxu0 0.0
  %991 = vmatpush1.msra.mxu0 0.0
  %992 = vmatprep.subr.mxu0 0.0
  %993 = vmatpush1.msra.mxu0 0.0
  %994 = vmatprep.subr.mxu0 0.0
  %995 = vmatpush1.msra.mxu0 %v75
  %996 = vmatprep.subr.mxu0 0.0
  %997 = vmatpush1.msra.mxu0 %v74
  %998 = vmatprep.subr.mxu0 0.0
  %999 = vmatpush1.msra.mxu0 %v73
  %1000 = vmatprep.subr.mxu0 0.0
  %1001 = vmatpush1.msra.mxu0 %v72
  %1002 = vmatprep.subr.mxu0 0.0
  %1003 = vmatpush1.msra.mxu0 %v71
  %1004 = vmatprep.subr.mxu0 0.0
  %1005 = vmatpush1.msra.mxu0 %v70
  %1006 = vmatprep.subr.mxu0 0.0
  %1007 = vmatpush1.msra.mxu0 %v69
  %1008 = vmatprep.subr.mxu0 0.0
  %1009 = vmatpush1.msra.mxu0 %v68
  %1010 = vmatprep.subr.mxu0 0.0
  %1011 = vmatpush1.msra.mxu0 %v67
  %1012 = vmatprep.subr.mxu0 0.0
  %1013 = vmatpush1.msra.mxu0 %v66
  %1014 = vmatprep.subr.mxu0 0.0
  %1015 = vmatpush1.msra.mxu0 %v65
  %1016 = vmatprep.subr.mxu0 0.0
  %1017 = vmatpush1.msra.mxu0 %v64
  %1018 = vmatprep.subr.mxu0 0.0
  %1019 = vmatpush2.msra.mxu0 0.0
  %1020 = vmatprep.subr.mxu0 0.0
  %1021 = vmatpush2.msra.mxu0 0.0
  %1022 = vmatprep.subr.mxu0 0.0
  %1023 = vmatpush2.msra.mxu0 0.0
  %1024 = vmatprep.subr.mxu0 0.0
  %1025 = vmatpush2.msra.mxu0 0.0
  %1026 = vmatprep.subr.mxu0 0.0
  %1027 = vmatpush2.msra.mxu0 0.0
  %1028 = vmatprep.subr.mxu0 0.0
  %1029 = vmatpush2.msra.mxu0 0.0
  %1030 = vmatprep.subr.mxu0 0.0
  %1031 = vmatpush2.msra.mxu0 0.0
  %1032 = vmatprep.subr.mxu0 0.0
  %1033 = vmatpush2.msra.mxu0 0.0
  %1034 = vmatprep.subr.mxu0 0.0
  %1035 = vmatpush2.msra.mxu0 0.0
  %1036 = vmatprep.subr.mxu0 0.0
  %1037 = vmatpush2.msra.mxu0 0.0
  %1038 = vmatprep.subr.mxu0 0.0
  %1039 = vmatpush2.msra.mxu0 0.0
  %1040 = vmatprep.subr.mxu0 0.0
  %1041 = vmatpush2.msra.mxu0 0.0
  %1042 = vmatprep.subr.mxu0 0.0
  %1043 = vmatpush2.msra.mxu0 0.0
  %1044 = vmatprep.subr.mxu0 0.0
  %1045 = vmatpush2.msra.mxu0 0.0
  %1046 = vmatprep.subr.mxu0 0.0
  %1047 = vmatpush2.msra.mxu0 0.0
  %1048 = vmatprep.subr.mxu0 0.0
  %1049 = vmatpush2.msra.mxu0 0.0
  %1050 = vmatprep.mubr.f32.mxu0 0.0
  %1051 = vmatmul.mubr.f32.gmra.mxu0 %v984
  %v1052 = vpop.f32.mrf.mxu0
  %v1053 = vadd.f32 %v93, %v1052
  %v1054 = vpop.f32.mrf.mxu0
  %1055 = vdwg.mxu0
  %v1056 = vxor.u32 %v1053, 2147483648
  %v1057 = vmul.f32 %v1056, 1.442695
  %v1058 = vpow.pop %v1057
  %v1059 = vadd.f32 %v1058, 1.0
  %v1060 = vrcp.pop %v1059
  %v1061 = vmul.f32 1.0, %v1060
  %v1062 = vtanh.pop %v1053
  %v1063 = vmul.f32 %v1061, %v559
  %1065 = vrot.lane.b32.xlu0 %v1062, 64
  %v1066 = vpop.permute.xlu0 %1065
  %v1068 = vmul.f32 %v1061, %v1066
  %1070 = vrot.lane.b32.xlu0 %v1068, 32
  %v1071 = vpop.permute.xlu0 %1070
  %v1073 = vadd.f32 %v1063, %v1071
  %v1074 = vtanh.pop %v1073
  %1076 = vrot.lane.b32.xlu0 %v1074, 64
  %v1077 = vpop.permute.xlu0 %1076
  %v1079 = vmul.f32 %v1061, %v1077
  %1081 = vrot.lane.b32.xlu0 %v1079, 32
  %v1082 = vpop.permute.xlu0 %1081
  %v1084 = vadd.s32 %v462, 4294967264
  %v1085 = vlaneseq
  %v1086 = vshrl.u32 %v1085, 7
  %v1087 = vsub.s32 %v1084, %v1086
  %v1088 = vrot.slane %v834, %v1087
  %v1089 = vlaneseq
  %v1090 = vshrl.u32 %v1089, 7
  %v1091 = vsub.s32 %v1084, %v1090
  %v1092 = vrot.slane %v839, %v1091
  %v1093 = vsel %vm772, %v1092, %v1088
  %1096 = vrot.lane.b32.xlu0 %v867, 40
  %v1097 = vpop.permute.xlu0 %1096
  %v1099 = vsel %vm113, %v1082, %v1093
  %v1100 = vsel %vm578, %v1099, %v1097
  %v1102 = vsel %vm580, %v1100, 0
  %1104 = vmatprep.subr.mxu0 0.0
  %1105 = vmatpush1.msra.mxu0 0.0
  %1106 = vmatprep.subr.mxu0 0.0
  %1107 = vmatpush1.msra.mxu0 0.0
  %1108 = vmatprep.subr.mxu0 0.0
  %1109 = vmatpush1.msra.mxu0 0.0
  %1110 = vmatprep.subr.mxu0 0.0
  %1111 = vmatpush1.msra.mxu0 0.0
  %1112 = vmatprep.subr.mxu0 0.0
  %1113 = vmatpush1.msra.mxu0 0.0
  %1114 = vmatprep.subr.mxu0 0.0
  %1115 = vmatpush1.msra.mxu0 0.0
  %1116 = vmatprep.subr.mxu0 0.0
  %1117 = vmatpush1.msra.mxu0 0.0
  %1118 = vmatprep.subr.mxu0 0.0
  %1119 = vmatpush1.msra.mxu0 0.0
  %1120 = vmatprep.subr.mxu0 0.0
  %1121 = vmatpush1.msra.mxu0 0.0
  %1122 = vmatprep.subr.mxu0 0.0
  %1123 = vmatpush1.msra.mxu0 0.0
  %1124 = vmatprep.subr.mxu0 %v63
  %1125 = vmatpush1.msra.mxu0 %v62
  %1126 = vmatprep.subr.mxu0 %v61
  %1127 = vmatpush1.msra.mxu0 %v60
  %1128 = vmatprep.subr.mxu0 %v59
  %1129 = vmatpush1.msra.mxu0 %v58
  %1130 = vmatprep.subr.mxu0 %v57
  %1131 = vmatpush1.msra.mxu0 %v56
  %1132 = vmatprep.subr.mxu0 %v55
  %1133 = vmatpush1.msra.mxu0 %v54
  %1134 = vmatprep.subr.mxu0 %v53
  %1135 = vmatpush1.msra.mxu0 %v52
  %1136 = vmatprep.subr.mxu0 0.0
  %1137 = vmatpush2.msra.mxu0 0.0
  %1138 = vmatprep.subr.mxu0 0.0
  %1139 = vmatpush2.msra.mxu0 0.0
  %1140 = vmatprep.subr.mxu0 0.0
  %1141 = vmatpush2.msra.mxu0 0.0
  %1142 = vmatprep.subr.mxu0 0.0
  %1143 = vmatpush2.msra.mxu0 0.0
  %1144 = vmatprep.subr.mxu0 0.0
  %1145 = vmatpush2.msra.mxu0 0.0
  %1146 = vmatprep.subr.mxu0 0.0
  %1147 = vmatpush2.msra.mxu0 0.0
  %1148 = vmatprep.subr.mxu0 0.0
  %1149 = vmatpush2.msra.mxu0 0.0
  %1150 = vmatprep.subr.mxu0 0.0
  %1151 = vmatpush2.msra.mxu0 0.0
  %1152 = vmatprep.subr.mxu0 0.0
  %1153 = vmatpush2.msra.mxu0 0.0
  %1154 = vmatprep.subr.mxu0 0.0
  %1155 = vmatpush2.msra.mxu0 0.0
  %1156 = vmatprep.subr.mxu0 0.0
  %1157 = vmatpush2.msra.mxu0 0.0
  %1158 = vmatprep.subr.mxu0 0.0
  %1159 = vmatpush2.msra.mxu0 0.0
  %1160 = vmatprep.subr.mxu0 0.0
  %1161 = vmatpush2.msra.mxu0 0.0
  %1162 = vmatprep.subr.mxu0 0.0
  %1163 = vmatpush2.msra.mxu0 0.0
  %1164 = vmatprep.subr.mxu0 0.0
  %1165 = vmatpush2.msra.mxu0 0.0
  %1166 = vmatprep.subr.mxu0 0.0
  %1167 = vmatpush2.msra.mxu0 0.0
  %1168 = vmatprep.mubr.f32.mxu0 0.0
  %1169 = vmatmul.mubr.f32.gmra.mxu0 %v1102
  %v1170 = vpop.f32.mrf.mxu0
  %v1171 = vadd.f32 0.0, %v1170
  %v1172 = vpop.f32.mrf.mxu0
  %v1173 = vadd.f32 0.0, %v1172
  %1174 = vdwg.mxu0
  %1176 = vrot.lane.b32.xlu0 %v1171, 96
  %v1177 = vpop.permute.xlu0 %1176
  %1179 = vrot.lane.b32.xlu0 %v1171, 64
  %v1180 = vpop.permute.xlu0 %1179
  %1182 = vrot.lane.b32.xlu0 %v1171, 32
  %v1183 = vpop.permute.xlu0 %1182
  %1186 = vrot.lane.b32.xlu0 %v1173, 96
  %v1187 = vpop.permute.xlu0 %1186
  %1189 = vrot.lane.b32.xlu0 %v1173, 64
  %v1190 = vpop.permute.xlu0 %1189
  %1192 = vrot.lane.b32.xlu0 %v1173, 32
  %v1193 = vpop.permute.xlu0 %1192
  %v1195 = vcombine.low %v1171, %v1180
  %v1197 = vunpack.c.l.s4 1983009808
  %v1198 = vunpack.c.0.s8 %v1197
  %v1199 = vlaneseq
  %v1200 = vshrl.u32 %v1199, 7
  %v1201 = vsub.s32 %v1198, %v1200
  %v1202 = vrot.slane %v1195, %v1201
  %v1203 = vcombine.low %v1177, %v1183
  %v1205 = vunpack.c.l.s4 1983009808
  %v1206 = vunpack.c.0.s8 %v1205
  %v1207 = vlaneseq
  %v1208 = vshrl.u32 %v1207, 7
  %v1209 = vsub.s32 %v1206, %v1208
  %v1210 = vrot.slane %v1203, %v1209
  %v1211 = vcombine.low %v1173, %v1190
  %v1213 = vunpack.c.l.s4 1983009808
  %v1214 = vunpack.c.0.s8 %v1213
  %v1215 = vlaneseq
  %v1216 = vshrl.u32 %v1215, 7
  %v1217 = vsub.s32 %v1214, %v1216
  %v1218 = vrot.slane %v1211, %v1217
  %v1219 = vcombine.low %v1187, %v1193
  %v1221 = vunpack.c.l.s4 1983009808
  %v1222 = vunpack.c.0.s8 %v1221
  %v1223 = vlaneseq
  %v1224 = vshrl.u32 %v1223, 7
  %v1225 = vsub.s32 %v1222, %v1224
  %v1226 = vrot.slane %v1219, %v1225
  %v1227 = vcombine.low %v1202, %v1210
  %v1229 = vunpack.c.l.s4 1934713408
  %v1230 = vunpack.c.0.s8 %v1229
  %v1231 = vlaneseq
  %v1232 = vshrl.u32 %v1231, 7
  %v1233 = vsub.s32 %v1230, %v1232
  %v1234 = vrot.slane %v1227, %v1233
  %v1235 = vcombine.low %v1218, %v1226
  %v1237 = vunpack.c.l.s4 1934713408
  %v1238 = vunpack.c.0.s8 %v1237
  %v1239 = vlaneseq
  %v1240 = vshrl.u32 %v1239, 7
  %v1241 = vsub.s32 %v1238, %v1240
  %v1242 = vrot.slane %v1235, %v1241
  %v1243 = vcombine.low %v1234, %v1242
  %v1244 = vcombine.high %v1234, %v1242
  %v1245 = vadd.f32 %v1243, %v187
  %v1246 = vadd.f32 %v1244, %v192
  %v1247 = vtanh.pop %v1245
  %v1248 = vtanh.pop %v1246
  %v1249 = vmul.f32 %v1247, %v107
  %v1250 = vmul.f32 %v1248, %v107
  %v1251 = vsel %vm113, %v1249, 0.0
  %1252 = vadd.xlane.f32.xlu0 %v1251
  %v1253 = vpop.xlane.xlu0 %1252
  %v1254 = vsel %vm113, %v1250, 0.0
  %1255 = vadd.xlane.f32.xlu0 %v1254
  %v1256 = vpop.xlane.xlu0 %1255
  %v1257 = vadd.f32 %v1253, %v744
  %v1258 = vadd.f32 %v1256, %v751
  %1261 = vset.pattern.permute.xlu0 0
  %1262 = vperm.xlu0 %1261, %v1257
  %v1263 = vpop.permute.xlu0 %1262
  %1264 = vset.pattern.permute.xlu0 0
  %1265 = vperm.xlu0 %1264, %v1258
  %v1266 = vpop.permute.xlu0 %1265
  %v1267 = vlaneseq
  %v1268 = vshrl.u32 %v1267, 7
  %v1269 = vsub.s32 %v462, %v1268
  %v1270 = vrot.slane %v1263, %v1269
  %v1271 = vlaneseq
  %v1272 = vshrl.u32 %v1271, 7
  %v1273 = vsub.s32 %v462, %v1272
  %v1274 = vrot.slane %v1266, %v1273
  %v1275 = vsel %vm772, %v1274, %v1270
  %v1277 = vsel %vm775, %v1275, -inf
  %1278 = vmax.xlane.f32.xlu0 %v1277
  %v1279 = vpop.xlane.xlu0 %1278
  %v1281 = vlaneseq
  %v1282 = vshrl.u32 %v1281, 7
  %v1283 = vsub.s32 0, %v1282
  %v1284 = vrot.slane %v1279, %v1283
  %v1285 = vlaneseq
  %v1286 = vshrl.u32 %v1285, 7
  %v1287 = vsub.s32 1, %v1286
  %v1288 = vrot.slane %v1279, %v1287
  %v1291 = vsub.f32 %v1257, %v1284
  %v1292 = vsub.f32 %v1258, %v1288
  %v1293 = vmul.f32 %v1291, 1.442695
  %v1294 = vpow.pop %v1293
  %v1295 = vmul.f32 %v1292, 1.442695
  %v1296 = vpow.pop %v1295
  %1299 = vset.pattern.permute.xlu0 0
  %1300 = vperm.xlu0 %1299, %v1294
  %v1301 = vpop.permute.xlu0 %1300
  %1302 = vset.pattern.permute.xlu0 0
  %1303 = vperm.xlu0 %1302, %v1296
  %v1304 = vpop.permute.xlu0 %1303
  %v1305 = vlaneseq
  %v1306 = vshrl.u32 %v1305, 7
  %v1307 = vsub.s32 %v462, %v1306
  %v1308 = vrot.slane %v1301, %v1307
  %v1309 = vlaneseq
  %v1310 = vshrl.u32 %v1309, 7
  %v1311 = vsub.s32 %v462, %v1310
  %v1312 = vrot.slane %v1304, %v1311
  %v1313 = vsel %vm772, %v1312, %v1308
  %v1315 = vsel %vm775, %v1313, 0.0
  %1316 = vadd.xlane.f32.xlu0 %v1315
  %v1317 = vpop.xlane.xlu0 %1316
  %v1318 = vrcp.pop %v1317
  %v1320 = vlaneseq
  %v1321 = vshrl.u32 %v1320, 7
  %v1322 = vsub.s32 0, %v1321
  %v1323 = vrot.slane %v1318, %v1322
  %v1324 = vlaneseq
  %v1325 = vshrl.u32 %v1324, 7
  %v1326 = vsub.s32 1, %v1325
  %v1327 = vrot.slane %v1318, %v1326
  %v1330 = vmul.f32 %v1294, %v1323
  %v1331 = vmul.f32 %v1296, %v1327
  %1333 = vset.pattern.permute.xlu0 0
  %1334 = vperm.xlu0 %1333, %v1330
  %v1335 = vpop.permute.xlu0 %1334
  %1338 = vset.pattern.permute.xlu0 0
  %1339 = vperm.xlu0 %1338, %v1331
  %v1340 = vpop.permute.xlu0 %1339
  %v1342 = vmul.f32 %v1335, %v49
  %v1343 = vmul.f32 %v1340, %v50
  %v1344 = vsel %vm113, %v1342, 0.0
  %v1345 = vrot.slane %v1344, 4
  %v1346 = vadd.f32 %v1344, %v1345
  %v1347 = vrot.slane %v1346, 2
  %v1348 = vadd.f32 %v1346, %v1347
  %v1349 = vrot.slane %v1348, 1
  %v1350 = vadd.f32 %v1348, %v1349
  %v1351 = vsel %vm113, %v1343, 0.0
  %v1352 = vrot.slane %v1351, 4
  %v1353 = vadd.f32 %v1351, %v1352
  %v1354 = vrot.slane %v1353, 2
  %v1355 = vadd.f32 %v1353, %v1354
  %v1356 = vrot.slane %v1355, 1
  %v1357 = vadd.f32 %v1355, %v1356
  %v1358 = vlaneseq
  %v1359 = vshrl.u32 %v1358, 7
  %v1360 = vsub.s32 %v462, %v1359
  %v1361 = vrot.slane %v1335, %v1360
  %v1362 = vlaneseq
  %v1363 = vshrl.u32 %v1362, 7
  %v1364 = vsub.s32 %v462, %v1363
  %v1365 = vrot.slane %v1340, %v1364
  %v1366 = vsel %vm772, %v1365, %v1361
  %v1368 = vadd.f32 %v867, %v1366
  %v1371 = vsel %vm772, %v1357, %v1350
  %1372 = vrot.lane.b32.xlu0 %v1371, 32
  %v1373 = vpop.permute.xlu0 %1372
  %1375 = vrot.lane.b32.xlu0 %v972, 96
  %v1376 = vpop.permute.xlu0 %1375
  %v1378 = vsel %vm113, %v1082, %v1373
  %v1379 = vsel %vm466, %v1378, %v1376
  %v1381 = vsel %vm468, %v1379, 0
  %1383 = vmatprep.subr.mxu0 0.0
  %1384 = vmatpush1.msra.mxu0 0.0
  %1385 = vmatprep.subr.mxu0 0.0
  %1386 = vmatpush1.msra.mxu0 0.0
  %1387 = vmatprep.subr.mxu0 0.0
  %1388 = vmatpush1.msra.mxu0 0.0
  %1389 = vmatprep.subr.mxu0 0.0
  %1390 = vmatpush1.msra.mxu0 0.0
  %1391 = vmatprep.subr.mxu0 0.0
  %1392 = vmatpush1.msra.mxu0 %v87
  %1393 = vmatprep.subr.mxu0 0.0
  %1394 = vmatpush1.msra.mxu0 %v86
  %1395 = vmatprep.subr.mxu0 0.0
  %1396 = vmatpush1.msra.mxu0 %v85
  %1397 = vmatprep.subr.mxu0 0.0
  %1398 = vmatpush1.msra.mxu0 %v84
  %1399 = vmatprep.subr.mxu0 0.0
  %1400 = vmatpush1.msra.mxu0 %v83
  %1401 = vmatprep.subr.mxu0 0.0
  %1402 = vmatpush1.msra.mxu0 %v82
  %1403 = vmatprep.subr.mxu0 0.0
  %1404 = vmatpush1.msra.mxu0 %v81
  %1405 = vmatprep.subr.mxu0 0.0
  %1406 = vmatpush1.msra.mxu0 %v80
  %1407 = vmatprep.subr.mxu0 0.0
  %1408 = vmatpush1.msra.mxu0 %v79
  %1409 = vmatprep.subr.mxu0 0.0
  %1410 = vmatpush1.msra.mxu0 %v78
  %1411 = vmatprep.subr.mxu0 0.0
  %1412 = vmatpush1.msra.mxu0 %v77
  %1413 = vmatprep.subr.mxu0 0.0
  %1414 = vmatpush1.msra.mxu0 %v76
  %1415 = vmatprep.subr.mxu0 0.0
  %1416 = vmatpush2.msra.mxu0 0.0
  %1417 = vmatprep.subr.mxu0 0.0
  %1418 = vmatpush2.msra.mxu0 0.0
  %1419 = vmatprep.subr.mxu0 0.0
  %1420 = vmatpush2.msra.mxu0 0.0
  %1421 = vmatprep.subr.mxu0 0.0
  %1422 = vmatpush2.msra.mxu0 0.0
  %1423 = vmatprep.subr.mxu0 0.0
  %1424 = vmatpush2.msra.mxu0 0.0
  %1425 = vmatprep.subr.mxu0 0.0
  %1426 = vmatpush2.msra.mxu0 0.0
  %1427 = vmatprep.subr.mxu0 0.0
  %1428 = vmatpush2.msra.mxu0 0.0
  %1429 = vmatprep.subr.mxu0 0.0
  %1430 = vmatpush2.msra.mxu0 0.0
  %1431 = vmatprep.subr.mxu0 0.0
  %1432 = vmatpush2.msra.mxu0 0.0
  %1433 = vmatprep.subr.mxu0 0.0
  %1434 = vmatpush2.msra.mxu0 0.0
  %1435 = vmatprep.subr.mxu0 0.0
  %1436 = vmatpush2.msra.mxu0 0.0
  %1437 = vmatprep.subr.mxu0 0.0
  %1438 = vmatpush2.msra.mxu0 0.0
  %1439 = vmatprep.subr.mxu0 0.0
  %1440 = vmatpush2.msra.mxu0 0.0
  %1441 = vmatprep.subr.mxu0 0.0
  %1442 = vmatpush2.msra.mxu0 0.0
  %1443 = vmatprep.subr.mxu0 0.0
  %1444 = vmatpush2.msra.mxu0 0.0
  %1445 = vmatprep.subr.mxu0 0.0
  %1446 = vmatpush2.msra.mxu0 0.0
  %1447 = vmatprep.mubr.f32.mxu0 0.0
  %1448 = vmatmul.mubr.f32.gmra.mxu0 %v1381
  %v1449 = vpop.f32.mrf.mxu0
  %v1450 = vadd.f32 %v100, %v1449
  %v1451 = vpop.f32.mrf.mxu0
  %1452 = vdwg.mxu0
  %v1453 = vxor.u32 %v1450, 2147483648
  %v1454 = vmul.f32 %v1453, 1.442695
  %v1455 = vpow.pop %v1454
  %v1456 = vadd.f32 %v1455, 1.0
  %v1457 = vrcp.pop %v1456
  %v1458 = vmul.f32 1.0, %v1457
  %v1459 = vtanh.pop %v1450
  %v1460 = vmul.f32 %v1458, %v966
  %1462 = vrot.lane.b32.xlu0 %v1459, 64
  %v1463 = vpop.permute.xlu0 %1462
  %v1465 = vmul.f32 %v1458, %v1463
  %1467 = vrot.lane.b32.xlu0 %v1465, 32
  %v1468 = vpop.permute.xlu0 %1467
  %v1470 = vadd.f32 %v1460, %v1468
  %v1471 = vtanh.pop %v1470
  %1473 = vrot.lane.b32.xlu0 %v1471, 64
  %v1474 = vpop.permute.xlu0 %1473
  %v1476 = vmul.f32 %v1458, %v1474
  %1478 = vrot.lane.b32.xlu0 %v1476, 32
  %v1479 = vpop.permute.xlu0 %1478
  %v1481 = vsel %vm113, %v1479, %v1373
  %1482 = vrot.lane.b32.xlu0 %v1079, 96
  %v1483 = vpop.permute.xlu0 %1482
  %v1485 = vsel %vm113, %v433, %v1373
  %v1486 = vsel %vm466, %v1485, %v1483
  %v1488 = vsel %vm468, %v1486, 0
  %1490 = vmatprep.subr.mxu0 0.0
  %1491 = vmatpush1.msra.mxu0 0.0
  %1492 = vmatprep.subr.mxu0 0.0
  %1493 = vmatpush1.msra.mxu0 0.0
  %1494 = vmatprep.subr.mxu0 0.0
  %1495 = vmatpush1.msra.mxu0 0.0
  %1496 = vmatprep.subr.mxu0 0.0
  %1497 = vmatpush1.msra.mxu0 0.0
  %1498 = vmatprep.subr.mxu0 0.0
  %1499 = vmatpush1.msra.mxu0 %v75
  %1500 = vmatprep.subr.mxu0 0.0
  %1501 = vmatpush1.msra.mxu0 %v74
  %1502 = vmatprep.subr.mxu0 0.0
  %1503 = vmatpush1.msra.mxu0 %v73
  %1504 = vmatprep.subr.mxu0 0.0
  %1505 = vmatpush1.msra.mxu0 %v72
  %1506 = vmatprep.subr.mxu0 0.0
  %1507 = vmatpush1.msra.mxu0 %v71
  %1508 = vmatprep.subr.mxu0 0.0
  %1509 = vmatpush1.msra.mxu0 %v70
  %1510 = vmatprep.subr.mxu0 0.0
  %1511 = vmatpush1.msra.mxu0 %v69
  %1512 = vmatprep.subr.mxu0 0.0
  %1513 = vmatpush1.msra.mxu0 %v68
  %1514 = vmatprep.subr.mxu0 0.0
  %1515 = vmatpush1.msra.mxu0 %v67
  %1516 = vmatprep.subr.mxu0 0.0
  %1517 = vmatpush1.msra.mxu0 %v66
  %1518 = vmatprep.subr.mxu0 0.0
  %1519 = vmatpush1.msra.mxu0 %v65
  %1520 = vmatprep.subr.mxu0 0.0
  %1521 = vmatpush1.msra.mxu0 %v64
  %1522 = vmatprep.subr.mxu0 0.0
  %1523 = vmatpush2.msra.mxu0 0.0
  %1524 = vmatprep.subr.mxu0 0.0
  %1525 = vmatpush2.msra.mxu0 0.0
  %1526 = vmatprep.subr.mxu0 0.0
  %1527 = vmatpush2.msra.mxu0 0.0
  %1528 = vmatprep.subr.mxu0 0.0
  %1529 = vmatpush2.msra.mxu0 0.0
  %1530 = vmatprep.subr.mxu0 0.0
  %1531 = vmatpush2.msra.mxu0 0.0
  %1532 = vmatprep.subr.mxu0 0.0
  %1533 = vmatpush2.msra.mxu0 0.0
  %1534 = vmatprep.subr.mxu0 0.0
  %1535 = vmatpush2.msra.mxu0 0.0
  %1536 = vmatprep.subr.mxu0 0.0
  %1537 = vmatpush2.msra.mxu0 0.0
  %1538 = vmatprep.subr.mxu0 0.0
  %1539 = vmatpush2.msra.mxu0 0.0
  %1540 = vmatprep.subr.mxu0 0.0
  %1541 = vmatpush2.msra.mxu0 0.0
  %1542 = vmatprep.subr.mxu0 0.0
  %1543 = vmatpush2.msra.mxu0 0.0
  %1544 = vmatprep.subr.mxu0 0.0
  %1545 = vmatpush2.msra.mxu0 0.0
  %1546 = vmatprep.subr.mxu0 0.0
  %1547 = vmatpush2.msra.mxu0 0.0
  %1548 = vmatprep.subr.mxu0 0.0
  %1549 = vmatpush2.msra.mxu0 0.0
  %1550 = vmatprep.subr.mxu0 0.0
  %1551 = vmatpush2.msra.mxu0 0.0
  %1552 = vmatprep.subr.mxu0 0.0
  %1553 = vmatpush2.msra.mxu0 0.0
  %1554 = vmatprep.mubr.f32.mxu0 0.0
  %1555 = vmatmul.mubr.f32.gmra.mxu0 %v1488
  %v1556 = vpop.f32.mrf.mxu0
  %v1557 = vadd.f32 %v93, %v1556
  %v1558 = vpop.f32.mrf.mxu0
  %1559 = vdwg.mxu0
  %v1560 = vxor.u32 %v1557, 2147483648
  %v1561 = vmul.f32 %v1560, 1.442695
  %v1562 = vpow.pop %v1561
  %v1563 = vadd.f32 %v1562, 1.0
  %v1564 = vrcp.pop %v1563
  %v1565 = vmul.f32 1.0, %v1564
  %v1566 = vtanh.pop %v1557
  %v1567 = vmul.f32 %v1565, %v1073
  %1569 = vrot.lane.b32.xlu0 %v1566, 64
  %v1570 = vpop.permute.xlu0 %1569
  %v1572 = vmul.f32 %v1565, %v1570
  %1574 = vrot.lane.b32.xlu0 %v1572, 32
  %v1575 = vpop.permute.xlu0 %1574
  %v1577 = vadd.f32 %v1567, %v1575
  %v1578 = vtanh.pop %v1577
  %1580 = vrot.lane.b32.xlu0 %v1578, 64
  %v1581 = vpop.permute.xlu0 %1580
  %v1583 = vmul.f32 %v1565, %v1581
  %1585 = vrot.lane.b32.xlu0 %v1583, 32
  %v1586 = vpop.permute.xlu0 %1585
  %v1588 = vlaneseq
  %v1589 = vshrl.u32 %v1588, 7
  %v1590 = vsub.s32 %v1084, %v1589
  %v1591 = vrot.slane %v1335, %v1590
  %v1592 = vlaneseq
  %v1593 = vshrl.u32 %v1592, 7
  %v1594 = vsub.s32 %v1084, %v1593
  %v1595 = vrot.slane %v1340, %v1594
  %v1596 = vsel %vm772, %v1595, %v1591
  %1599 = vrot.lane.b32.xlu0 %v1368, 40
  %v1600 = vpop.permute.xlu0 %1599
  %v1602 = vsel %vm113, %v1586, %v1596
  %v1603 = vsel %vm578, %v1602, %v1600
  %v1605 = vsel %vm580, %v1603, 0
  %1607 = vmatprep.subr.mxu0 0.0
  %1608 = vmatpush1.msra.mxu0 0.0
  %1609 = vmatprep.subr.mxu0 0.0
  %1610 = vmatpush1.msra.mxu0 0.0
  %1611 = vmatprep.subr.mxu0 0.0
  %1612 = vmatpush1.msra.mxu0 0.0
  %1613 = vmatprep.subr.mxu0 0.0
  %1614 = vmatpush1.msra.mxu0 0.0
  %1615 = vmatprep.subr.mxu0 0.0
  %1616 = vmatpush1.msra.mxu0 0.0
  %1617 = vmatprep.subr.mxu0 0.0
  %1618 = vmatpush1.msra.mxu0 0.0
  %1619 = vmatprep.subr.mxu0 0.0
  %1620 = vmatpush1.msra.mxu0 0.0
  %1621 = vmatprep.subr.mxu0 0.0
  %1622 = vmatpush1.msra.mxu0 0.0
  %1623 = vmatprep.subr.mxu0 0.0
  %1624 = vmatpush1.msra.mxu0 0.0
  %1625 = vmatprep.subr.mxu0 0.0
  %1626 = vmatpush1.msra.mxu0 0.0
  %1627 = vmatprep.subr.mxu0 %v63
  %1628 = vmatpush1.msra.mxu0 %v62
  %1629 = vmatprep.subr.mxu0 %v61
  %1630 = vmatpush1.msra.mxu0 %v60
  %1631 = vmatprep.subr.mxu0 %v59
  %1632 = vmatpush1.msra.mxu0 %v58
  %1633 = vmatprep.subr.mxu0 %v57
  %1634 = vmatpush1.msra.mxu0 %v56
  %1635 = vmatprep.subr.mxu0 %v55
  %1636 = vmatpush1.msra.mxu0 %v54
  %1637 = vmatprep.subr.mxu0 %v53
  %1638 = vmatpush1.msra.mxu0 %v52
  %1639 = vmatprep.subr.mxu0 0.0
  %1640 = vmatpush2.msra.mxu0 0.0
  %1641 = vmatprep.subr.mxu0 0.0
  %1642 = vmatpush2.msra.mxu0 0.0
  %1643 = vmatprep.subr.mxu0 0.0
  %1644 = vmatpush2.msra.mxu0 0.0
  %1645 = vmatprep.subr.mxu0 0.0
  %1646 = vmatpush2.msra.mxu0 0.0
  %1647 = vmatprep.subr.mxu0 0.0
  %1648 = vmatpush2.msra.mxu0 0.0
  %1649 = vmatprep.subr.mxu0 0.0
  %1650 = vmatpush2.msra.mxu0 0.0
  %1651 = vmatprep.subr.mxu0 0.0
  %1652 = vmatpush2.msra.mxu0 0.0
  %1653 = vmatprep.subr.mxu0 0.0
  %1654 = vmatpush2.msra.mxu0 0.0
  %1655 = vmatprep.subr.mxu0 0.0
  %1656 = vmatpush2.msra.mxu0 0.0
  %1657 = vmatprep.subr.mxu0 0.0
  %1658 = vmatpush2.msra.mxu0 0.0
  %1659 = vmatprep.subr.mxu0 0.0
  %1660 = vmatpush2.msra.mxu0 0.0
  %1661 = vmatprep.subr.mxu0 0.0
  %1662 = vmatpush2.msra.mxu0 0.0
  %1663 = vmatprep.subr.mxu0 0.0
  %1664 = vmatpush2.msra.mxu0 0.0
  %1665 = vmatprep.subr.mxu0 0.0
  %1666 = vmatpush2.msra.mxu0 0.0
  %1667 = vmatprep.subr.mxu0 0.0
  %1668 = vmatpush2.msra.mxu0 0.0
  %1669 = vmatprep.subr.mxu0 0.0
  %1670 = vmatpush2.msra.mxu0 0.0
  %1671 = vmatprep.mubr.f32.mxu0 0.0
  %1672 = vmatmul.mubr.f32.gmra.mxu0 %v1605
  %v1673 = vpop.f32.mrf.mxu0
  %v1674 = vadd.f32 0.0, %v1673
  %v1675 = vpop.f32.mrf.mxu0
  %v1676 = vadd.f32 0.0, %v1675
  %1677 = vdwg.mxu0
  %1679 = vrot.lane.b32.xlu0 %v1674, 96
  %v1680 = vpop.permute.xlu0 %1679
  %1682 = vrot.lane.b32.xlu0 %v1674, 64
  %v1683 = vpop.permute.xlu0 %1682
  %1685 = vrot.lane.b32.xlu0 %v1674, 32
  %v1686 = vpop.permute.xlu0 %1685
  %1689 = vrot.lane.b32.xlu0 %v1676, 96
  %v1690 = vpop.permute.xlu0 %1689
  %1692 = vrot.lane.b32.xlu0 %v1676, 64
  %v1693 = vpop.permute.xlu0 %1692
  %1695 = vrot.lane.b32.xlu0 %v1676, 32
  %v1696 = vpop.permute.xlu0 %1695
  %v1698 = vcombine.low %v1674, %v1683
  %v1700 = vunpack.c.l.s4 1983009808
  %v1701 = vunpack.c.0.s8 %v1700
  %v1702 = vlaneseq
  %v1703 = vshrl.u32 %v1702, 7
  %v1704 = vsub.s32 %v1701, %v1703
  %v1705 = vrot.slane %v1698, %v1704
  %v1706 = vcombine.low %v1680, %v1686
  %v1708 = vunpack.c.l.s4 1983009808
  %v1709 = vunpack.c.0.s8 %v1708
  %v1710 = vlaneseq
  %v1711 = vshrl.u32 %v1710, 7
  %v1712 = vsub.s32 %v1709, %v1711
  %v1713 = vrot.slane %v1706, %v1712
  %v1714 = vcombine.low %v1676, %v1693
  %v1716 = vunpack.c.l.s4 1983009808
  %v1717 = vunpack.c.0.s8 %v1716
  %v1718 = vlaneseq
  %v1719 = vshrl.u32 %v1718, 7
  %v1720 = vsub.s32 %v1717, %v1719
  %v1721 = vrot.slane %v1714, %v1720
  %v1722 = vcombine.low %v1690, %v1696
  %v1724 = vunpack.c.l.s4 1983009808
  %v1725 = vunpack.c.0.s8 %v1724
  %v1726 = vlaneseq
  %v1727 = vshrl.u32 %v1726, 7
  %v1728 = vsub.s32 %v1725, %v1727
  %v1729 = vrot.slane %v1722, %v1728
  %v1730 = vcombine.low %v1705, %v1713
  %v1732 = vunpack.c.l.s4 1934713408
  %v1733 = vunpack.c.0.s8 %v1732
  %v1734 = vlaneseq
  %v1735 = vshrl.u32 %v1734, 7
  %v1736 = vsub.s32 %v1733, %v1735
  %v1737 = vrot.slane %v1730, %v1736
  %v1738 = vcombine.low %v1721, %v1729
  %v1740 = vunpack.c.l.s4 1934713408
  %v1741 = vunpack.c.0.s8 %v1740
  %v1742 = vlaneseq
  %v1743 = vshrl.u32 %v1742, 7
  %v1744 = vsub.s32 %v1741, %v1743
  %v1745 = vrot.slane %v1738, %v1744
  %v1746 = vcombine.low %v1737, %v1745
  %v1747 = vcombine.high %v1737, %v1745
  %v1748 = vadd.f32 %v1746, %v187
  %v1749 = vadd.f32 %v1747, %v192
  %v1750 = vtanh.pop %v1748
  %v1751 = vtanh.pop %v1749
  %v1752 = vmul.f32 %v1750, %v107
  %v1753 = vmul.f32 %v1751, %v107
  %v1754 = vsel %vm113, %v1752, 0.0
  %1755 = vadd.xlane.f32.xlu0 %v1754
  %v1756 = vpop.xlane.xlu0 %1755
  %v1757 = vsel %vm113, %v1753, 0.0
  %1758 = vadd.xlane.f32.xlu0 %v1757
  %v1759 = vpop.xlane.xlu0 %1758
  %v1760 = vadd.f32 %v1756, %v744
  %v1761 = vadd.f32 %v1759, %v751
  %1764 = vset.pattern.permute.xlu0 0
  %1765 = vperm.xlu0 %1764, %v1760
  %v1766 = vpop.permute.xlu0 %1765
  %1767 = vset.pattern.permute.xlu0 0
  %1768 = vperm.xlu0 %1767, %v1761
  %v1769 = vpop.permute.xlu0 %1768
  %v1770 = vlaneseq
  %v1771 = vshrl.u32 %v1770, 7
  %v1772 = vsub.s32 %v462, %v1771
  %v1773 = vrot.slane %v1766, %v1772
  %v1774 = vlaneseq
  %v1775 = vshrl.u32 %v1774, 7
  %v1776 = vsub.s32 %v462, %v1775
  %v1777 = vrot.slane %v1769, %v1776
  %v1778 = vsel %vm772, %v1777, %v1773
  %v1780 = vsel %vm775, %v1778, -inf
  %1781 = vmax.xlane.f32.xlu0 %v1780
  %v1782 = vpop.xlane.xlu0 %1781
  %v1784 = vlaneseq
  %v1785 = vshrl.u32 %v1784, 7
  %v1786 = vsub.s32 0, %v1785
  %v1787 = vrot.slane %v1782, %v1786
  %v1788 = vlaneseq
  %v1789 = vshrl.u32 %v1788, 7
  %v1790 = vsub.s32 1, %v1789
  %v1791 = vrot.slane %v1782, %v1790
  %v1794 = vsub.f32 %v1760, %v1787
  %v1795 = vsub.f32 %v1761, %v1791
  %v1796 = vmul.f32 %v1794, 1.442695
  %v1797 = vpow.pop %v1796
  %v1798 = vmul.f32 %v1795, 1.442695
  %v1799 = vpow.pop %v1798
  %1802 = vset.pattern.permute.xlu0 0
  %1803 = vperm.xlu0 %1802, %v1797
  %v1804 = vpop.permute.xlu0 %1803
  %1805 = vset.pattern.permute.xlu0 0
  %1806 = vperm.xlu0 %1805, %v1799
  %v1807 = vpop.permute.xlu0 %1806
  %v1808 = vlaneseq
  %v1809 = vshrl.u32 %v1808, 7
  %v1810 = vsub.s32 %v462, %v1809
  %v1811 = vrot.slane %v1804, %v1810
  %v1812 = vlaneseq
  %v1813 = vshrl.u32 %v1812, 7
  %v1814 = vsub.s32 %v462, %v1813
  %v1815 = vrot.slane %v1807, %v1814
  %v1816 = vsel %vm772, %v1815, %v1811
  %v1818 = vsel %vm775, %v1816, 0.0
  %1819 = vadd.xlane.f32.xlu0 %v1818
  %v1820 = vpop.xlane.xlu0 %1819
  %v1821 = vrcp.pop %v1820
  %v1823 = vlaneseq
  %v1824 = vshrl.u32 %v1823, 7
  %v1825 = vsub.s32 0, %v1824
  %v1826 = vrot.slane %v1821, %v1825
  %v1827 = vlaneseq
  %v1828 = vshrl.u32 %v1827, 7
  %v1829 = vsub.s32 1, %v1828
  %v1830 = vrot.slane %v1821, %v1829
  %v1833 = vmul.f32 %v1797, %v1826
  %v1834 = vmul.f32 %v1799, %v1830
  %1836 = vset.pattern.permute.xlu0 0
  %1837 = vperm.xlu0 %1836, %v1833
  %v1838 = vpop.permute.xlu0 %1837
  %1841 = vset.pattern.permute.xlu0 0
  %1842 = vperm.xlu0 %1841, %v1834
  %v1843 = vpop.permute.xlu0 %1842
  %v1845 = vmul.f32 %v1838, %v49
  %v1846 = vmul.f32 %v1843, %v50
  %v1847 = vsel %vm113, %v1845, 0.0
  %v1848 = vrot.slane %v1847, 4
  %v1849 = vadd.f32 %v1847, %v1848
  %v1850 = vrot.slane %v1849, 2
  %v1851 = vadd.f32 %v1849, %v1850
  %v1852 = vrot.slane %v1851, 1
  %v1853 = vadd.f32 %v1851, %v1852
  %v1854 = vsel %vm113, %v1846, 0.0
  %v1855 = vrot.slane %v1854, 4
  %v1856 = vadd.f32 %v1854, %v1855
  %v1857 = vrot.slane %v1856, 2
  %v1858 = vadd.f32 %v1856, %v1857
  %v1859 = vrot.slane %v1858, 1
  %v1860 = vadd.f32 %v1858, %v1859
  %v1861 = vlaneseq
  %v1862 = vshrl.u32 %v1861, 7
  %v1863 = vsub.s32 %v462, %v1862
  %v1864 = vrot.slane %v1838, %v1863
  %v1865 = vlaneseq
  %v1866 = vshrl.u32 %v1865, 7
  %v1867 = vsub.s32 %v462, %v1866
  %v1868 = vrot.slane %v1843, %v1867
  %v1869 = vsel %vm772, %v1868, %v1864
  %v1871 = vadd.f32 %v1368, %v1869
  %v1874 = vsel %vm772, %v1860, %v1853
  %1875 = vrot.lane.b32.xlu0 %v1874, 32
  %v1876 = vpop.permute.xlu0 %1875
  %1878 = vrot.lane.b32.xlu0 %v1476, 96
  %v1879 = vpop.permute.xlu0 %1878
  %v1881 = vsel %vm113, %v1586, %v1876
  %v1882 = vsel %vm466, %v1881, %v1879
  %v1884 = vsel %vm468, %v1882, 0
  %1886 = vmatprep.subr.mxu0 0.0
  %1887 = vmatpush1.msra.mxu0 0.0
  %1888 = vmatprep.subr.mxu0 0.0
  %1889 = vmatpush1.msra.mxu0 0.0
  %1890 = vmatprep.subr.mxu0 0.0
  %1891 = vmatpush1.msra.mxu0 0.0
  %1892 = vmatprep.subr.mxu0 0.0
  %1893 = vmatpush1.msra.mxu0 0.0
  %1894 = vmatprep.subr.mxu0 0.0
  %1895 = vmatpush1.msra.mxu0 %v87
  %1896 = vmatprep.subr.mxu0 0.0
  %1897 = vmatpush1.msra.mxu0 %v86
  %1898 = vmatprep.subr.mxu0 0.0
  %1899 = vmatpush1.msra.mxu0 %v85
  %1900 = vmatprep.subr.mxu0 0.0
  %1901 = vmatpush1.msra.mxu0 %v84
  %1902 = vmatprep.subr.mxu0 0.0
  %1903 = vmatpush1.msra.mxu0 %v83
  %1904 = vmatprep.subr.mxu0 0.0
  %1905 = vmatpush1.msra.mxu0 %v82
  %1906 = vmatprep.subr.mxu0 0.0
  %1907 = vmatpush1.msra.mxu0 %v81
  %1908 = vmatprep.subr.mxu0 0.0
  %1909 = vmatpush1.msra.mxu0 %v80
  %1910 = vmatprep.subr.mxu0 0.0
  %1911 = vmatpush1.msra.mxu0 %v79
  %1912 = vmatprep.subr.mxu0 0.0
  %1913 = vmatpush1.msra.mxu0 %v78
  %1914 = vmatprep.subr.mxu0 0.0
  %1915 = vmatpush1.msra.mxu0 %v77
  %1916 = vmatprep.subr.mxu0 0.0
  %1917 = vmatpush1.msra.mxu0 %v76
  %1918 = vmatprep.subr.mxu0 0.0
  %1919 = vmatpush2.msra.mxu0 0.0
  %1920 = vmatprep.subr.mxu0 0.0
  %1921 = vmatpush2.msra.mxu0 0.0
  %1922 = vmatprep.subr.mxu0 0.0
  %1923 = vmatpush2.msra.mxu0 0.0
  %1924 = vmatprep.subr.mxu0 0.0
  %1925 = vmatpush2.msra.mxu0 0.0
  %1926 = vmatprep.subr.mxu0 0.0
  %1927 = vmatpush2.msra.mxu0 0.0
  %1928 = vmatprep.subr.mxu0 0.0
  %1929 = vmatpush2.msra.mxu0 0.0
  %1930 = vmatprep.subr.mxu0 0.0
  %1931 = vmatpush2.msra.mxu0 0.0
  %1932 = vmatprep.subr.mxu0 0.0
  %1933 = vmatpush2.msra.mxu0 0.0
  %1934 = vmatprep.subr.mxu0 0.0
  %1935 = vmatpush2.msra.mxu0 0.0
  %1936 = vmatprep.subr.mxu0 0.0
  %1937 = vmatpush2.msra.mxu0 0.0
  %1938 = vmatprep.subr.mxu0 0.0
  %1939 = vmatpush2.msra.mxu0 0.0
  %1940 = vmatprep.subr.mxu0 0.0
  %1941 = vmatpush2.msra.mxu0 0.0
  %1942 = vmatprep.subr.mxu0 0.0
  %1943 = vmatpush2.msra.mxu0 0.0
  %1944 = vmatprep.subr.mxu0 0.0
  %1945 = vmatpush2.msra.mxu0 0.0
  %1946 = vmatprep.subr.mxu0 0.0
  %1947 = vmatpush2.msra.mxu0 0.0
  %1948 = vmatprep.subr.mxu0 0.0
  %1949 = vmatpush2.msra.mxu0 0.0
  %1950 = vmatprep.mubr.f32.mxu0 0.0
  %1951 = vmatmul.mubr.f32.gmra.mxu0 %v1884
  %v1952 = vpop.f32.mrf.mxu0
  %v1953 = vadd.f32 %v100, %v1952
  %v1954 = vpop.f32.mrf.mxu0
  %1955 = vdwg.mxu0
  %v1956 = vxor.u32 %v1953, 2147483648
  %v1957 = vmul.f32 %v1956, 1.442695
  %v1958 = vpow.pop %v1957
  %v1959 = vadd.f32 %v1958, 1.0
  %v1960 = vrcp.pop %v1959
  %v1961 = vmul.f32 1.0, %v1960
  %v1962 = vtanh.pop %v1953
  %v1963 = vmul.f32 %v1961, %v1470
  %1965 = vrot.lane.b32.xlu0 %v1962, 64
  %v1966 = vpop.permute.xlu0 %1965
  %v1968 = vmul.f32 %v1961, %v1966
  %1970 = vrot.lane.b32.xlu0 %v1968, 32
  %v1971 = vpop.permute.xlu0 %1970
  %v1973 = vadd.f32 %v1963, %v1971
  %v1974 = vtanh.pop %v1973
  %1976 = vrot.lane.b32.xlu0 %v1974, 64
  %v1977 = vpop.permute.xlu0 %1976
  %v1979 = vmul.f32 %v1961, %v1977
  %1981 = vrot.lane.b32.xlu0 %v1979, 32
  %v1982 = vpop.permute.xlu0 %1981
  %v1984 = vsel %vm113, %v1982, %v1876
  %1985 = vrot.lane.b32.xlu0 %v1583, 96
  %v1986 = vpop.permute.xlu0 %1985
  %v1988 = vsel %vm113, %v435, %v1876
  %v1989 = vsel %vm466, %v1988, %v1986
  %v1991 = vsel %vm468, %v1989, 0
  %1993 = vmatprep.subr.mxu0 0.0
  %1994 = vmatpush1.msra.mxu0 0.0
  %1995 = vmatprep.subr.mxu0 0.0
  %1996 = vmatpush1.msra.mxu0 0.0
  %1997 = vmatprep.subr.mxu0 0.0
  %1998 = vmatpush1.msra.mxu0 0.0
  %1999 = vmatprep.subr.mxu0 0.0
  %2000 = vmatpush1.msra.mxu0 0.0
  %2001 = vmatprep.subr.mxu0 0.0
  %2002 = vmatpush1.msra.mxu0 %v75
  %2003 = vmatprep.subr.mxu0 0.0
  %2004 = vmatpush1.msra.mxu0 %v74
  %2005 = vmatprep.subr.mxu0 0.0
  %2006 = vmatpush1.msra.mxu0 %v73
  %2007 = vmatprep.subr.mxu0 0.0
  %2008 = vmatpush1.msra.mxu0 %v72
  %2009 = vmatprep.subr.mxu0 0.0
  %2010 = vmatpush1.msra.mxu0 %v71
  %2011 = vmatprep.subr.mxu0 0.0
  %2012 = vmatpush1.msra.mxu0 %v70
  %2013 = vmatprep.subr.mxu0 0.0
  %2014 = vmatpush1.msra.mxu0 %v69
  %2015 = vmatprep.subr.mxu0 0.0
  %2016 = vmatpush1.msra.mxu0 %v68
  %2017 = vmatprep.subr.mxu0 0.0
  %2018 = vmatpush1.msra.mxu0 %v67
  %2019 = vmatprep.subr.mxu0 0.0
  %2020 = vmatpush1.msra.mxu0 %v66
  %2021 = vmatprep.subr.mxu0 0.0
  %2022 = vmatpush1.msra.mxu0 %v65
  %2023 = vmatprep.subr.mxu0 0.0
  %2024 = vmatpush1.msra.mxu0 %v64
  %2025 = vmatprep.subr.mxu0 0.0
  %2026 = vmatpush2.msra.mxu0 0.0
  %2027 = vmatprep.subr.mxu0 0.0
  %2028 = vmatpush2.msra.mxu0 0.0
  %2029 = vmatprep.subr.mxu0 0.0
  %2030 = vmatpush2.msra.mxu0 0.0
  %2031 = vmatprep.subr.mxu0 0.0
  %2032 = vmatpush2.msra.mxu0 0.0
  %2033 = vmatprep.subr.mxu0 0.0
  %2034 = vmatpush2.msra.mxu0 0.0
  %2035 = vmatprep.subr.mxu0 0.0
  %2036 = vmatpush2.msra.mxu0 0.0
  %2037 = vmatprep.subr.mxu0 0.0
  %2038 = vmatpush2.msra.mxu0 0.0
  %2039 = vmatprep.subr.mxu0 0.0
  %2040 = vmatpush2.msra.mxu0 0.0
  %2041 = vmatprep.subr.mxu0 0.0
  %2042 = vmatpush2.msra.mxu0 0.0
  %2043 = vmatprep.subr.mxu0 0.0
  %2044 = vmatpush2.msra.mxu0 0.0
  %2045 = vmatprep.subr.mxu0 0.0
  %2046 = vmatpush2.msra.mxu0 0.0
  %2047 = vmatprep.subr.mxu0 0.0
  %2048 = vmatpush2.msra.mxu0 0.0
  %2049 = vmatprep.subr.mxu0 0.0
  %2050 = vmatpush2.msra.mxu0 0.0
  %2051 = vmatprep.subr.mxu0 0.0
  %2052 = vmatpush2.msra.mxu0 0.0
  %2053 = vmatprep.subr.mxu0 0.0
  %2054 = vmatpush2.msra.mxu0 0.0
  %2055 = vmatprep.subr.mxu0 0.0
  %2056 = vmatpush2.msra.mxu0 0.0
  %2057 = vmatprep.mubr.f32.mxu0 0.0
  %2058 = vmatmul.mubr.f32.gmra.mxu0 %v1991
  %v2059 = vpop.f32.mrf.mxu0
  %v2060 = vadd.f32 %v93, %v2059
  %v2061 = vpop.f32.mrf.mxu0
  %2062 = vdwg.mxu0
  %v2063 = vxor.u32 %v2060, 2147483648
  %v2064 = vmul.f32 %v2063, 1.442695
  %v2065 = vpow.pop %v2064
  %v2066 = vadd.f32 %v2065, 1.0
  %v2067 = vrcp.pop %v2066
  %v2068 = vmul.f32 1.0, %v2067
  %v2069 = vtanh.pop %v2060
  %v2070 = vmul.f32 %v2068, %v1577
  %2072 = vrot.lane.b32.xlu0 %v2069, 64
  %v2073 = vpop.permute.xlu0 %2072
  %v2075 = vmul.f32 %v2068, %v2073
  %2077 = vrot.lane.b32.xlu0 %v2075, 32
  %v2078 = vpop.permute.xlu0 %2077
  %v2080 = vadd.f32 %v2070, %v2078
  %v2081 = vtanh.pop %v2080
  %2083 = vrot.lane.b32.xlu0 %v2081, 64
  %v2084 = vpop.permute.xlu0 %2083
  %v2086 = vmul.f32 %v2068, %v2084
  %2088 = vrot.lane.b32.xlu0 %v2086, 32
  %v2089 = vpop.permute.xlu0 %2088
  %v2091 = vlaneseq
  %v2092 = vshrl.u32 %v2091, 7
  %v2093 = vsub.s32 %v1084, %v2092
  %v2094 = vrot.slane %v1838, %v2093
  %v2095 = vlaneseq
  %v2096 = vshrl.u32 %v2095, 7
  %v2097 = vsub.s32 %v1084, %v2096
  %v2098 = vrot.slane %v1843, %v2097
  %v2099 = vsel %vm772, %v2098, %v2094
  %2102 = vrot.lane.b32.xlu0 %v1871, 40
  %v2103 = vpop.permute.xlu0 %2102
  %v2105 = vsel %vm113, %v2089, %v2099
  %v2106 = vsel %vm578, %v2105, %v2103
  %v2108 = vsel %vm580, %v2106, 0
  %2110 = vmatprep.subr.mxu0 0.0
  %2111 = vmatpush1.msra.mxu0 0.0
  %2112 = vmatprep.subr.mxu0 0.0
  %2113 = vmatpush1.msra.mxu0 0.0
  %2114 = vmatprep.subr.mxu0 0.0
  %2115 = vmatpush1.msra.mxu0 0.0
  %2116 = vmatprep.subr.mxu0 0.0
  %2117 = vmatpush1.msra.mxu0 0.0
  %2118 = vmatprep.subr.mxu0 0.0
  %2119 = vmatpush1.msra.mxu0 0.0
  %2120 = vmatprep.subr.mxu0 0.0
  %2121 = vmatpush1.msra.mxu0 0.0
  %2122 = vmatprep.subr.mxu0 0.0
  %2123 = vmatpush1.msra.mxu0 0.0
  %2124 = vmatprep.subr.mxu0 0.0
  %2125 = vmatpush1.msra.mxu0 0.0
  %2126 = vmatprep.subr.mxu0 0.0
  %2127 = vmatpush1.msra.mxu0 0.0
  %2128 = vmatprep.subr.mxu0 0.0
  %2129 = vmatpush1.msra.mxu0 0.0
  %2130 = vmatprep.subr.mxu0 %v63
  %2131 = vmatpush1.msra.mxu0 %v62
  %2132 = vmatprep.subr.mxu0 %v61
  %2133 = vmatpush1.msra.mxu0 %v60
  %2134 = vmatprep.subr.mxu0 %v59
  %2135 = vmatpush1.msra.mxu0 %v58
  %2136 = vmatprep.subr.mxu0 %v57
  %2137 = vmatpush1.msra.mxu0 %v56
  %2138 = vmatprep.subr.mxu0 %v55
  %2139 = vmatpush1.msra.mxu0 %v54
  %2140 = vmatprep.subr.mxu0 %v53
  %2141 = vmatpush1.msra.mxu0 %v52
  %2142 = vmatprep.subr.mxu0 0.0
  %2143 = vmatpush2.msra.mxu0 0.0
  %2144 = vmatprep.subr.mxu0 0.0
  %2145 = vmatpush2.msra.mxu0 0.0
  %2146 = vmatprep.subr.mxu0 0.0
  %2147 = vmatpush2.msra.mxu0 0.0
  %2148 = vmatprep.subr.mxu0 0.0
  %2149 = vmatpush2.msra.mxu0 0.0
  %2150 = vmatprep.subr.mxu0 0.0
  %2151 = vmatpush2.msra.mxu0 0.0
  %2152 = vmatprep.subr.mxu0 0.0
  %2153 = vmatpush2.msra.mxu0 0.0
  %2154 = vmatprep.subr.mxu0 0.0
  %2155 = vmatpush2.msra.mxu0 0.0
  %2156 = vmatprep.subr.mxu0 0.0
  %2157 = vmatpush2.msra.mxu0 0.0
  %2158 = vmatprep.subr.mxu0 0.0
  %2159 = vmatpush2.msra.mxu0 0.0
  %2160 = vmatprep.subr.mxu0 0.0
  %2161 = vmatpush2.msra.mxu0 0.0
  %2162 = vmatprep.subr.mxu0 0.0
  %2163 = vmatpush2.msra.mxu0 0.0
  %2164 = vmatprep.subr.mxu0 0.0
  %2165 = vmatpush2.msra.mxu0 0.0
  %2166 = vmatprep.subr.mxu0 0.0
  %2167 = vmatpush2.msra.mxu0 0.0
  %2168 = vmatprep.subr.mxu0 0.0
  %2169 = vmatpush2.msra.mxu0 0.0
  %2170 = vmatprep.subr.mxu0 0.0
  %2171 = vmatpush2.msra.mxu0 0.0
  %2172 = vmatprep.subr.mxu0 0.0
  %2173 = vmatpush2.msra.mxu0 0.0
  %2174 = vmatprep.mubr.f32.mxu0 0.0
  %2175 = vmatmul.mubr.f32.gmra.mxu0 %v2108
  %v2176 = vpop.f32.mrf.mxu0
  %v2177 = vadd.f32 0.0, %v2176
  %v2178 = vpop.f32.mrf.mxu0
  %v2179 = vadd.f32 0.0, %v2178
  %2180 = vdwg.mxu0
  %2182 = vrot.lane.b32.xlu0 %v2177, 96
  %v2183 = vpop.permute.xlu0 %2182
  %2185 = vrot.lane.b32.xlu0 %v2177, 64
  %v2186 = vpop.permute.xlu0 %2185
  %2188 = vrot.lane.b32.xlu0 %v2177, 32
  %v2189 = vpop.permute.xlu0 %2188
  %2192 = vrot.lane.b32.xlu0 %v2179, 96
  %v2193 = vpop.permute.xlu0 %2192
  %2195 = vrot.lane.b32.xlu0 %v2179, 64
  %v2196 = vpop.permute.xlu0 %2195
  %2198 = vrot.lane.b32.xlu0 %v2179, 32
  %v2199 = vpop.permute.xlu0 %2198
  %v2201 = vcombine.low %v2177, %v2186
  %v2203 = vunpack.c.l.s4 1983009808
  %v2204 = vunpack.c.0.s8 %v2203
  %v2205 = vlaneseq
  %v2206 = vshrl.u32 %v2205, 7
  %v2207 = vsub.s32 %v2204, %v2206
  %v2208 = vrot.slane %v2201, %v2207
  %v2209 = vcombine.low %v2183, %v2189
  %v2211 = vunpack.c.l.s4 1983009808
  %v2212 = vunpack.c.0.s8 %v2211
  %v2213 = vlaneseq
  %v2214 = vshrl.u32 %v2213, 7
  %v2215 = vsub.s32 %v2212, %v2214
  %v2216 = vrot.slane %v2209, %v2215
  %v2217 = vcombine.low %v2179, %v2196
  %v2219 = vunpack.c.l.s4 1983009808
  %v2220 = vunpack.c.0.s8 %v2219
  %v2221 = vlaneseq
  %v2222 = vshrl.u32 %v2221, 7
  %v2223 = vsub.s32 %v2220, %v2222
  %v2224 = vrot.slane %v2217, %v2223
  %v2225 = vcombine.low %v2193, %v2199
  %v2227 = vunpack.c.l.s4 1983009808
  %v2228 = vunpack.c.0.s8 %v2227
  %v2229 = vlaneseq
  %v2230 = vshrl.u32 %v2229, 7
  %v2231 = vsub.s32 %v2228, %v2230
  %v2232 = vrot.slane %v2225, %v2231
  %v2233 = vcombine.low %v2208, %v2216
  %v2235 = vunpack.c.l.s4 1934713408
  %v2236 = vunpack.c.0.s8 %v2235
  %v2237 = vlaneseq
  %v2238 = vshrl.u32 %v2237, 7
  %v2239 = vsub.s32 %v2236, %v2238
  %v2240 = vrot.slane %v2233, %v2239
  %v2241 = vcombine.low %v2224, %v2232
  %v2243 = vunpack.c.l.s4 1934713408
  %v2244 = vunpack.c.0.s8 %v2243
  %v2245 = vlaneseq
  %v2246 = vshrl.u32 %v2245, 7
  %v2247 = vsub.s32 %v2244, %v2246
  %v2248 = vrot.slane %v2241, %v2247
  %v2249 = vcombine.low %v2240, %v2248
  %v2250 = vcombine.high %v2240, %v2248
  %v2251 = vadd.f32 %v2249, %v187
  %v2252 = vadd.f32 %v2250, %v192
  %v2253 = vtanh.pop %v2251
  %v2254 = vtanh.pop %v2252
  %v2255 = vmul.f32 %v2253, %v107
  %v2256 = vmul.f32 %v2254, %v107
  %v2257 = vsel %vm113, %v2255, 0.0
  %2258 = vadd.xlane.f32.xlu0 %v2257
  %v2259 = vpop.xlane.xlu0 %2258
  %v2260 = vsel %vm113, %v2256, 0.0
  %2261 = vadd.xlane.f32.xlu0 %v2260
  %v2262 = vpop.xlane.xlu0 %2261
  %v2263 = vadd.f32 %v2259, %v744
  %v2264 = vadd.f32 %v2262, %v751
  %2267 = vset.pattern.permute.xlu0 0
  %2268 = vperm.xlu0 %2267, %v2263
  %v2269 = vpop.permute.xlu0 %2268
  %2270 = vset.pattern.permute.xlu0 0
  %2271 = vperm.xlu0 %2270, %v2264
  %v2272 = vpop.permute.xlu0 %2271
  %v2273 = vlaneseq
  %v2274 = vshrl.u32 %v2273, 7
  %v2275 = vsub.s32 %v462, %v2274
  %v2276 = vrot.slane %v2269, %v2275
  %v2277 = vlaneseq
  %v2278 = vshrl.u32 %v2277, 7
  %v2279 = vsub.s32 %v462, %v2278
  %v2280 = vrot.slane %v2272, %v2279
  %v2281 = vsel %vm772, %v2280, %v2276
  %v2283 = vsel %vm775, %v2281, -inf
  %2284 = vmax.xlane.f32.xlu0 %v2283
  %v2285 = vpop.xlane.xlu0 %2284
  %v2287 = vlaneseq
  %v2288 = vshrl.u32 %v2287, 7
  %v2289 = vsub.s32 0, %v2288
  %v2290 = vrot.slane %v2285, %v2289
  %v2291 = vlaneseq
  %v2292 = vshrl.u32 %v2291, 7
  %v2293 = vsub.s32 1, %v2292
  %v2294 = vrot.slane %v2285, %v2293
  %v2297 = vsub.f32 %v2263, %v2290
  %v2298 = vsub.f32 %v2264, %v2294
  %v2299 = vmul.f32 %v2297, 1.442695
  %v2300 = vpow.pop %v2299
  %v2301 = vmul.f32 %v2298, 1.442695
  %v2302 = vpow.pop %v2301
  %2305 = vset.pattern.permute.xlu0 0
  %2306 = vperm.xlu0 %2305, %v2300
  %v2307 = vpop.permute.xlu0 %2306
  %2308 = vset.pattern.permute.xlu0 0
  %2309 = vperm.xlu0 %2308, %v2302
  %v2310 = vpop.permute.xlu0 %2309
  %v2311 = vlaneseq
  %v2312 = vshrl.u32 %v2311, 7
  %v2313 = vsub.s32 %v462, %v2312
  %v2314 = vrot.slane %v2307, %v2313
  %v2315 = vlaneseq
  %v2316 = vshrl.u32 %v2315, 7
  %v2317 = vsub.s32 %v462, %v2316
  %v2318 = vrot.slane %v2310, %v2317
  %v2319 = vsel %vm772, %v2318, %v2314
  %v2321 = vsel %vm775, %v2319, 0.0
  %2322 = vadd.xlane.f32.xlu0 %v2321
  %v2323 = vpop.xlane.xlu0 %2322
  %v2324 = vrcp.pop %v2323
  %v2326 = vlaneseq
  %v2327 = vshrl.u32 %v2326, 7
  %v2328 = vsub.s32 0, %v2327
  %v2329 = vrot.slane %v2324, %v2328
  %v2330 = vlaneseq
  %v2331 = vshrl.u32 %v2330, 7
  %v2332 = vsub.s32 1, %v2331
  %v2333 = vrot.slane %v2324, %v2332
  %v2336 = vmul.f32 %v2300, %v2329
  %v2337 = vmul.f32 %v2302, %v2333
  %2339 = vset.pattern.permute.xlu0 0
  %2340 = vperm.xlu0 %2339, %v2336
  %v2341 = vpop.permute.xlu0 %2340
  %2344 = vset.pattern.permute.xlu0 0
  %2345 = vperm.xlu0 %2344, %v2337
  %v2346 = vpop.permute.xlu0 %2345
  %v2348 = vmul.f32 %v2341, %v49
  %v2349 = vmul.f32 %v2346, %v50
  %v2350 = vsel %vm113, %v2348, 0.0
  %v2351 = vrot.slane %v2350, 4
  %v2352 = vadd.f32 %v2350, %v2351
  %v2353 = vrot.slane %v2352, 2
  %v2354 = vadd.f32 %v2352, %v2353
  %v2355 = vrot.slane %v2354, 1
  %v2356 = vadd.f32 %v2354, %v2355
  %v2357 = vsel %vm113, %v2349, 0.0
  %v2358 = vrot.slane %v2357, 4
  %v2359 = vadd.f32 %v2357, %v2358
  %v2360 = vrot.slane %v2359, 2
  %v2361 = vadd.f32 %v2359, %v2360
  %v2362 = vrot.slane %v2361, 1
  %v2363 = vadd.f32 %v2361, %v2362
  %v2364 = vlaneseq
  %v2365 = vshrl.u32 %v2364, 7
  %v2366 = vsub.s32 %v462, %v2365
  %v2367 = vrot.slane %v2341, %v2366
  %v2368 = vlaneseq
  %v2369 = vshrl.u32 %v2368, 7
  %v2370 = vsub.s32 %v462, %v2369
  %v2371 = vrot.slane %v2346, %v2370
  %v2372 = vsel %vm772, %v2371, %v2367
  %v2374 = vadd.f32 %v1871, %v2372
  %v2377 = vsel %vm772, %v2363, %v2356
  %2378 = vrot.lane.b32.xlu0 %v2377, 32
  %v2379 = vpop.permute.xlu0 %2378
  %2381 = vrot.lane.b32.xlu0 %v1979, 96
  %v2382 = vpop.permute.xlu0 %2381
  %v2384 = vsel %vm113, %v2089, %v2379
  %v2385 = vsel %vm466, %v2384, %v2382
  %v2387 = vsel %vm468, %v2385, 0
  %2389 = vmatprep.subr.mxu0 0.0
  %2390 = vmatpush1.msra.mxu0 0.0
  %2391 = vmatprep.subr.mxu0 0.0
  %2392 = vmatpush1.msra.mxu0 0.0
  %2393 = vmatprep.subr.mxu0 0.0
  %2394 = vmatpush1.msra.mxu0 0.0
  %2395 = vmatprep.subr.mxu0 0.0
  %2396 = vmatpush1.msra.mxu0 0.0
  %2397 = vmatprep.subr.mxu0 0.0
  %2398 = vmatpush1.msra.mxu0 %v87
  %2399 = vmatprep.subr.mxu0 0.0
  %2400 = vmatpush1.msra.mxu0 %v86
  %2401 = vmatprep.subr.mxu0 0.0
  %2402 = vmatpush1.msra.mxu0 %v85
  %2403 = vmatprep.subr.mxu0 0.0
  %2404 = vmatpush1.msra.mxu0 %v84
  %2405 = vmatprep.subr.mxu0 0.0
  %2406 = vmatpush1.msra.mxu0 %v83
  %2407 = vmatprep.subr.mxu0 0.0
  %2408 = vmatpush1.msra.mxu0 %v82
  %2409 = vmatprep.subr.mxu0 0.0
  %2410 = vmatpush1.msra.mxu0 %v81
  %2411 = vmatprep.subr.mxu0 0.0
  %2412 = vmatpush1.msra.mxu0 %v80
  %2413 = vmatprep.subr.mxu0 0.0
  %2414 = vmatpush1.msra.mxu0 %v79
  %2415 = vmatprep.subr.mxu0 0.0
  %2416 = vmatpush1.msra.mxu0 %v78
  %2417 = vmatprep.subr.mxu0 0.0
  %2418 = vmatpush1.msra.mxu0 %v77
  %2419 = vmatprep.subr.mxu0 0.0
  %2420 = vmatpush1.msra.mxu0 %v76
  %2421 = vmatprep.subr.mxu0 0.0
  %2422 = vmatpush2.msra.mxu0 0.0
  %2423 = vmatprep.subr.mxu0 0.0
  %2424 = vmatpush2.msra.mxu0 0.0
  %2425 = vmatprep.subr.mxu0 0.0
  %2426 = vmatpush2.msra.mxu0 0.0
  %2427 = vmatprep.subr.mxu0 0.0
  %2428 = vmatpush2.msra.mxu0 0.0
  %2429 = vmatprep.subr.mxu0 0.0
  %2430 = vmatpush2.msra.mxu0 0.0
  %2431 = vmatprep.subr.mxu0 0.0
  %2432 = vmatpush2.msra.mxu0 0.0
  %2433 = vmatprep.subr.mxu0 0.0
  %2434 = vmatpush2.msra.mxu0 0.0
  %2435 = vmatprep.subr.mxu0 0.0
  %2436 = vmatpush2.msra.mxu0 0.0
  %2437 = vmatprep.subr.mxu0 0.0
  %2438 = vmatpush2.msra.mxu0 0.0
  %2439 = vmatprep.subr.mxu0 0.0
  %2440 = vmatpush2.msra.mxu0 0.0
  %2441 = vmatprep.subr.mxu0 0.0
  %2442 = vmatpush2.msra.mxu0 0.0
  %2443 = vmatprep.subr.mxu0 0.0
  %2444 = vmatpush2.msra.mxu0 0.0
  %2445 = vmatprep.subr.mxu0 0.0
  %2446 = vmatpush2.msra.mxu0 0.0
  %2447 = vmatprep.subr.mxu0 0.0
  %2448 = vmatpush2.msra.mxu0 0.0
  %2449 = vmatprep.subr.mxu0 0.0
  %2450 = vmatpush2.msra.mxu0 0.0
  %2451 = vmatprep.subr.mxu0 0.0
  %2452 = vmatpush2.msra.mxu0 0.0
  %2453 = vmatprep.mubr.f32.mxu0 0.0
  %2454 = vmatmul.mubr.f32.gmra.mxu0 %v2387
  %v2455 = vpop.f32.mrf.mxu0
  %v2456 = vadd.f32 %v100, %v2455
  %v2457 = vpop.f32.mrf.mxu0
  %2458 = vdwg.mxu0
  %v2459 = vxor.u32 %v2456, 2147483648
  %v2460 = vmul.f32 %v2459, 1.442695
  %v2461 = vpow.pop %v2460
  %v2462 = vadd.f32 %v2461, 1.0
  %v2463 = vrcp.pop %v2462
  %v2464 = vmul.f32 1.0, %v2463
  %v2465 = vtanh.pop %v2456
  %v2466 = vmul.f32 %v2464, %v1973
  %2468 = vrot.lane.b32.xlu0 %v2465, 64
  %v2469 = vpop.permute.xlu0 %2468
  %v2471 = vmul.f32 %v2464, %v2469
  %2473 = vrot.lane.b32.xlu0 %v2471, 32
  %v2474 = vpop.permute.xlu0 %2473
  %v2476 = vadd.f32 %v2466, %v2474
  %v2477 = vtanh.pop %v2476
  %2479 = vrot.lane.b32.xlu0 %v2477, 64
  %v2480 = vpop.permute.xlu0 %2479
  %v2482 = vmul.f32 %v2464, %v2480
  %2484 = vrot.lane.b32.xlu0 %v2482, 32
  %v2485 = vpop.permute.xlu0 %2484
  %v2487 = vsel %vm113, %v2485, %v2379
  %2488 = vrot.lane.b32.xlu0 %v2086, 96
  %v2489 = vpop.permute.xlu0 %2488
  %v2491 = vsel %vm113, %v443, %v2379
  %v2492 = vsel %vm466, %v2491, %v2489
  %v2494 = vsel %vm468, %v2492, 0
  %2496 = vmatprep.subr.mxu0 0.0
  %2497 = vmatpush1.msra.mxu0 0.0
  %2498 = vmatprep.subr.mxu0 0.0
  %2499 = vmatpush1.msra.mxu0 0.0
  %2500 = vmatprep.subr.mxu0 0.0
  %2501 = vmatpush1.msra.mxu0 0.0
  %2502 = vmatprep.subr.mxu0 0.0
  %2503 = vmatpush1.msra.mxu0 0.0
  %2504 = vmatprep.subr.mxu0 0.0
  %2505 = vmatpush1.msra.mxu0 %v75
  %2506 = vmatprep.subr.mxu0 0.0
  %2507 = vmatpush1.msra.mxu0 %v74
  %2508 = vmatprep.subr.mxu0 0.0
  %2509 = vmatpush1.msra.mxu0 %v73
  %2510 = vmatprep.subr.mxu0 0.0
  %2511 = vmatpush1.msra.mxu0 %v72
  %2512 = vmatprep.subr.mxu0 0.0
  %2513 = vmatpush1.msra.mxu0 %v71
  %2514 = vmatprep.subr.mxu0 0.0
  %2515 = vmatpush1.msra.mxu0 %v70
  %2516 = vmatprep.subr.mxu0 0.0
  %2517 = vmatpush1.msra.mxu0 %v69
  %2518 = vmatprep.subr.mxu0 0.0
  %2519 = vmatpush1.msra.mxu0 %v68
  %2520 = vmatprep.subr.mxu0 0.0
  %2521 = vmatpush1.msra.mxu0 %v67
  %2522 = vmatprep.subr.mxu0 0.0
  %2523 = vmatpush1.msra.mxu0 %v66
  %2524 = vmatprep.subr.mxu0 0.0
  %2525 = vmatpush1.msra.mxu0 %v65
  %2526 = vmatprep.subr.mxu0 0.0
  %2527 = vmatpush1.msra.mxu0 %v64
  %2528 = vmatprep.subr.mxu0 0.0
  %2529 = vmatpush2.msra.mxu0 0.0
  %2530 = vmatprep.subr.mxu0 0.0
  %2531 = vmatpush2.msra.mxu0 0.0
  %2532 = vmatprep.subr.mxu0 0.0
  %2533 = vmatpush2.msra.mxu0 0.0
  %2534 = vmatprep.subr.mxu0 0.0
  %2535 = vmatpush2.msra.mxu0 0.0
  %2536 = vmatprep.subr.mxu0 0.0
  %2537 = vmatpush2.msra.mxu0 0.0
  %2538 = vmatprep.subr.mxu0 0.0
  %2539 = vmatpush2.msra.mxu0 0.0
  %2540 = vmatprep.subr.mxu0 0.0
  %2541 = vmatpush2.msra.mxu0 0.0
  %2542 = vmatprep.subr.mxu0 0.0
  %2543 = vmatpush2.msra.mxu0 0.0
  %2544 = vmatprep.subr.mxu0 0.0
  %2545 = vmatpush2.msra.mxu0 0.0
  %2546 = vmatprep.subr.mxu0 0.0
  %2547 = vmatpush2.msra.mxu0 0.0
  %2548 = vmatprep.subr.mxu0 0.0
  %2549 = vmatpush2.msra.mxu0 0.0
  %2550 = vmatprep.subr.mxu0 0.0
  %2551 = vmatpush2.msra.mxu0 0.0
  %2552 = vmatprep.subr.mxu0 0.0
  %2553 = vmatpush2.msra.mxu0 0.0
  %2554 = vmatprep.subr.mxu0 0.0
  %2555 = vmatpush2.msra.mxu0 0.0
  %2556 = vmatprep.subr.mxu0 0.0
  %2557 = vmatpush2.msra.mxu0 0.0
  %2558 = vmatprep.subr.mxu0 0.0
  %2559 = vmatpush2.msra.mxu0 0.0
  %2560 = vmatprep.mubr.f32.mxu0 0.0
  %2561 = vmatmul.mubr.f32.gmra.mxu0 %v2494
  %v2562 = vpop.f32.mrf.mxu0
  %v2563 = vadd.f32 %v93, %v2562
  %v2564 = vpop.f32.mrf.mxu0
  %2565 = vdwg.mxu0
  %v2566 = vxor.u32 %v2563, 2147483648
  %v2567 = vmul.f32 %v2566, 1.442695
  %v2568 = vpow.pop %v2567
  %v2569 = vadd.f32 %v2568, 1.0
  %v2570 = vrcp.pop %v2569
  %v2571 = vmul.f32 1.0, %v2570
  %v2572 = vtanh.pop %v2563
  %v2573 = vmul.f32 %v2571, %v2080
  %2575 = vrot.lane.b32.xlu0 %v2572, 64
  %v2576 = vpop.permute.xlu0 %2575
  %v2578 = vmul.f32 %v2571, %v2576
  %2580 = vrot.lane.b32.xlu0 %v2578, 32
  %v2581 = vpop.permute.xlu0 %2580
  %v2583 = vadd.f32 %v2573, %v2581
  %v2584 = vtanh.pop %v2583
  %2586 = vrot.lane.b32.xlu0 %v2584, 64
  %v2587 = vpop.permute.xlu0 %2586
  %v2589 = vmul.f32 %v2571, %v2587
  %2591 = vrot.lane.b32.xlu0 %v2589, 32
  %v2592 = vpop.permute.xlu0 %2591
  %v2594 = vlaneseq
  %v2595 = vshrl.u32 %v2594, 7
  %v2596 = vsub.s32 %v1084, %v2595
  %v2597 = vrot.slane %v2341, %v2596
  %v2598 = vlaneseq
  %v2599 = vshrl.u32 %v2598, 7
  %v2600 = vsub.s32 %v1084, %v2599
  %v2601 = vrot.slane %v2346, %v2600
  %v2602 = vsel %vm772, %v2601, %v2597
  %2605 = vrot.lane.b32.xlu0 %v2374, 40
  %v2606 = vpop.permute.xlu0 %2605
  %v2608 = vsel %vm113, %v2592, %v2602
  %v2609 = vsel %vm578, %v2608, %v2606
  %v2611 = vsel %vm580, %v2609, 0
  %2613 = vmatprep.subr.mxu0 0.0
  %2614 = vmatpush1.msra.mxu0 0.0
  %2615 = vmatprep.subr.mxu0 0.0
  %2616 = vmatpush1.msra.mxu0 0.0
  %2617 = vmatprep.subr.mxu0 0.0
  %2618 = vmatpush1.msra.mxu0 0.0
  %2619 = vmatprep.subr.mxu0 0.0
  %2620 = vmatpush1.msra.mxu0 0.0
  %2621 = vmatprep.subr.mxu0 0.0
  %2622 = vmatpush1.msra.mxu0 0.0
  %2623 = vmatprep.subr.mxu0 0.0
  %2624 = vmatpush1.msra.mxu0 0.0
  %2625 = vmatprep.subr.mxu0 0.0
  %2626 = vmatpush1.msra.mxu0 0.0
  %2627 = vmatprep.subr.mxu0 0.0
  %2628 = vmatpush1.msra.mxu0 0.0
  %2629 = vmatprep.subr.mxu0 0.0
  %2630 = vmatpush1.msra.mxu0 0.0
  %2631 = vmatprep.subr.mxu0 0.0
  %2632 = vmatpush1.msra.mxu0 0.0
  %2633 = vmatprep.subr.mxu0 %v63
  %2634 = vmatpush1.msra.mxu0 %v62
  %2635 = vmatprep.subr.mxu0 %v61
  %2636 = vmatpush1.msra.mxu0 %v60
  %2637 = vmatprep.subr.mxu0 %v59
  %2638 = vmatpush1.msra.mxu0 %v58
  %2639 = vmatprep.subr.mxu0 %v57
  %2640 = vmatpush1.msra.mxu0 %v56
  %2641 = vmatprep.subr.mxu0 %v55
  %2642 = vmatpush1.msra.mxu0 %v54
  %2643 = vmatprep.subr.mxu0 %v53
  %2644 = vmatpush1.msra.mxu0 %v52
  %2645 = vmatprep.subr.mxu0 0.0
  %2646 = vmatpush2.msra.mxu0 0.0
  %2647 = vmatprep.subr.mxu0 0.0
  %2648 = vmatpush2.msra.mxu0 0.0
  %2649 = vmatprep.subr.mxu0 0.0
  %2650 = vmatpush2.msra.mxu0 0.0
  %2651 = vmatprep.subr.mxu0 0.0
  %2652 = vmatpush2.msra.mxu0 0.0
  %2653 = vmatprep.subr.mxu0 0.0
  %2654 = vmatpush2.msra.mxu0 0.0
  %2655 = vmatprep.subr.mxu0 0.0
  %2656 = vmatpush2.msra.mxu0 0.0
  %2657 = vmatprep.subr.mxu0 0.0
  %2658 = vmatpush2.msra.mxu0 0.0
  %2659 = vmatprep.subr.mxu0 0.0
  %2660 = vmatpush2.msra.mxu0 0.0
  %2661 = vmatprep.subr.mxu0 0.0
  %2662 = vmatpush2.msra.mxu0 0.0
  %2663 = vmatprep.subr.mxu0 0.0
  %2664 = vmatpush2.msra.mxu0 0.0
  %2665 = vmatprep.subr.mxu0 0.0
  %2666 = vmatpush2.msra.mxu0 0.0
  %2667 = vmatprep.subr.mxu0 0.0
  %2668 = vmatpush2.msra.mxu0 0.0
  %2669 = vmatprep.subr.mxu0 0.0
  %2670 = vmatpush2.msra.mxu0 0.0
  %2671 = vmatprep.subr.mxu0 0.0
  %2672 = vmatpush2.msra.mxu0 0.0
  %2673 = vmatprep.subr.mxu0 0.0
  %2674 = vmatpush2.msra.mxu0 0.0
  %2675 = vmatprep.subr.mxu0 0.0
  %2676 = vmatpush2.msra.mxu0 0.0
  %2677 = vmatprep.mubr.f32.mxu0 0.0
  %2678 = vmatmul.mubr.f32.gmra.mxu0 %v2611
  %v2679 = vpop.f32.mrf.mxu0
  %v2680 = vadd.f32 0.0, %v2679
  %v2681 = vpop.f32.mrf.mxu0
  %v2682 = vadd.f32 0.0, %v2681
  %2683 = vdwg.mxu0
  %2685 = vrot.lane.b32.xlu0 %v2680, 96
  %v2686 = vpop.permute.xlu0 %2685
  %2688 = vrot.lane.b32.xlu0 %v2680, 64
  %v2689 = vpop.permute.xlu0 %2688
  %2691 = vrot.lane.b32.xlu0 %v2680, 32
  %v2692 = vpop.permute.xlu0 %2691
  %2695 = vrot.lane.b32.xlu0 %v2682, 96
  %v2696 = vpop.permute.xlu0 %2695
  %2698 = vrot.lane.b32.xlu0 %v2682, 64
  %v2699 = vpop.permute.xlu0 %2698
  %2701 = vrot.lane.b32.xlu0 %v2682, 32
  %v2702 = vpop.permute.xlu0 %2701
  %v2704 = vcombine.low %v2680, %v2689
  %v2706 = vunpack.c.l.s4 1983009808
  %v2707 = vunpack.c.0.s8 %v2706
  %v2708 = vlaneseq
  %v2709 = vshrl.u32 %v2708, 7
  %v2710 = vsub.s32 %v2707, %v2709
  %v2711 = vrot.slane %v2704, %v2710
  %v2712 = vcombine.low %v2686, %v2692
  %v2714 = vunpack.c.l.s4 1983009808
  %v2715 = vunpack.c.0.s8 %v2714
  %v2716 = vlaneseq
  %v2717 = vshrl.u32 %v2716, 7
  %v2718 = vsub.s32 %v2715, %v2717
  %v2719 = vrot.slane %v2712, %v2718
  %v2720 = vcombine.low %v2682, %v2699
  %v2722 = vunpack.c.l.s4 1983009808
  %v2723 = vunpack.c.0.s8 %v2722
  %v2724 = vlaneseq
  %v2725 = vshrl.u32 %v2724, 7
  %v2726 = vsub.s32 %v2723, %v2725
  %v2727 = vrot.slane %v2720, %v2726
  %v2728 = vcombine.low %v2696, %v2702
  %v2730 = vunpack.c.l.s4 1983009808
  %v2731 = vunpack.c.0.s8 %v2730
  %v2732 = vlaneseq
  %v2733 = vshrl.u32 %v2732, 7
  %v2734 = vsub.s32 %v2731, %v2733
  %v2735 = vrot.slane %v2728, %v2734
  %v2736 = vcombine.low %v2711, %v2719
  %v2738 = vunpack.c.l.s4 1934713408
  %v2739 = vunpack.c.0.s8 %v2738
  %v2740 = vlaneseq
  %v2741 = vshrl.u32 %v2740, 7
  %v2742 = vsub.s32 %v2739, %v2741
  %v2743 = vrot.slane %v2736, %v2742
  %v2744 = vcombine.low %v2727, %v2735
  %v2746 = vunpack.c.l.s4 1934713408
  %v2747 = vunpack.c.0.s8 %v2746
  %v2748 = vlaneseq
  %v2749 = vshrl.u32 %v2748, 7
  %v2750 = vsub.s32 %v2747, %v2749
  %v2751 = vrot.slane %v2744, %v2750
  %v2752 = vcombine.low %v2743, %v2751
  %v2753 = vcombine.high %v2743, %v2751
  %v2754 = vadd.f32 %v2752, %v187
  %v2755 = vadd.f32 %v2753, %v192
  %v2756 = vtanh.pop %v2754
  %v2757 = vtanh.pop %v2755
  %v2758 = vmul.f32 %v2756, %v107
  %v2759 = vmul.f32 %v2757, %v107
  %v2760 = vsel %vm113, %v2758, 0.0
  %2761 = vadd.xlane.f32.xlu0 %v2760
  %v2762 = vpop.xlane.xlu0 %2761
  %v2763 = vsel %vm113, %v2759, 0.0
  %2764 = vadd.xlane.f32.xlu0 %v2763
  %v2765 = vpop.xlane.xlu0 %2764
  %v2766 = vadd.f32 %v2762, %v744
  %v2767 = vadd.f32 %v2765, %v751
  %2770 = vset.pattern.permute.xlu0 0
  %2771 = vperm.xlu0 %2770, %v2766
  %v2772 = vpop.permute.xlu0 %2771
  %2773 = vset.pattern.permute.xlu0 0
  %2774 = vperm.xlu0 %2773, %v2767
  %v2775 = vpop.permute.xlu0 %2774
  %v2776 = vlaneseq
  %v2777 = vshrl.u32 %v2776, 7
  %v2778 = vsub.s32 %v462, %v2777
  %v2779 = vrot.slane %v2772, %v2778
  %v2780 = vlaneseq
  %v2781 = vshrl.u32 %v2780, 7
  %v2782 = vsub.s32 %v462, %v2781
  %v2783 = vrot.slane %v2775, %v2782
  %v2784 = vsel %vm772, %v2783, %v2779
  %v2786 = vsel %vm775, %v2784, -inf
  %2787 = vmax.xlane.f32.xlu0 %v2786
  %v2788 = vpop.xlane.xlu0 %2787
  %v2790 = vlaneseq
  %v2791 = vshrl.u32 %v2790, 7
  %v2792 = vsub.s32 0, %v2791
  %v2793 = vrot.slane %v2788, %v2792
  %v2794 = vlaneseq
  %v2795 = vshrl.u32 %v2794, 7
  %v2796 = vsub.s32 1, %v2795
  %v2797 = vrot.slane %v2788, %v2796
  %v2800 = vsub.f32 %v2766, %v2793
  %v2801 = vsub.f32 %v2767, %v2797
  %v2802 = vmul.f32 %v2800, 1.442695
  %v2803 = vpow.pop %v2802
  %v2804 = vmul.f32 %v2801, 1.442695
  %v2805 = vpow.pop %v2804
  %2808 = vset.pattern.permute.xlu0 0
  %2809 = vperm.xlu0 %2808, %v2803
  %v2810 = vpop.permute.xlu0 %2809
  %2811 = vset.pattern.permute.xlu0 0
  %2812 = vperm.xlu0 %2811, %v2805
  %v2813 = vpop.permute.xlu0 %2812
  %v2814 = vlaneseq
  %v2815 = vshrl.u32 %v2814, 7
  %v2816 = vsub.s32 %v462, %v2815
  %v2817 = vrot.slane %v2810, %v2816
  %v2818 = vlaneseq
  %v2819 = vshrl.u32 %v2818, 7
  %v2820 = vsub.s32 %v462, %v2819
  %v2821 = vrot.slane %v2813, %v2820
  %v2822 = vsel %vm772, %v2821, %v2817
  %v2824 = vsel %vm775, %v2822, 0.0
  %2825 = vadd.xlane.f32.xlu0 %v2824
  %v2826 = vpop.xlane.xlu0 %2825
  %v2827 = vrcp.pop %v2826
  %v2829 = vlaneseq
  %v2830 = vshrl.u32 %v2829, 7
  %v2831 = vsub.s32 0, %v2830
  %v2832 = vrot.slane %v2827, %v2831
  %v2833 = vlaneseq
  %v2834 = vshrl.u32 %v2833, 7
  %v2835 = vsub.s32 1, %v2834
  %v2836 = vrot.slane %v2827, %v2835
  %v2839 = vmul.f32 %v2803, %v2832
  %v2840 = vmul.f32 %v2805, %v2836
  %2842 = vset.pattern.permute.xlu0 0
  %2843 = vperm.xlu0 %2842, %v2839
  %v2844 = vpop.permute.xlu0 %2843
  %2847 = vset.pattern.permute.xlu0 0
  %2848 = vperm.xlu0 %2847, %v2840
  %v2849 = vpop.permute.xlu0 %2848
  %v2851 = vmul.f32 %v2844, %v49
  %v2852 = vmul.f32 %v2849, %v50
  %v2853 = vsel %vm113, %v2851, 0.0
  %v2854 = vrot.slane %v2853, 4
  %v2855 = vadd.f32 %v2853, %v2854
  %v2856 = vrot.slane %v2855, 2
  %v2857 = vadd.f32 %v2855, %v2856
  %v2858 = vrot.slane %v2857, 1
  %v2859 = vadd.f32 %v2857, %v2858
  %v2860 = vsel %vm113, %v2852, 0.0
  %v2861 = vrot.slane %v2860, 4
  %v2862 = vadd.f32 %v2860, %v2861
  %v2863 = vrot.slane %v2862, 2
  %v2864 = vadd.f32 %v2862, %v2863
  %v2865 = vrot.slane %v2864, 1
  %v2866 = vadd.f32 %v2864, %v2865
  %v2867 = vlaneseq
  %v2868 = vshrl.u32 %v2867, 7
  %v2869 = vsub.s32 %v462, %v2868
  %v2870 = vrot.slane %v2844, %v2869
  %v2871 = vlaneseq
  %v2872 = vshrl.u32 %v2871, 7
  %v2873 = vsub.s32 %v462, %v2872
  %v2874 = vrot.slane %v2849, %v2873
  %v2875 = vsel %vm772, %v2874, %v2870
  %v2877 = vadd.f32 %v2374, %v2875
  %v2880 = vsel %vm772, %v2866, %v2859
  %2881 = vrot.lane.b32.xlu0 %v2880, 32
  %v2882 = vpop.permute.xlu0 %2881
  %2884 = vrot.lane.b32.xlu0 %v2482, 96
  %v2885 = vpop.permute.xlu0 %2884
  %v2887 = vsel %vm113, %v2592, %v2882
  %v2888 = vsel %vm466, %v2887, %v2885
  %v2890 = vsel %vm468, %v2888, 0
  %2892 = vmatprep.subr.mxu0 0.0
  %2893 = vmatpush1.msra.mxu0 0.0
  %2894 = vmatprep.subr.mxu0 0.0
  %2895 = vmatpush1.msra.mxu0 0.0
  %2896 = vmatprep.subr.mxu0 0.0
  %2897 = vmatpush1.msra.mxu0 0.0
  %2898 = vmatprep.subr.mxu0 0.0
  %2899 = vmatpush1.msra.mxu0 0.0
  %2900 = vmatprep.subr.mxu0 0.0
  %2901 = vmatpush1.msra.mxu0 %v87
  %2902 = vmatprep.subr.mxu0 0.0
  %2903 = vmatpush1.msra.mxu0 %v86
  %2904 = vmatprep.subr.mxu0 0.0
  %2905 = vmatpush1.msra.mxu0 %v85
  %2906 = vmatprep.subr.mxu0 0.0
  %2907 = vmatpush1.msra.mxu0 %v84
  %2908 = vmatprep.subr.mxu0 0.0
  %2909 = vmatpush1.msra.mxu0 %v83
  %2910 = vmatprep.subr.mxu0 0.0
  %2911 = vmatpush1.msra.mxu0 %v82
  %2912 = vmatprep.subr.mxu0 0.0
  %2913 = vmatpush1.msra.mxu0 %v81
  %2914 = vmatprep.subr.mxu0 0.0
  %2915 = vmatpush1.msra.mxu0 %v80
  %2916 = vmatprep.subr.mxu0 0.0
  %2917 = vmatpush1.msra.mxu0 %v79
  %2918 = vmatprep.subr.mxu0 0.0
  %2919 = vmatpush1.msra.mxu0 %v78
  %2920 = vmatprep.subr.mxu0 0.0
  %2921 = vmatpush1.msra.mxu0 %v77
  %2922 = vmatprep.subr.mxu0 0.0
  %2923 = vmatpush1.msra.mxu0 %v76
  %2924 = vmatprep.subr.mxu0 0.0
  %2925 = vmatpush2.msra.mxu0 0.0
  %2926 = vmatprep.subr.mxu0 0.0
  %2927 = vmatpush2.msra.mxu0 0.0
  %2928 = vmatprep.subr.mxu0 0.0
  %2929 = vmatpush2.msra.mxu0 0.0
  %2930 = vmatprep.subr.mxu0 0.0
  %2931 = vmatpush2.msra.mxu0 0.0
  %2932 = vmatprep.subr.mxu0 0.0
  %2933 = vmatpush2.msra.mxu0 0.0
  %2934 = vmatprep.subr.mxu0 0.0
  %2935 = vmatpush2.msra.mxu0 0.0
  %2936 = vmatprep.subr.mxu0 0.0
  %2937 = vmatpush2.msra.mxu0 0.0
  %2938 = vmatprep.subr.mxu0 0.0
  %2939 = vmatpush2.msra.mxu0 0.0
  %2940 = vmatprep.subr.mxu0 0.0
  %2941 = vmatpush2.msra.mxu0 0.0
  %2942 = vmatprep.subr.mxu0 0.0
  %2943 = vmatpush2.msra.mxu0 0.0
  %2944 = vmatprep.subr.mxu0 0.0
  %2945 = vmatpush2.msra.mxu0 0.0
  %2946 = vmatprep.subr.mxu0 0.0
  %2947 = vmatpush2.msra.mxu0 0.0
  %2948 = vmatprep.subr.mxu0 0.0
  %2949 = vmatpush2.msra.mxu0 0.0
  %2950 = vmatprep.subr.mxu0 0.0
  %2951 = vmatpush2.msra.mxu0 0.0
  %2952 = vmatprep.subr.mxu0 0.0
  %2953 = vmatpush2.msra.mxu0 0.0
  %2954 = vmatprep.subr.mxu0 0.0
  %2955 = vmatpush2.msra.mxu0 0.0
  %2956 = vmatprep.mubr.f32.mxu0 0.0
  %2957 = vmatmul.mubr.f32.gmra.mxu0 %v2890
  %v2958 = vpop.f32.mrf.mxu0
  %v2959 = vadd.f32 %v100, %v2958
  %v2960 = vpop.f32.mrf.mxu0
  %2961 = vdwg.mxu0
  %v2962 = vxor.u32 %v2959, 2147483648
  %v2963 = vmul.f32 %v2962, 1.442695
  %v2964 = vpow.pop %v2963
  %v2965 = vadd.f32 %v2964, 1.0
  %v2966 = vrcp.pop %v2965
  %v2967 = vmul.f32 1.0, %v2966
  %v2968 = vtanh.pop %v2959
  %v2969 = vmul.f32 %v2967, %v2476
  %2971 = vrot.lane.b32.xlu0 %v2968, 64
  %v2972 = vpop.permute.xlu0 %2971
  %v2974 = vmul.f32 %v2967, %v2972
  %2976 = vrot.lane.b32.xlu0 %v2974, 32
  %v2977 = vpop.permute.xlu0 %2976
  %v2979 = vadd.f32 %v2969, %v2977
  %v2980 = vtanh.pop %v2979
  %2982 = vrot.lane.b32.xlu0 %v2980, 64
  %v2983 = vpop.permute.xlu0 %2982
  %v2985 = vmul.f32 %v2967, %v2983
  %2987 = vrot.lane.b32.xlu0 %v2985, 32
  %v2988 = vpop.permute.xlu0 %2987
  %v2990 = vsel %vm113, %v2988, %v2882
  %2991 = vrot.lane.b32.xlu0 %v2589, 96
  %v2992 = vpop.permute.xlu0 %2991
  %v2994 = vsel %vm113, %v451, %v2882
  %v2995 = vsel %vm466, %v2994, %v2992
  %v2997 = vsel %vm468, %v2995, 0
  %2999 = vmatprep.subr.mxu0 0.0
  %3000 = vmatpush1.msra.mxu0 0.0
  %3001 = vmatprep.subr.mxu0 0.0
  %3002 = vmatpush1.msra.mxu0 0.0
  %3003 = vmatprep.subr.mxu0 0.0
  %3004 = vmatpush1.msra.mxu0 0.0
  %3005 = vmatprep.subr.mxu0 0.0
  %3006 = vmatpush1.msra.mxu0 0.0
  %3007 = vmatprep.subr.mxu0 0.0
  %3008 = vmatpush1.msra.mxu0 %v75
  %3009 = vmatprep.subr.mxu0 0.0
  %3010 = vmatpush1.msra.mxu0 %v74
  %3011 = vmatprep.subr.mxu0 0.0
  %3012 = vmatpush1.msra.mxu0 %v73
  %3013 = vmatprep.subr.mxu0 0.0
  %3014 = vmatpush1.msra.mxu0 %v72
  %3015 = vmatprep.subr.mxu0 0.0
  %3016 = vmatpush1.msra.mxu0 %v71
  %3017 = vmatprep.subr.mxu0 0.0
  %3018 = vmatpush1.msra.mxu0 %v70
  %3019 = vmatprep.subr.mxu0 0.0
  %3020 = vmatpush1.msra.mxu0 %v69
  %3021 = vmatprep.subr.mxu0 0.0
  %3022 = vmatpush1.msra.mxu0 %v68
  %3023 = vmatprep.subr.mxu0 0.0
  %3024 = vmatpush1.msra.mxu0 %v67
  %3025 = vmatprep.subr.mxu0 0.0
  %3026 = vmatpush1.msra.mxu0 %v66
  %3027 = vmatprep.subr.mxu0 0.0
  %3028 = vmatpush1.msra.mxu0 %v65
  %3029 = vmatprep.subr.mxu0 0.0
  %3030 = vmatpush1.msra.mxu0 %v64
  %3031 = vmatprep.subr.mxu0 0.0
  %3032 = vmatpush2.msra.mxu0 0.0
  %3033 = vmatprep.subr.mxu0 0.0
  %3034 = vmatpush2.msra.mxu0 0.0
  %3035 = vmatprep.subr.mxu0 0.0
  %3036 = vmatpush2.msra.mxu0 0.0
  %3037 = vmatprep.subr.mxu0 0.0
  %3038 = vmatpush2.msra.mxu0 0.0
  %3039 = vmatprep.subr.mxu0 0.0
  %3040 = vmatpush2.msra.mxu0 0.0
  %3041 = vmatprep.subr.mxu0 0.0
  %3042 = vmatpush2.msra.mxu0 0.0
  %3043 = vmatprep.subr.mxu0 0.0
  %3044 = vmatpush2.msra.mxu0 0.0
  %3045 = vmatprep.subr.mxu0 0.0
  %3046 = vmatpush2.msra.mxu0 0.0
  %3047 = vmatprep.subr.mxu0 0.0
  %3048 = vmatpush2.msra.mxu0 0.0
  %3049 = vmatprep.subr.mxu0 0.0
  %3050 = vmatpush2.msra.mxu0 0.0
  %3051 = vmatprep.subr.mxu0 0.0
  %3052 = vmatpush2.msra.mxu0 0.0
  %3053 = vmatprep.subr.mxu0 0.0
  %3054 = vmatpush2.msra.mxu0 0.0
  %3055 = vmatprep.subr.mxu0 0.0
  %3056 = vmatpush2.msra.mxu0 0.0
  %3057 = vmatprep.subr.mxu0 0.0
  %3058 = vmatpush2.msra.mxu0 0.0
  %3059 = vmatprep.subr.mxu0 0.0
  %3060 = vmatpush2.msra.mxu0 0.0
  %3061 = vmatprep.subr.mxu0 0.0
  %3062 = vmatpush2.msra.mxu0 0.0
  %3063 = vmatprep.mubr.f32.mxu0 0.0
  %3064 = vmatmul.mubr.f32.gmra.mxu0 %v2997
  %v3065 = vpop.f32.mrf.mxu0
  %v3066 = vadd.f32 %v93, %v3065
  %v3067 = vpop.f32.mrf.mxu0
  %3068 = vdwg.mxu0
  %v3069 = vxor.u32 %v3066, 2147483648
  %v3070 = vmul.f32 %v3069, 1.442695
  %v3071 = vpow.pop %v3070
  %v3072 = vadd.f32 %v3071, 1.0
  %v3073 = vrcp.pop %v3072
  %v3074 = vmul.f32 1.0, %v3073
  %v3075 = vtanh.pop %v3066
  %v3076 = vmul.f32 %v3074, %v2583
  %3078 = vrot.lane.b32.xlu0 %v3075, 64
  %v3079 = vpop.permute.xlu0 %3078
  %v3081 = vmul.f32 %v3074, %v3079
  %3083 = vrot.lane.b32.xlu0 %v3081, 32
  %v3084 = vpop.permute.xlu0 %3083
  %v3086 = vadd.f32 %v3076, %v3084
  %v3087 = vtanh.pop %v3086
  %3089 = vrot.lane.b32.xlu0 %v3087, 64
  %v3090 = vpop.permute.xlu0 %3089
  %v3092 = vmul.f32 %v3074, %v3090
  %3094 = vrot.lane.b32.xlu0 %v3092, 32
  %v3095 = vpop.permute.xlu0 %3094
  %v3097 = vlaneseq
  %v3098 = vshrl.u32 %v3097, 7
  %v3099 = vsub.s32 %v1084, %v3098
  %v3100 = vrot.slane %v2844, %v3099
  %v3101 = vlaneseq
  %v3102 = vshrl.u32 %v3101, 7
  %v3103 = vsub.s32 %v1084, %v3102
  %v3104 = vrot.slane %v2849, %v3103
  %v3105 = vsel %vm772, %v3104, %v3100
  %3108 = vrot.lane.b32.xlu0 %v2877, 40
  %v3109 = vpop.permute.xlu0 %3108
  %v3111 = vsel %vm113, %v3095, %v3105
  %v3112 = vsel %vm578, %v3111, %v3109
  %v3114 = vsel %vm580, %v3112, 0
  %3116 = vmatprep.subr.mxu0 0.0
  %3117 = vmatpush1.msra.mxu0 0.0
  %3118 = vmatprep.subr.mxu0 0.0
  %3119 = vmatpush1.msra.mxu0 0.0
  %3120 = vmatprep.subr.mxu0 0.0
  %3121 = vmatpush1.msra.mxu0 0.0
  %3122 = vmatprep.subr.mxu0 0.0
  %3123 = vmatpush1.msra.mxu0 0.0
  %3124 = vmatprep.subr.mxu0 0.0
  %3125 = vmatpush1.msra.mxu0 0.0
  %3126 = vmatprep.subr.mxu0 0.0
  %3127 = vmatpush1.msra.mxu0 0.0
  %3128 = vmatprep.subr.mxu0 0.0
  %3129 = vmatpush1.msra.mxu0 0.0
  %3130 = vmatprep.subr.mxu0 0.0
  %3131 = vmatpush1.msra.mxu0 0.0
  %3132 = vmatprep.subr.mxu0 0.0
  %3133 = vmatpush1.msra.mxu0 0.0
  %3134 = vmatprep.subr.mxu0 0.0
  %3135 = vmatpush1.msra.mxu0 0.0
  %3136 = vmatprep.subr.mxu0 %v63
  %3137 = vmatpush1.msra.mxu0 %v62
  %3138 = vmatprep.subr.mxu0 %v61
  %3139 = vmatpush1.msra.mxu0 %v60
  %3140 = vmatprep.subr.mxu0 %v59
  %3141 = vmatpush1.msra.mxu0 %v58
  %3142 = vmatprep.subr.mxu0 %v57
  %3143 = vmatpush1.msra.mxu0 %v56
  %3144 = vmatprep.subr.mxu0 %v55
  %3145 = vmatpush1.msra.mxu0 %v54
  %3146 = vmatprep.subr.mxu0 %v53
  %3147 = vmatpush1.msra.mxu0 %v52
  %3148 = vmatprep.subr.mxu0 0.0
  %3149 = vmatpush2.msra.mxu0 0.0
  %3150 = vmatprep.subr.mxu0 0.0
  %3151 = vmatpush2.msra.mxu0 0.0
  %3152 = vmatprep.subr.mxu0 0.0
  %3153 = vmatpush2.msra.mxu0 0.0
  %3154 = vmatprep.subr.mxu0 0.0
  %3155 = vmatpush2.msra.mxu0 0.0
  %3156 = vmatprep.subr.mxu0 0.0
  %3157 = vmatpush2.msra.mxu0 0.0
  %3158 = vmatprep.subr.mxu0 0.0
  %3159 = vmatpush2.msra.mxu0 0.0
  %3160 = vmatprep.subr.mxu0 0.0
  %3161 = vmatpush2.msra.mxu0 0.0
  %3162 = vmatprep.subr.mxu0 0.0
  %3163 = vmatpush2.msra.mxu0 0.0
  %3164 = vmatprep.subr.mxu0 0.0
  %3165 = vmatpush2.msra.mxu0 0.0
  %3166 = vmatprep.subr.mxu0 0.0
  %3167 = vmatpush2.msra.mxu0 0.0
  %3168 = vmatprep.subr.mxu0 0.0
  %3169 = vmatpush2.msra.mxu0 0.0
  %3170 = vmatprep.subr.mxu0 0.0
  %3171 = vmatpush2.msra.mxu0 0.0
  %3172 = vmatprep.subr.mxu0 0.0
  %3173 = vmatpush2.msra.mxu0 0.0
  %3174 = vmatprep.subr.mxu0 0.0
  %3175 = vmatpush2.msra.mxu0 0.0
  %3176 = vmatprep.subr.mxu0 0.0
  %3177 = vmatpush2.msra.mxu0 0.0
  %3178 = vmatprep.subr.mxu0 0.0
  %3179 = vmatpush2.msra.mxu0 0.0
  %3180 = vmatprep.mubr.f32.mxu0 0.0
  %3181 = vmatmul.mubr.f32.gmra.mxu0 %v3114
  %v3182 = vpop.f32.mrf.mxu0
  %v3183 = vadd.f32 0.0, %v3182
  %v3184 = vpop.f32.mrf.mxu0
  %v3185 = vadd.f32 0.0, %v3184
  %3186 = vdwg.mxu0
  %3188 = vrot.lane.b32.xlu0 %v3183, 96
  %v3189 = vpop.permute.xlu0 %3188
  %3191 = vrot.lane.b32.xlu0 %v3183, 64
  %v3192 = vpop.permute.xlu0 %3191
  %3194 = vrot.lane.b32.xlu0 %v3183, 32
  %v3195 = vpop.permute.xlu0 %3194
  %3198 = vrot.lane.b32.xlu0 %v3185, 96
  %v3199 = vpop.permute.xlu0 %3198
  %3201 = vrot.lane.b32.xlu0 %v3185, 64
  %v3202 = vpop.permute.xlu0 %3201
  %3204 = vrot.lane.b32.xlu0 %v3185, 32
  %v3205 = vpop.permute.xlu0 %3204
  %v3207 = vcombine.low %v3183, %v3192
  %v3209 = vunpack.c.l.s4 1983009808
  %v3210 = vunpack.c.0.s8 %v3209
  %v3211 = vlaneseq
  %v3212 = vshrl.u32 %v3211, 7
  %v3213 = vsub.s32 %v3210, %v3212
  %v3214 = vrot.slane %v3207, %v3213
  %v3215 = vcombine.low %v3189, %v3195
  %v3217 = vunpack.c.l.s4 1983009808
  %v3218 = vunpack.c.0.s8 %v3217
  %v3219 = vlaneseq
  %v3220 = vshrl.u32 %v3219, 7
  %v3221 = vsub.s32 %v3218, %v3220
  %v3222 = vrot.slane %v3215, %v3221
  %v3223 = vcombine.low %v3185, %v3202
  %v3225 = vunpack.c.l.s4 1983009808
  %v3226 = vunpack.c.0.s8 %v3225
  %v3227 = vlaneseq
  %v3228 = vshrl.u32 %v3227, 7
  %v3229 = vsub.s32 %v3226, %v3228
  %v3230 = vrot.slane %v3223, %v3229
  %v3231 = vcombine.low %v3199, %v3205
  %v3233 = vunpack.c.l.s4 1983009808
  %v3234 = vunpack.c.0.s8 %v3233
  %v3235 = vlaneseq
  %v3236 = vshrl.u32 %v3235, 7
  %v3237 = vsub.s32 %v3234, %v3236
  %v3238 = vrot.slane %v3231, %v3237
  %v3239 = vcombine.low %v3214, %v3222
  %v3241 = vunpack.c.l.s4 1934713408
  %v3242 = vunpack.c.0.s8 %v3241
  %v3243 = vlaneseq
  %v3244 = vshrl.u32 %v3243, 7
  %v3245 = vsub.s32 %v3242, %v3244
  %v3246 = vrot.slane %v3239, %v3245
  %v3247 = vcombine.low %v3230, %v3238
  %v3249 = vunpack.c.l.s4 1934713408
  %v3250 = vunpack.c.0.s8 %v3249
  %v3251 = vlaneseq
  %v3252 = vshrl.u32 %v3251, 7
  %v3253 = vsub.s32 %v3250, %v3252
  %v3254 = vrot.slane %v3247, %v3253
  %v3255 = vcombine.low %v3246, %v3254
  %v3256 = vcombine.high %v3246, %v3254
  %v3257 = vadd.f32 %v3255, %v187
  %v3258 = vadd.f32 %v3256, %v192
  %v3259 = vtanh.pop %v3257
  %v3260 = vtanh.pop %v3258
  %v3261 = vmul.f32 %v3259, %v107
  %v3262 = vmul.f32 %v3260, %v107
  %v3263 = vsel %vm113, %v3261, 0.0
  %3264 = vadd.xlane.f32.xlu0 %v3263
  %v3265 = vpop.xlane.xlu0 %3264
  %v3266 = vsel %vm113, %v3262, 0.0
  %3267 = vadd.xlane.f32.xlu0 %v3266
  %v3268 = vpop.xlane.xlu0 %3267
  %v3269 = vadd.f32 %v3265, %v744
  %v3270 = vadd.f32 %v3268, %v751
  %3273 = vset.pattern.permute.xlu0 0
  %3274 = vperm.xlu0 %3273, %v3269
  %v3275 = vpop.permute.xlu0 %3274
  %3276 = vset.pattern.permute.xlu0 0
  %3277 = vperm.xlu0 %3276, %v3270
  %v3278 = vpop.permute.xlu0 %3277
  %v3279 = vlaneseq
  %v3280 = vshrl.u32 %v3279, 7
  %v3281 = vsub.s32 %v462, %v3280
  %v3282 = vrot.slane %v3275, %v3281
  %v3283 = vlaneseq
  %v3284 = vshrl.u32 %v3283, 7
  %v3285 = vsub.s32 %v462, %v3284
  %v3286 = vrot.slane %v3278, %v3285
  %v3287 = vsel %vm772, %v3286, %v3282
  %v3289 = vsel %vm775, %v3287, -inf
  %3290 = vmax.xlane.f32.xlu0 %v3289
  %v3291 = vpop.xlane.xlu0 %3290
  %v3293 = vlaneseq
  %v3294 = vshrl.u32 %v3293, 7
  %v3295 = vsub.s32 0, %v3294
  %v3296 = vrot.slane %v3291, %v3295
  %v3297 = vlaneseq
  %v3298 = vshrl.u32 %v3297, 7
  %v3299 = vsub.s32 1, %v3298
  %v3300 = vrot.slane %v3291, %v3299
  %v3303 = vsub.f32 %v3269, %v3296
  %v3304 = vsub.f32 %v3270, %v3300
  %v3305 = vmul.f32 %v3303, 1.442695
  %v3306 = vpow.pop %v3305
  %v3307 = vmul.f32 %v3304, 1.442695
  %v3308 = vpow.pop %v3307
  %3311 = vset.pattern.permute.xlu0 0
  %3312 = vperm.xlu0 %3311, %v3306
  %v3313 = vpop.permute.xlu0 %3312
  %3314 = vset.pattern.permute.xlu0 0
  %3315 = vperm.xlu0 %3314, %v3308
  %v3316 = vpop.permute.xlu0 %3315
  %v3317 = vlaneseq
  %v3318 = vshrl.u32 %v3317, 7
  %v3319 = vsub.s32 %v462, %v3318
  %v3320 = vrot.slane %v3313, %v3319
  %v3321 = vlaneseq
  %v3322 = vshrl.u32 %v3321, 7
  %v3323 = vsub.s32 %v462, %v3322
  %v3324 = vrot.slane %v3316, %v3323
  %v3325 = vsel %vm772, %v3324, %v3320
  %v3327 = vsel %vm775, %v3325, 0.0
  %3328 = vadd.xlane.f32.xlu0 %v3327
  %v3329 = vpop.xlane.xlu0 %3328
  %v3330 = vrcp.pop %v3329
  %v3332 = vlaneseq
  %v3333 = vshrl.u32 %v3332, 7
  %v3334 = vsub.s32 0, %v3333
  %v3335 = vrot.slane %v3330, %v3334
  %v3336 = vlaneseq
  %v3337 = vshrl.u32 %v3336, 7
  %v3338 = vsub.s32 1, %v3337
  %v3339 = vrot.slane %v3330, %v3338
  %v3342 = vmul.f32 %v3306, %v3335
  %v3343 = vmul.f32 %v3308, %v3339
  %3345 = vset.pattern.permute.xlu0 0
  %3346 = vperm.xlu0 %3345, %v3342
  %v3347 = vpop.permute.xlu0 %3346
  %3350 = vset.pattern.permute.xlu0 0
  %3351 = vperm.xlu0 %3350, %v3343
  %v3352 = vpop.permute.xlu0 %3351
  %v3354 = vmul.f32 %v3347, %v49
  %v3355 = vmul.f32 %v3352, %v50
  %v3356 = vsel %vm113, %v3354, 0.0
  %v3357 = vrot.slane %v3356, 4
  %v3358 = vadd.f32 %v3356, %v3357
  %v3359 = vrot.slane %v3358, 2
  %v3360 = vadd.f32 %v3358, %v3359
  %v3361 = vrot.slane %v3360, 1
  %v3362 = vadd.f32 %v3360, %v3361
  %v3363 = vsel %vm113, %v3355, 0.0
  %v3364 = vrot.slane %v3363, 4
  %v3365 = vadd.f32 %v3363, %v3364
  %v3366 = vrot.slane %v3365, 2
  %v3367 = vadd.f32 %v3365, %v3366
  %v3368 = vrot.slane %v3367, 1
  %v3369 = vadd.f32 %v3367, %v3368
  %v3370 = vlaneseq
  %v3371 = vshrl.u32 %v3370, 7
  %v3372 = vsub.s32 %v462, %v3371
  %v3373 = vrot.slane %v3347, %v3372
  %v3374 = vlaneseq
  %v3375 = vshrl.u32 %v3374, 7
  %v3376 = vsub.s32 %v462, %v3375
  %v3377 = vrot.slane %v3352, %v3376
  %v3378 = vsel %vm772, %v3377, %v3373
  %v3380 = vadd.f32 %v2877, %v3378
  %v3383 = vsel %vm772, %v3369, %v3362
  %3384 = vrot.lane.b32.xlu0 %v3383, 32
  %v3385 = vpop.permute.xlu0 %3384
  %3387 = vrot.lane.b32.xlu0 %v2985, 96
  %v3388 = vpop.permute.xlu0 %3387
  %v3390 = vsel %vm113, %v3095, %v3385
  %v3391 = vsel %vm466, %v3390, %v3388
  %v3393 = vsel %vm468, %v3391, 0
  %3395 = vmatprep.subr.mxu0 0.0
  %3396 = vmatpush1.msra.mxu0 0.0
  %3397 = vmatprep.subr.mxu0 0.0
  %3398 = vmatpush1.msra.mxu0 0.0
  %3399 = vmatprep.subr.mxu0 0.0
  %3400 = vmatpush1.msra.mxu0 0.0
  %3401 = vmatprep.subr.mxu0 0.0
  %3402 = vmatpush1.msra.mxu0 0.0
  %3403 = vmatprep.subr.mxu0 0.0
  %3404 = vmatpush1.msra.mxu0 %v87
  %3405 = vmatprep.subr.mxu0 0.0
  %3406 = vmatpush1.msra.mxu0 %v86
  %3407 = vmatprep.subr.mxu0 0.0
  %3408 = vmatpush1.msra.mxu0 %v85
  %3409 = vmatprep.subr.mxu0 0.0
  %3410 = vmatpush1.msra.mxu0 %v84
  %3411 = vmatprep.subr.mxu0 0.0
  %3412 = vmatpush1.msra.mxu0 %v83
  %3413 = vmatprep.subr.mxu0 0.0
  %3414 = vmatpush1.msra.mxu0 %v82
  %3415 = vmatprep.subr.mxu0 0.0
  %3416 = vmatpush1.msra.mxu0 %v81
  %3417 = vmatprep.subr.mxu0 0.0
  %3418 = vmatpush1.msra.mxu0 %v80
  %3419 = vmatprep.subr.mxu0 0.0
  %3420 = vmatpush1.msra.mxu0 %v79
  %3421 = vmatprep.subr.mxu0 0.0
  %3422 = vmatpush1.msra.mxu0 %v78
  %3423 = vmatprep.subr.mxu0 0.0
  %3424 = vmatpush1.msra.mxu0 %v77
  %3425 = vmatprep.subr.mxu0 0.0
  %3426 = vmatpush1.msra.mxu0 %v76
  %3427 = vmatprep.subr.mxu0 0.0
  %3428 = vmatpush2.msra.mxu0 0.0
  %3429 = vmatprep.subr.mxu0 0.0
  %3430 = vmatpush2.msra.mxu0 0.0
  %3431 = vmatprep.subr.mxu0 0.0
  %3432 = vmatpush2.msra.mxu0 0.0
  %3433 = vmatprep.subr.mxu0 0.0
  %3434 = vmatpush2.msra.mxu0 0.0
  %3435 = vmatprep.subr.mxu0 0.0
  %3436 = vmatpush2.msra.mxu0 0.0
  %3437 = vmatprep.subr.mxu0 0.0
  %3438 = vmatpush2.msra.mxu0 0.0
  %3439 = vmatprep.subr.mxu0 0.0
  %3440 = vmatpush2.msra.mxu0 0.0
  %3441 = vmatprep.subr.mxu0 0.0
  %3442 = vmatpush2.msra.mxu0 0.0
  %3443 = vmatprep.subr.mxu0 0.0
  %3444 = vmatpush2.msra.mxu0 0.0
  %3445 = vmatprep.subr.mxu0 0.0
  %3446 = vmatpush2.msra.mxu0 0.0
  %3447 = vmatprep.subr.mxu0 0.0
  %3448 = vmatpush2.msra.mxu0 0.0
  %3449 = vmatprep.subr.mxu0 0.0
  %3450 = vmatpush2.msra.mxu0 0.0
  %3451 = vmatprep.subr.mxu0 0.0
  %3452 = vmatpush2.msra.mxu0 0.0
  %3453 = vmatprep.subr.mxu0 0.0
  %3454 = vmatpush2.msra.mxu0 0.0
  %3455 = vmatprep.subr.mxu0 0.0
  %3456 = vmatpush2.msra.mxu0 0.0
  %3457 = vmatprep.subr.mxu0 0.0
  %3458 = vmatpush2.msra.mxu0 0.0
  %3459 = vmatprep.mubr.f32.mxu0 0.0
  %3460 = vmatmul.mubr.f32.gmra.mxu0 %v3393
  %v3461 = vpop.f32.mrf.mxu0
  %v3462 = vadd.f32 %v100, %v3461
  %v3463 = vpop.f32.mrf.mxu0
  %3464 = vdwg.mxu0
  %v3465 = vxor.u32 %v3462, 2147483648
  %v3466 = vmul.f32 %v3465, 1.442695
  %v3467 = vpow.pop %v3466
  %v3468 = vadd.f32 %v3467, 1.0
  %v3469 = vrcp.pop %v3468
  %v3470 = vmul.f32 1.0, %v3469
  %v3471 = vtanh.pop %v3462
  %v3472 = vmul.f32 %v3470, %v2979
  %3474 = vrot.lane.b32.xlu0 %v3471, 64
  %v3475 = vpop.permute.xlu0 %3474
  %v3477 = vmul.f32 %v3470, %v3475
  %3479 = vrot.lane.b32.xlu0 %v3477, 32
  %v3480 = vpop.permute.xlu0 %3479
  %v3482 = vadd.f32 %v3472, %v3480
  %v3483 = vtanh.pop %v3482
  %3485 = vrot.lane.b32.xlu0 %v3483, 64
  %v3486 = vpop.permute.xlu0 %3485
  %v3488 = vmul.f32 %v3470, %v3486
  %3490 = vrot.lane.b32.xlu0 %v3488, 32
  %v3491 = vpop.permute.xlu0 %3490
  %v3493 = vsel %vm113, %v3491, %v3385
  %3494 = vrot.lane.b32.xlu0 %v3092, 96
  %v3495 = vpop.permute.xlu0 %3494
  %v3497 = vsel %vm113, %v450, %v3385
  %v3498 = vsel %vm466, %v3497, %v3495
  %v3500 = vsel %vm468, %v3498, 0
  %3502 = vmatprep.subr.mxu0 0.0
  %3503 = vmatpush1.msra.mxu0 0.0
  %3504 = vmatprep.subr.mxu0 0.0
  %3505 = vmatpush1.msra.mxu0 0.0
  %3506 = vmatprep.subr.mxu0 0.0
  %3507 = vmatpush1.msra.mxu0 0.0
  %3508 = vmatprep.subr.mxu0 0.0
  %3509 = vmatpush1.msra.mxu0 0.0
  %3510 = vmatprep.subr.mxu0 0.0
  %3511 = vmatpush1.msra.mxu0 %v75
  %3512 = vmatprep.subr.mxu0 0.0
  %3513 = vmatpush1.msra.mxu0 %v74
  %3514 = vmatprep.subr.mxu0 0.0
  %3515 = vmatpush1.msra.mxu0 %v73
  %3516 = vmatprep.subr.mxu0 0.0
  %3517 = vmatpush1.msra.mxu0 %v72
  %3518 = vmatprep.subr.mxu0 0.0
  %3519 = vmatpush1.msra.mxu0 %v71
  %3520 = vmatprep.subr.mxu0 0.0
  %3521 = vmatpush1.msra.mxu0 %v70
  %3522 = vmatprep.subr.mxu0 0.0
  %3523 = vmatpush1.msra.mxu0 %v69
  %3524 = vmatprep.subr.mxu0 0.0
  %3525 = vmatpush1.msra.mxu0 %v68
  %3526 = vmatprep.subr.mxu0 0.0
  %3527 = vmatpush1.msra.mxu0 %v67
  %3528 = vmatprep.subr.mxu0 0.0
  %3529 = vmatpush1.msra.mxu0 %v66
  %3530 = vmatprep.subr.mxu0 0.0
  %3531 = vmatpush1.msra.mxu0 %v65
  %3532 = vmatprep.subr.mxu0 0.0
  %3533 = vmatpush1.msra.mxu0 %v64
  %3534 = vmatprep.subr.mxu0 0.0
  %3535 = vmatpush2.msra.mxu0 0.0
  %3536 = vmatprep.subr.mxu0 0.0
  %3537 = vmatpush2.msra.mxu0 0.0
  %3538 = vmatprep.subr.mxu0 0.0
  %3539 = vmatpush2.msra.mxu0 0.0
  %3540 = vmatprep.subr.mxu0 0.0
  %3541 = vmatpush2.msra.mxu0 0.0
  %3542 = vmatprep.subr.mxu0 0.0
  %3543 = vmatpush2.msra.mxu0 0.0
  %3544 = vmatprep.subr.mxu0 0.0
  %3545 = vmatpush2.msra.mxu0 0.0
  %3546 = vmatprep.subr.mxu0 0.0
  %3547 = vmatpush2.msra.mxu0 0.0
  %3548 = vmatprep.subr.mxu0 0.0
  %3549 = vmatpush2.msra.mxu0 0.0
  %3550 = vmatprep.subr.mxu0 0.0
  %3551 = vmatpush2.msra.mxu0 0.0
  %3552 = vmatprep.subr.mxu0 0.0
  %3553 = vmatpush2.msra.mxu0 0.0
  %3554 = vmatprep.subr.mxu0 0.0
  %3555 = vmatpush2.msra.mxu0 0.0
  %3556 = vmatprep.subr.mxu0 0.0
  %3557 = vmatpush2.msra.mxu0 0.0
  %3558 = vmatprep.subr.mxu0 0.0
  %3559 = vmatpush2.msra.mxu0 0.0
  %3560 = vmatprep.subr.mxu0 0.0
  %3561 = vmatpush2.msra.mxu0 0.0
  %3562 = vmatprep.subr.mxu0 0.0
  %3563 = vmatpush2.msra.mxu0 0.0
  %3564 = vmatprep.subr.mxu0 0.0
  %3565 = vmatpush2.msra.mxu0 0.0
  %3566 = vmatprep.mubr.f32.mxu0 0.0
  %3567 = vmatmul.mubr.f32.gmra.mxu0 %v3500
  %v3568 = vpop.f32.mrf.mxu0
  %v3569 = vadd.f32 %v93, %v3568
  %v3570 = vpop.f32.mrf.mxu0
  %3571 = vdwg.mxu0
  %v3572 = vxor.u32 %v3569, 2147483648
  %v3573 = vmul.f32 %v3572, 1.442695
  %v3574 = vpow.pop %v3573
  %v3575 = vadd.f32 %v3574, 1.0
  %v3576 = vrcp.pop %v3575
  %v3577 = vmul.f32 1.0, %v3576
  %v3578 = vtanh.pop %v3569
  %v3579 = vmul.f32 %v3577, %v3086
  %3581 = vrot.lane.b32.xlu0 %v3578, 64
  %v3582 = vpop.permute.xlu0 %3581
  %v3584 = vmul.f32 %v3577, %v3582
  %3586 = vrot.lane.b32.xlu0 %v3584, 32
  %v3587 = vpop.permute.xlu0 %3586
  %v3589 = vadd.f32 %v3579, %v3587
  %v3590 = vtanh.pop %v3589
  %3592 = vrot.lane.b32.xlu0 %v3590, 64
  %v3593 = vpop.permute.xlu0 %3592
  %v3595 = vmul.f32 %v3577, %v3593
  %3597 = vrot.lane.b32.xlu0 %v3595, 32
  %v3598 = vpop.permute.xlu0 %3597
  %v3600 = vlaneseq
  %v3601 = vshrl.u32 %v3600, 7
  %v3602 = vsub.s32 %v1084, %v3601
  %v3603 = vrot.slane %v3347, %v3602
  %v3604 = vlaneseq
  %v3605 = vshrl.u32 %v3604, 7
  %v3606 = vsub.s32 %v1084, %v3605
  %v3607 = vrot.slane %v3352, %v3606
  %v3608 = vsel %vm772, %v3607, %v3603
  %3611 = vrot.lane.b32.xlu0 %v3380, 40
  %v3612 = vpop.permute.xlu0 %3611
  %v3614 = vsel %vm113, %v3598, %v3608
  %v3615 = vsel %vm578, %v3614, %v3612
  %v3617 = vsel %vm580, %v3615, 0
  %3619 = vmatprep.subr.mxu0 0.0
  %3620 = vmatpush1.msra.mxu0 0.0
  %3621 = vmatprep.subr.mxu0 0.0
  %3622 = vmatpush1.msra.mxu0 0.0
  %3623 = vmatprep.subr.mxu0 0.0
  %3624 = vmatpush1.msra.mxu0 0.0
  %3625 = vmatprep.subr.mxu0 0.0
  %3626 = vmatpush1.msra.mxu0 0.0
  %3627 = vmatprep.subr.mxu0 0.0
  %3628 = vmatpush1.msra.mxu0 0.0
  %3629 = vmatprep.subr.mxu0 0.0
  %3630 = vmatpush1.msra.mxu0 0.0
  %3631 = vmatprep.subr.mxu0 0.0
  %3632 = vmatpush1.msra.mxu0 0.0
  %3633 = vmatprep.subr.mxu0 0.0
  %3634 = vmatpush1.msra.mxu0 0.0
  %3635 = vmatprep.subr.mxu0 0.0
  %3636 = vmatpush1.msra.mxu0 0.0
  %3637 = vmatprep.subr.mxu0 0.0
  %3638 = vmatpush1.msra.mxu0 0.0
  %3639 = vmatprep.subr.mxu0 %v63
  %3640 = vmatpush1.msra.mxu0 %v62
  %3641 = vmatprep.subr.mxu0 %v61
  %3642 = vmatpush1.msra.mxu0 %v60
  %3643 = vmatprep.subr.mxu0 %v59
  %3644 = vmatpush1.msra.mxu0 %v58
  %3645 = vmatprep.subr.mxu0 %v57
  %3646 = vmatpush1.msra.mxu0 %v56
  %3647 = vmatprep.subr.mxu0 %v55
  %3648 = vmatpush1.msra.mxu0 %v54
  %3649 = vmatprep.subr.mxu0 %v53
  %3650 = vmatpush1.msra.mxu0 %v52
  %3651 = vmatprep.subr.mxu0 0.0
  %3652 = vmatpush2.msra.mxu0 0.0
  %3653 = vmatprep.subr.mxu0 0.0
  %3654 = vmatpush2.msra.mxu0 0.0
  %3655 = vmatprep.subr.mxu0 0.0
  %3656 = vmatpush2.msra.mxu0 0.0
  %3657 = vmatprep.subr.mxu0 0.0
  %3658 = vmatpush2.msra.mxu0 0.0
  %3659 = vmatprep.subr.mxu0 0.0
  %3660 = vmatpush2.msra.mxu0 0.0
  %3661 = vmatprep.subr.mxu0 0.0
  %3662 = vmatpush2.msra.mxu0 0.0
  %3663 = vmatprep.subr.mxu0 0.0
  %3664 = vmatpush2.msra.mxu0 0.0
  %3665 = vmatprep.subr.mxu0 0.0
  %3666 = vmatpush2.msra.mxu0 0.0
  %3667 = vmatprep.subr.mxu0 0.0
  %3668 = vmatpush2.msra.mxu0 0.0
  %3669 = vmatprep.subr.mxu0 0.0
  %3670 = vmatpush2.msra.mxu0 0.0
  %3671 = vmatprep.subr.mxu0 0.0
  %3672 = vmatpush2.msra.mxu0 0.0
  %3673 = vmatprep.subr.mxu0 0.0
  %3674 = vmatpush2.msra.mxu0 0.0
  %3675 = vmatprep.subr.mxu0 0.0
  %3676 = vmatpush2.msra.mxu0 0.0
  %3677 = vmatprep.subr.mxu0 0.0
  %3678 = vmatpush2.msra.mxu0 0.0
  %3679 = vmatprep.subr.mxu0 0.0
  %3680 = vmatpush2.msra.mxu0 0.0
  %3681 = vmatprep.subr.mxu0 0.0
  %3682 = vmatpush2.msra.mxu0 0.0
  %3683 = vmatprep.mubr.f32.mxu0 0.0
  %3684 = vmatmul.mubr.f32.gmra.mxu0 %v3617
  %v3685 = vpop.f32.mrf.mxu0
  %v3686 = vadd.f32 0.0, %v3685
  %v3687 = vpop.f32.mrf.mxu0
  %v3688 = vadd.f32 0.0, %v3687
  %3689 = vdwg.mxu0
  %3691 = vrot.lane.b32.xlu0 %v3686, 96
  %v3692 = vpop.permute.xlu0 %3691
  %3694 = vrot.lane.b32.xlu0 %v3686, 64
  %v3695 = vpop.permute.xlu0 %3694
  %3697 = vrot.lane.b32.xlu0 %v3686, 32
  %v3698 = vpop.permute.xlu0 %3697
  %3701 = vrot.lane.b32.xlu0 %v3688, 96
  %v3702 = vpop.permute.xlu0 %3701
  %3704 = vrot.lane.b32.xlu0 %v3688, 64
  %v3705 = vpop.permute.xlu0 %3704
  %3707 = vrot.lane.b32.xlu0 %v3688, 32
  %v3708 = vpop.permute.xlu0 %3707
  %v3710 = vcombine.low %v3686, %v3695
  %v3712 = vunpack.c.l.s4 1983009808
  %v3713 = vunpack.c.0.s8 %v3712
  %v3714 = vlaneseq
  %v3715 = vshrl.u32 %v3714, 7
  %v3716 = vsub.s32 %v3713, %v3715
  %v3717 = vrot.slane %v3710, %v3716
  %v3718 = vcombine.low %v3692, %v3698
  %v3720 = vunpack.c.l.s4 1983009808
  %v3721 = vunpack.c.0.s8 %v3720
  %v3722 = vlaneseq
  %v3723 = vshrl.u32 %v3722, 7
  %v3724 = vsub.s32 %v3721, %v3723
  %v3725 = vrot.slane %v3718, %v3724
  %v3726 = vcombine.low %v3688, %v3705
  %v3728 = vunpack.c.l.s4 1983009808
  %v3729 = vunpack.c.0.s8 %v3728
  %v3730 = vlaneseq
  %v3731 = vshrl.u32 %v3730, 7
  %v3732 = vsub.s32 %v3729, %v3731
  %v3733 = vrot.slane %v3726, %v3732
  %v3734 = vcombine.low %v3702, %v3708
  %v3736 = vunpack.c.l.s4 1983009808
  %v3737 = vunpack.c.0.s8 %v3736
  %v3738 = vlaneseq
  %v3739 = vshrl.u32 %v3738, 7
  %v3740 = vsub.s32 %v3737, %v3739
  %v3741 = vrot.slane %v3734, %v3740
  %v3742 = vcombine.low %v3717, %v3725
  %v3744 = vunpack.c.l.s4 1934713408
  %v3745 = vunpack.c.0.s8 %v3744
  %v3746 = vlaneseq
  %v3747 = vshrl.u32 %v3746, 7
  %v3748 = vsub.s32 %v3745, %v3747
  %v3749 = vrot.slane %v3742, %v3748
  %v3750 = vcombine.low %v3733, %v3741
  %v3752 = vunpack.c.l.s4 1934713408
  %v3753 = vunpack.c.0.s8 %v3752
  %v3754 = vlaneseq
  %v3755 = vshrl.u32 %v3754, 7
  %v3756 = vsub.s32 %v3753, %v3755
  %v3757 = vrot.slane %v3750, %v3756
  %v3758 = vcombine.low %v3749, %v3757
  %v3759 = vcombine.high %v3749, %v3757
  %v3760 = vadd.f32 %v3758, %v187
  %v3761 = vadd.f32 %v3759, %v192
  %v3762 = vtanh.pop %v3760
  %v3763 = vtanh.pop %v3761
  %v3764 = vmul.f32 %v3762, %v107
  %v3765 = vmul.f32 %v3763, %v107
  %v3766 = vsel %vm113, %v3764, 0.0
  %3767 = vadd.xlane.f32.xlu0 %v3766
  %v3768 = vpop.xlane.xlu0 %3767
  %v3769 = vsel %vm113, %v3765, 0.0
  %3770 = vadd.xlane.f32.xlu0 %v3769
  %v3771 = vpop.xlane.xlu0 %3770
  %v3772 = vadd.f32 %v3768, %v744
  %v3773 = vadd.f32 %v3771, %v751
  %3776 = vset.pattern.permute.xlu0 0
  %3777 = vperm.xlu0 %3776, %v3772
  %v3778 = vpop.permute.xlu0 %3777
  %3779 = vset.pattern.permute.xlu0 0
  %3780 = vperm.xlu0 %3779, %v3773
  %v3781 = vpop.permute.xlu0 %3780
  %v3782 = vlaneseq
  %v3783 = vshrl.u32 %v3782, 7
  %v3784 = vsub.s32 %v462, %v3783
  %v3785 = vrot.slane %v3778, %v3784
  %v3786 = vlaneseq
  %v3787 = vshrl.u32 %v3786, 7
  %v3788 = vsub.s32 %v462, %v3787
  %v3789 = vrot.slane %v3781, %v3788
  %v3790 = vsel %vm772, %v3789, %v3785
  %v3792 = vsel %vm775, %v3790, -inf
  %3793 = vmax.xlane.f32.xlu0 %v3792
  %v3794 = vpop.xlane.xlu0 %3793
  %v3796 = vlaneseq
  %v3797 = vshrl.u32 %v3796, 7
  %v3798 = vsub.s32 0, %v3797
  %v3799 = vrot.slane %v3794, %v3798
  %v3800 = vlaneseq
  %v3801 = vshrl.u32 %v3800, 7
  %v3802 = vsub.s32 1, %v3801
  %v3803 = vrot.slane %v3794, %v3802
  %v3806 = vsub.f32 %v3772, %v3799
  %v3807 = vsub.f32 %v3773, %v3803
  %v3808 = vmul.f32 %v3806, 1.442695
  %v3809 = vpow.pop %v3808
  %v3810 = vmul.f32 %v3807, 1.442695
  %v3811 = vpow.pop %v3810
  %3814 = vset.pattern.permute.xlu0 0
  %3815 = vperm.xlu0 %3814, %v3809
  %v3816 = vpop.permute.xlu0 %3815
  %3817 = vset.pattern.permute.xlu0 0
  %3818 = vperm.xlu0 %3817, %v3811
  %v3819 = vpop.permute.xlu0 %3818
  %v3820 = vlaneseq
  %v3821 = vshrl.u32 %v3820, 7
  %v3822 = vsub.s32 %v462, %v3821
  %v3823 = vrot.slane %v3816, %v3822
  %v3824 = vlaneseq
  %v3825 = vshrl.u32 %v3824, 7
  %v3826 = vsub.s32 %v462, %v3825
  %v3827 = vrot.slane %v3819, %v3826
  %v3828 = vsel %vm772, %v3827, %v3823
  %v3830 = vsel %vm775, %v3828, 0.0
  %3831 = vadd.xlane.f32.xlu0 %v3830
  %v3832 = vpop.xlane.xlu0 %3831
  %v3833 = vrcp.pop %v3832
  %v3835 = vlaneseq
  %v3836 = vshrl.u32 %v3835, 7
  %v3837 = vsub.s32 0, %v3836
  %v3838 = vrot.slane %v3833, %v3837
  %v3839 = vlaneseq
  %v3840 = vshrl.u32 %v3839, 7
  %v3841 = vsub.s32 1, %v3840
  %v3842 = vrot.slane %v3833, %v3841
  %v3845 = vmul.f32 %v3809, %v3838
  %v3846 = vmul.f32 %v3811, %v3842
  %3848 = vset.pattern.permute.xlu0 0
  %3849 = vperm.xlu0 %3848, %v3845
  %v3850 = vpop.permute.xlu0 %3849
  %3853 = vset.pattern.permute.xlu0 0
  %3854 = vperm.xlu0 %3853, %v3846
  %v3855 = vpop.permute.xlu0 %3854
  %v3857 = vmul.f32 %v3850, %v49
  %v3858 = vmul.f32 %v3855, %v50
  %v3859 = vsel %vm113, %v3857, 0.0
  %v3860 = vrot.slane %v3859, 4
  %v3861 = vadd.f32 %v3859, %v3860
  %v3862 = vrot.slane %v3861, 2
  %v3863 = vadd.f32 %v3861, %v3862
  %v3864 = vrot.slane %v3863, 1
  %v3865 = vadd.f32 %v3863, %v3864
  %v3866 = vsel %vm113, %v3858, 0.0
  %v3867 = vrot.slane %v3866, 4
  %v3868 = vadd.f32 %v3866, %v3867
  %v3869 = vrot.slane %v3868, 2
  %v3870 = vadd.f32 %v3868, %v3869
  %v3871 = vrot.slane %v3870, 1
  %v3872 = vadd.f32 %v3870, %v3871
  %v3873 = vlaneseq
  %v3874 = vshrl.u32 %v3873, 7
  %v3875 = vsub.s32 %v462, %v3874
  %v3876 = vrot.slane %v3850, %v3875
  %v3877 = vlaneseq
  %v3878 = vshrl.u32 %v3877, 7
  %v3879 = vsub.s32 %v462, %v3878
  %v3880 = vrot.slane %v3855, %v3879
  %v3881 = vsel %vm772, %v3880, %v3876
  %v3883 = vadd.f32 %v3380, %v3881
  %v3886 = vsel %vm772, %v3872, %v3865
  %3887 = vrot.lane.b32.xlu0 %v3886, 32
  %v3888 = vpop.permute.xlu0 %3887
  %3890 = vrot.lane.b32.xlu0 %v3488, 96
  %v3891 = vpop.permute.xlu0 %3890
  %v3893 = vsel %vm113, %v3598, %v3888
  %v3894 = vsel %vm466, %v3893, %v3891
  %v3896 = vsel %vm468, %v3894, 0
  %3898 = vmatprep.subr.mxu0 0.0
  %3899 = vmatpush1.msra.mxu0 0.0
  %3900 = vmatprep.subr.mxu0 0.0
  %3901 = vmatpush1.msra.mxu0 0.0
  %3902 = vmatprep.subr.mxu0 0.0
  %3903 = vmatpush1.msra.mxu0 0.0
  %3904 = vmatprep.subr.mxu0 0.0
  %3905 = vmatpush1.msra.mxu0 0.0
  %3906 = vmatprep.subr.mxu0 0.0
  %3907 = vmatpush1.msra.mxu0 %v87
  %3908 = vmatprep.subr.mxu0 0.0
  %3909 = vmatpush1.msra.mxu0 %v86
  %3910 = vmatprep.subr.mxu0 0.0
  %3911 = vmatpush1.msra.mxu0 %v85
  %3912 = vmatprep.subr.mxu0 0.0
  %3913 = vmatpush1.msra.mxu0 %v84
  %3914 = vmatprep.subr.mxu0 0.0
  %3915 = vmatpush1.msra.mxu0 %v83
  %3916 = vmatprep.subr.mxu0 0.0
  %3917 = vmatpush1.msra.mxu0 %v82
  %3918 = vmatprep.subr.mxu0 0.0
  %3919 = vmatpush1.msra.mxu0 %v81
  %3920 = vmatprep.subr.mxu0 0.0
  %3921 = vmatpush1.msra.mxu0 %v80
  %3922 = vmatprep.subr.mxu0 0.0
  %3923 = vmatpush1.msra.mxu0 %v79
  %3924 = vmatprep.subr.mxu0 0.0
  %3925 = vmatpush1.msra.mxu0 %v78
  %3926 = vmatprep.subr.mxu0 0.0
  %3927 = vmatpush1.msra.mxu0 %v77
  %3928 = vmatprep.subr.mxu0 0.0
  %3929 = vmatpush1.msra.mxu0 %v76
  %3930 = vmatprep.subr.mxu0 0.0
  %3931 = vmatpush2.msra.mxu0 0.0
  %3932 = vmatprep.subr.mxu0 0.0
  %3933 = vmatpush2.msra.mxu0 0.0
  %3934 = vmatprep.subr.mxu0 0.0
  %3935 = vmatpush2.msra.mxu0 0.0
  %3936 = vmatprep.subr.mxu0 0.0
  %3937 = vmatpush2.msra.mxu0 0.0
  %3938 = vmatprep.subr.mxu0 0.0
  %3939 = vmatpush2.msra.mxu0 0.0
  %3940 = vmatprep.subr.mxu0 0.0
  %3941 = vmatpush2.msra.mxu0 0.0
  %3942 = vmatprep.subr.mxu0 0.0
  %3943 = vmatpush2.msra.mxu0 0.0
  %3944 = vmatprep.subr.mxu0 0.0
  %3945 = vmatpush2.msra.mxu0 0.0
  %3946 = vmatprep.subr.mxu0 0.0
  %3947 = vmatpush2.msra.mxu0 0.0
  %3948 = vmatprep.subr.mxu0 0.0
  %3949 = vmatpush2.msra.mxu0 0.0
  %3950 = vmatprep.subr.mxu0 0.0
  %3951 = vmatpush2.msra.mxu0 0.0
  %3952 = vmatprep.subr.mxu0 0.0
  %3953 = vmatpush2.msra.mxu0 0.0
  %3954 = vmatprep.subr.mxu0 0.0
  %3955 = vmatpush2.msra.mxu0 0.0
  %3956 = vmatprep.subr.mxu0 0.0
  %3957 = vmatpush2.msra.mxu0 0.0
  %3958 = vmatprep.subr.mxu0 0.0
  %3959 = vmatpush2.msra.mxu0 0.0
  %3960 = vmatprep.subr.mxu0 0.0
  %3961 = vmatpush2.msra.mxu0 0.0
  %3962 = vmatprep.mubr.f32.mxu0 0.0
  %3963 = vmatmul.mubr.f32.gmra.mxu0 %v3896
  %v3964 = vpop.f32.mrf.mxu0
  %v3965 = vadd.f32 %v100, %v3964
  %v3966 = vpop.f32.mrf.mxu0
  %3967 = vdwg.mxu0
  %v3968 = vxor.u32 %v3965, 2147483648
  %v3969 = vmul.f32 %v3968, 1.442695
  %v3970 = vpow.pop %v3969
  %v3971 = vadd.f32 %v3970, 1.0
  %v3972 = vrcp.pop %v3971
  %v3973 = vmul.f32 1.0, %v3972
  %v3974 = vtanh.pop %v3965
  %v3975 = vmul.f32 %v3973, %v3482
  %3977 = vrot.lane.b32.xlu0 %v3974, 64
  %v3978 = vpop.permute.xlu0 %3977
  %v3980 = vmul.f32 %v3973, %v3978
  %3982 = vrot.lane.b32.xlu0 %v3980, 32
  %v3983 = vpop.permute.xlu0 %3982
  %v3985 = vadd.f32 %v3975, %v3983
  %v3986 = vtanh.pop %v3985
  %3988 = vrot.lane.b32.xlu0 %v3986, 64
  %v3989 = vpop.permute.xlu0 %3988
  %v3991 = vmul.f32 %v3973, %v3989
  %3993 = vrot.lane.b32.xlu0 %v3991, 32
  %v3994 = vpop.permute.xlu0 %3993
  %v3996 = vsel %vm113, %v3994, %v3888
  %3997 = vrot.lane.b32.xlu0 %v3595, 96
  %v3998 = vpop.permute.xlu0 %3997
  %v4000 = vsel %vm113, %v452, %v3888
  %v4001 = vsel %vm466, %v4000, %v3998
  %v4003 = vsel %vm468, %v4001, 0
  %4005 = vmatprep.subr.mxu0 0.0
  %4006 = vmatpush1.msra.mxu0 0.0
  %4007 = vmatprep.subr.mxu0 0.0
  %4008 = vmatpush1.msra.mxu0 0.0
  %4009 = vmatprep.subr.mxu0 0.0
  %4010 = vmatpush1.msra.mxu0 0.0
  %4011 = vmatprep.subr.mxu0 0.0
  %4012 = vmatpush1.msra.mxu0 0.0
  %4013 = vmatprep.subr.mxu0 0.0
  %4014 = vmatpush1.msra.mxu0 %v75
  %4015 = vmatprep.subr.mxu0 0.0
  %4016 = vmatpush1.msra.mxu0 %v74
  %4017 = vmatprep.subr.mxu0 0.0
  %4018 = vmatpush1.msra.mxu0 %v73
  %4019 = vmatprep.subr.mxu0 0.0
  %4020 = vmatpush1.msra.mxu0 %v72
  %4021 = vmatprep.subr.mxu0 0.0
  %4022 = vmatpush1.msra.mxu0 %v71
  %4023 = vmatprep.subr.mxu0 0.0
  %4024 = vmatpush1.msra.mxu0 %v70
  %4025 = vmatprep.subr.mxu0 0.0
  %4026 = vmatpush1.msra.mxu0 %v69
  %4027 = vmatprep.subr.mxu0 0.0
  %4028 = vmatpush1.msra.mxu0 %v68
  %4029 = vmatprep.subr.mxu0 0.0
  %4030 = vmatpush1.msra.mxu0 %v67
  %4031 = vmatprep.subr.mxu0 0.0
  %4032 = vmatpush1.msra.mxu0 %v66
  %4033 = vmatprep.subr.mxu0 0.0
  %4034 = vmatpush1.msra.mxu0 %v65
  %4035 = vmatprep.subr.mxu0 0.0
  %4036 = vmatpush1.msra.mxu0 %v64
  %4037 = vmatprep.subr.mxu0 0.0
  %4038 = vmatpush2.msra.mxu0 0.0
  %4039 = vmatprep.subr.mxu0 0.0
  %4040 = vmatpush2.msra.mxu0 0.0
  %4041 = vmatprep.subr.mxu0 0.0
  %4042 = vmatpush2.msra.mxu0 0.0
  %4043 = vmatprep.subr.mxu0 0.0
  %4044 = vmatpush2.msra.mxu0 0.0
  %4045 = vmatprep.subr.mxu0 0.0
  %4046 = vmatpush2.msra.mxu0 0.0
  %4047 = vmatprep.subr.mxu0 0.0
  %4048 = vmatpush2.msra.mxu0 0.0
  %4049 = vmatprep.subr.mxu0 0.0
  %4050 = vmatpush2.msra.mxu0 0.0
  %4051 = vmatprep.subr.mxu0 0.0
  %4052 = vmatpush2.msra.mxu0 0.0
  %4053 = vmatprep.subr.mxu0 0.0
  %4054 = vmatpush2.msra.mxu0 0.0
  %4055 = vmatprep.subr.mxu0 0.0
  %4056 = vmatpush2.msra.mxu0 0.0
  %4057 = vmatprep.subr.mxu0 0.0
  %4058 = vmatpush2.msra.mxu0 0.0
  %4059 = vmatprep.subr.mxu0 0.0
  %4060 = vmatpush2.msra.mxu0 0.0
  %4061 = vmatprep.subr.mxu0 0.0
  %4062 = vmatpush2.msra.mxu0 0.0
  %4063 = vmatprep.subr.mxu0 0.0
  %4064 = vmatpush2.msra.mxu0 0.0
  %4065 = vmatprep.subr.mxu0 0.0
  %4066 = vmatpush2.msra.mxu0 0.0
  %4067 = vmatprep.subr.mxu0 0.0
  %4068 = vmatpush2.msra.mxu0 0.0
  %4069 = vmatprep.mubr.f32.mxu0 0.0
  %4070 = vmatmul.mubr.f32.gmra.mxu0 %v4003
  %v4071 = vpop.f32.mrf.mxu0
  %v4072 = vadd.f32 %v93, %v4071
  %v4073 = vpop.f32.mrf.mxu0
  %4074 = vdwg.mxu0
  %v4075 = vxor.u32 %v4072, 2147483648
  %v4076 = vmul.f32 %v4075, 1.442695
  %v4077 = vpow.pop %v4076
  %v4078 = vadd.f32 %v4077, 1.0
  %v4079 = vrcp.pop %v4078
  %v4080 = vmul.f32 1.0, %v4079
  %v4081 = vtanh.pop %v4072
  %v4082 = vmul.f32 %v4080, %v3589
  %4084 = vrot.lane.b32.xlu0 %v4081, 64
  %v4085 = vpop.permute.xlu0 %4084
  %v4087 = vmul.f32 %v4080, %v4085
  %4089 = vrot.lane.b32.xlu0 %v4087, 32
  %v4090 = vpop.permute.xlu0 %4089
  %v4092 = vadd.f32 %v4082, %v4090
  %v4093 = vtanh.pop %v4092
  %4095 = vrot.lane.b32.xlu0 %v4093, 64
  %v4096 = vpop.permute.xlu0 %4095
  %v4098 = vmul.f32 %v4080, %v4096
  %4100 = vrot.lane.b32.xlu0 %v4098, 32
  %v4101 = vpop.permute.xlu0 %4100
  %v4103 = vlaneseq
  %v4104 = vshrl.u32 %v4103, 7
  %v4105 = vsub.s32 %v1084, %v4104
  %v4106 = vrot.slane %v3850, %v4105
  %v4107 = vlaneseq
  %v4108 = vshrl.u32 %v4107, 7
  %v4109 = vsub.s32 %v1084, %v4108
  %v4110 = vrot.slane %v3855, %v4109
  %v4111 = vsel %vm772, %v4110, %v4106
  %4114 = vrot.lane.b32.xlu0 %v3883, 40
  %v4115 = vpop.permute.xlu0 %4114
  %v4117 = vsel %vm113, %v4101, %v4111
  %v4118 = vsel %vm578, %v4117, %v4115
  %v4120 = vsel %vm580, %v4118, 0
  %4122 = vmatprep.subr.mxu0 0.0
  %4123 = vmatpush1.msra.mxu0 0.0
  %4124 = vmatprep.subr.mxu0 0.0
  %4125 = vmatpush1.msra.mxu0 0.0
  %4126 = vmatprep.subr.mxu0 0.0
  %4127 = vmatpush1.msra.mxu0 0.0
  %4128 = vmatprep.subr.mxu0 0.0
  %4129 = vmatpush1.msra.mxu0 0.0
  %4130 = vmatprep.subr.mxu0 0.0
  %4131 = vmatpush1.msra.mxu0 0.0
  %4132 = vmatprep.subr.mxu0 0.0
  %4133 = vmatpush1.msra.mxu0 0.0
  %4134 = vmatprep.subr.mxu0 0.0
  %4135 = vmatpush1.msra.mxu0 0.0
  %4136 = vmatprep.subr.mxu0 0.0
  %4137 = vmatpush1.msra.mxu0 0.0
  %4138 = vmatprep.subr.mxu0 0.0
  %4139 = vmatpush1.msra.mxu0 0.0
  %4140 = vmatprep.subr.mxu0 0.0
  %4141 = vmatpush1.msra.mxu0 0.0
  %4142 = vmatprep.subr.mxu0 %v63
  %4143 = vmatpush1.msra.mxu0 %v62
  %4144 = vmatprep.subr.mxu0 %v61
  %4145 = vmatpush1.msra.mxu0 %v60
  %4146 = vmatprep.subr.mxu0 %v59
  %4147 = vmatpush1.msra.mxu0 %v58
  %4148 = vmatprep.subr.mxu0 %v57
  %4149 = vmatpush1.msra.mxu0 %v56
  %4150 = vmatprep.subr.mxu0 %v55
  %4151 = vmatpush1.msra.mxu0 %v54
  %4152 = vmatprep.subr.mxu0 %v53
  %4153 = vmatpush1.msra.mxu0 %v52
  %4154 = vmatprep.subr.mxu0 0.0
  %4155 = vmatpush2.msra.mxu0 0.0
  %4156 = vmatprep.subr.mxu0 0.0
  %4157 = vmatpush2.msra.mxu0 0.0
  %4158 = vmatprep.subr.mxu0 0.0
  %4159 = vmatpush2.msra.mxu0 0.0
  %4160 = vmatprep.subr.mxu0 0.0
  %4161 = vmatpush2.msra.mxu0 0.0
  %4162 = vmatprep.subr.mxu0 0.0
  %4163 = vmatpush2.msra.mxu0 0.0
  %4164 = vmatprep.subr.mxu0 0.0
  %4165 = vmatpush2.msra.mxu0 0.0
  %4166 = vmatprep.subr.mxu0 0.0
  %4167 = vmatpush2.msra.mxu0 0.0
  %4168 = vmatprep.subr.mxu0 0.0
  %4169 = vmatpush2.msra.mxu0 0.0
  %4170 = vmatprep.subr.mxu0 0.0
  %4171 = vmatpush2.msra.mxu0 0.0
  %4172 = vmatprep.subr.mxu0 0.0
  %4173 = vmatpush2.msra.mxu0 0.0
  %4174 = vmatprep.subr.mxu0 0.0
  %4175 = vmatpush2.msra.mxu0 0.0
  %4176 = vmatprep.subr.mxu0 0.0
  %4177 = vmatpush2.msra.mxu0 0.0
  %4178 = vmatprep.subr.mxu0 0.0
  %4179 = vmatpush2.msra.mxu0 0.0
  %4180 = vmatprep.subr.mxu0 0.0
  %4181 = vmatpush2.msra.mxu0 0.0
  %4182 = vmatprep.subr.mxu0 0.0
  %4183 = vmatpush2.msra.mxu0 0.0
  %4184 = vmatprep.subr.mxu0 0.0
  %4185 = vmatpush2.msra.mxu0 0.0
  %4186 = vmatprep.mubr.f32.mxu0 0.0
  %4187 = vmatmul.mubr.f32.gmra.mxu0 %v4120
  %v4188 = vpop.f32.mrf.mxu0
  %v4189 = vadd.f32 0.0, %v4188
  %v4190 = vpop.f32.mrf.mxu0
  %v4191 = vadd.f32 0.0, %v4190
  %4192 = vdwg.mxu0
  %4194 = vrot.lane.b32.xlu0 %v4189, 96
  %v4195 = vpop.permute.xlu0 %4194
  %4197 = vrot.lane.b32.xlu0 %v4189, 64
  %v4198 = vpop.permute.xlu0 %4197
  %4200 = vrot.lane.b32.xlu0 %v4189, 32
  %v4201 = vpop.permute.xlu0 %4200
  %4204 = vrot.lane.b32.xlu0 %v4191, 96
  %v4205 = vpop.permute.xlu0 %4204
  %4207 = vrot.lane.b32.xlu0 %v4191, 64
  %v4208 = vpop.permute.xlu0 %4207
  %4210 = vrot.lane.b32.xlu0 %v4191, 32
  %v4211 = vpop.permute.xlu0 %4210
  %v4213 = vcombine.low %v4189, %v4198
  %v4215 = vunpack.c.l.s4 1983009808
  %v4216 = vunpack.c.0.s8 %v4215
  %v4217 = vlaneseq
  %v4218 = vshrl.u32 %v4217, 7
  %v4219 = vsub.s32 %v4216, %v4218
  %v4220 = vrot.slane %v4213, %v4219
  %v4221 = vcombine.low %v4195, %v4201
  %v4223 = vunpack.c.l.s4 1983009808
  %v4224 = vunpack.c.0.s8 %v4223
  %v4225 = vlaneseq
  %v4226 = vshrl.u32 %v4225, 7
  %v4227 = vsub.s32 %v4224, %v4226
  %v4228 = vrot.slane %v4221, %v4227
  %v4229 = vcombine.low %v4191, %v4208
  %v4231 = vunpack.c.l.s4 1983009808
  %v4232 = vunpack.c.0.s8 %v4231
  %v4233 = vlaneseq
  %v4234 = vshrl.u32 %v4233, 7
  %v4235 = vsub.s32 %v4232, %v4234
  %v4236 = vrot.slane %v4229, %v4235
  %v4237 = vcombine.low %v4205, %v4211
  %v4239 = vunpack.c.l.s4 1983009808
  %v4240 = vunpack.c.0.s8 %v4239
  %v4241 = vlaneseq
  %v4242 = vshrl.u32 %v4241, 7
  %v4243 = vsub.s32 %v4240, %v4242
  %v4244 = vrot.slane %v4237, %v4243
  %v4245 = vcombine.low %v4220, %v4228
  %v4247 = vunpack.c.l.s4 1934713408
  %v4248 = vunpack.c.0.s8 %v4247
  %v4249 = vlaneseq
  %v4250 = vshrl.u32 %v4249, 7
  %v4251 = vsub.s32 %v4248, %v4250
  %v4252 = vrot.slane %v4245, %v4251
  %v4253 = vcombine.low %v4236, %v4244
  %v4255 = vunpack.c.l.s4 1934713408
  %v4256 = vunpack.c.0.s8 %v4255
  %v4257 = vlaneseq
  %v4258 = vshrl.u32 %v4257, 7
  %v4259 = vsub.s32 %v4256, %v4258
  %v4260 = vrot.slane %v4253, %v4259
  %v4261 = vcombine.low %v4252, %v4260
  %v4262 = vcombine.high %v4252, %v4260
  %v4263 = vadd.f32 %v4261, %v187
  %v4264 = vadd.f32 %v4262, %v192
  %v4265 = vtanh.pop %v4263
  %v4266 = vtanh.pop %v4264
  %v4267 = vmul.f32 %v4265, %v107
  %v4268 = vmul.f32 %v4266, %v107
  %v4269 = vsel %vm113, %v4267, 0.0
  %4270 = vadd.xlane.f32.xlu0 %v4269
  %v4271 = vpop.xlane.xlu0 %4270
  %v4272 = vsel %vm113, %v4268, 0.0
  %4273 = vadd.xlane.f32.xlu0 %v4272
  %v4274 = vpop.xlane.xlu0 %4273
  %v4275 = vadd.f32 %v4271, %v744
  %v4276 = vadd.f32 %v4274, %v751
  %4279 = vset.pattern.permute.xlu0 0
  %4280 = vperm.xlu0 %4279, %v4275
  %v4281 = vpop.permute.xlu0 %4280
  %4282 = vset.pattern.permute.xlu0 0
  %4283 = vperm.xlu0 %4282, %v4276
  %v4284 = vpop.permute.xlu0 %4283
  %v4285 = vlaneseq
  %v4286 = vshrl.u32 %v4285, 7
  %v4287 = vsub.s32 %v462, %v4286
  %v4288 = vrot.slane %v4281, %v4287
  %v4289 = vlaneseq
  %v4290 = vshrl.u32 %v4289, 7
  %v4291 = vsub.s32 %v462, %v4290
  %v4292 = vrot.slane %v4284, %v4291
  %v4293 = vsel %vm772, %v4292, %v4288
  %v4295 = vsel %vm775, %v4293, -inf
  %4296 = vmax.xlane.f32.xlu0 %v4295
  %v4297 = vpop.xlane.xlu0 %4296
  %v4299 = vlaneseq
  %v4300 = vshrl.u32 %v4299, 7
  %v4301 = vsub.s32 0, %v4300
  %v4302 = vrot.slane %v4297, %v4301
  %v4303 = vlaneseq
  %v4304 = vshrl.u32 %v4303, 7
  %v4305 = vsub.s32 1, %v4304
  %v4306 = vrot.slane %v4297, %v4305
  %v4309 = vsub.f32 %v4275, %v4302
  %v4310 = vsub.f32 %v4276, %v4306
  %v4311 = vmul.f32 %v4309, 1.442695
  %v4312 = vpow.pop %v4311
  %v4313 = vmul.f32 %v4310, 1.442695
  %v4314 = vpow.pop %v4313
  %4317 = vset.pattern.permute.xlu0 0
  %4318 = vperm.xlu0 %4317, %v4312
  %v4319 = vpop.permute.xlu0 %4318
  %4320 = vset.pattern.permute.xlu0 0
  %4321 = vperm.xlu0 %4320, %v4314
  %v4322 = vpop.permute.xlu0 %4321
  %v4323 = vlaneseq
  %v4324 = vshrl.u32 %v4323, 7
  %v4325 = vsub.s32 %v462, %v4324
  %v4326 = vrot.slane %v4319, %v4325
  %v4327 = vlaneseq
  %v4328 = vshrl.u32 %v4327, 7
  %v4329 = vsub.s32 %v462, %v4328
  %v4330 = vrot.slane %v4322, %v4329
  %v4331 = vsel %vm772, %v4330, %v4326
  %v4333 = vsel %vm775, %v4331, 0.0
  %4334 = vadd.xlane.f32.xlu0 %v4333
  %v4335 = vpop.xlane.xlu0 %4334
  %v4336 = vrcp.pop %v4335
  %v4338 = vlaneseq
  %v4339 = vshrl.u32 %v4338, 7
  %v4340 = vsub.s32 0, %v4339
  %v4341 = vrot.slane %v4336, %v4340
  %v4342 = vlaneseq
  %v4343 = vshrl.u32 %v4342, 7
  %v4344 = vsub.s32 1, %v4343
  %v4345 = vrot.slane %v4336, %v4344
  %v4348 = vmul.f32 %v4312, %v4341
  %v4349 = vmul.f32 %v4314, %v4345
  %4351 = vset.pattern.permute.xlu0 0
  %4352 = vperm.xlu0 %4351, %v4348
  %v4353 = vpop.permute.xlu0 %4352
  %4356 = vset.pattern.permute.xlu0 0
  %4357 = vperm.xlu0 %4356, %v4349
  %v4358 = vpop.permute.xlu0 %4357
  %v4360 = vmul.f32 %v4353, %v49
  %v4361 = vmul.f32 %v4358, %v50
  %v4362 = vsel %vm113, %v4360, 0.0
  %v4363 = vrot.slane %v4362, 4
  %v4364 = vadd.f32 %v4362, %v4363
  %v4365 = vrot.slane %v4364, 2
  %v4366 = vadd.f32 %v4364, %v4365
  %v4367 = vrot.slane %v4366, 1
  %v4368 = vadd.f32 %v4366, %v4367
  %v4369 = vsel %vm113, %v4361, 0.0
  %v4370 = vrot.slane %v4369, 4
  %v4371 = vadd.f32 %v4369, %v4370
  %v4372 = vrot.slane %v4371, 2
  %v4373 = vadd.f32 %v4371, %v4372
  %v4374 = vrot.slane %v4373, 1
  %v4375 = vadd.f32 %v4373, %v4374
  %v4378 = vsel %vm772, %v4375, %v4368
  %4379 = vrot.lane.b32.xlu0 %v4378, 32
  %v4380 = vpop.permute.xlu0 %4379
  %4382 = vrot.lane.b32.xlu0 %v3991, 96
  %v4383 = vpop.permute.xlu0 %4382
  %v4385 = vsel %vm113, %v4101, %v4380
  %v4386 = vsel %vm466, %v4385, %v4383
  %v4388 = vsel %vm468, %v4386, 0
  %4390 = vmatprep.subr.mxu0 0.0
  %4391 = vmatpush1.msra.mxu0 0.0
  %4392 = vmatprep.subr.mxu0 0.0
  %4393 = vmatpush1.msra.mxu0 0.0
  %4394 = vmatprep.subr.mxu0 0.0
  %4395 = vmatpush1.msra.mxu0 0.0
  %4396 = vmatprep.subr.mxu0 0.0
  %4397 = vmatpush1.msra.mxu0 0.0
  %4398 = vmatprep.subr.mxu0 0.0
  %4399 = vmatpush1.msra.mxu0 %v87
  %4400 = vmatprep.subr.mxu0 0.0
  %4401 = vmatpush1.msra.mxu0 %v86
  %4402 = vmatprep.subr.mxu0 0.0
  %4403 = vmatpush1.msra.mxu0 %v85
  %4404 = vmatprep.subr.mxu0 0.0
  %4405 = vmatpush1.msra.mxu0 %v84
  %4406 = vmatprep.subr.mxu0 0.0
  %4407 = vmatpush1.msra.mxu0 %v83
  %4408 = vmatprep.subr.mxu0 0.0
  %4409 = vmatpush1.msra.mxu0 %v82
  %4410 = vmatprep.subr.mxu0 0.0
  %4411 = vmatpush1.msra.mxu0 %v81
  %4412 = vmatprep.subr.mxu0 0.0
  %4413 = vmatpush1.msra.mxu0 %v80
  %4414 = vmatprep.subr.mxu0 0.0
  %4415 = vmatpush1.msra.mxu0 %v79
  %4416 = vmatprep.subr.mxu0 0.0
  %4417 = vmatpush1.msra.mxu0 %v78
  %4418 = vmatprep.subr.mxu0 0.0
  %4419 = vmatpush1.msra.mxu0 %v77
  %4420 = vmatprep.subr.mxu0 0.0
  %4421 = vmatpush1.msra.mxu0 %v76
  %4422 = vmatprep.subr.mxu0 0.0
  %4423 = vmatpush2.msra.mxu0 0.0
  %4424 = vmatprep.subr.mxu0 0.0
  %4425 = vmatpush2.msra.mxu0 0.0
  %4426 = vmatprep.subr.mxu0 0.0
  %4427 = vmatpush2.msra.mxu0 0.0
  %4428 = vmatprep.subr.mxu0 0.0
  %4429 = vmatpush2.msra.mxu0 0.0
  %4430 = vmatprep.subr.mxu0 0.0
  %4431 = vmatpush2.msra.mxu0 0.0
  %4432 = vmatprep.subr.mxu0 0.0
  %4433 = vmatpush2.msra.mxu0 0.0
  %4434 = vmatprep.subr.mxu0 0.0
  %4435 = vmatpush2.msra.mxu0 0.0
  %4436 = vmatprep.subr.mxu0 0.0
  %4437 = vmatpush2.msra.mxu0 0.0
  %4438 = vmatprep.subr.mxu0 0.0
  %4439 = vmatpush2.msra.mxu0 0.0
  %4440 = vmatprep.subr.mxu0 0.0
  %4441 = vmatpush2.msra.mxu0 0.0
  %4442 = vmatprep.subr.mxu0 0.0
  %4443 = vmatpush2.msra.mxu0 0.0
  %4444 = vmatprep.subr.mxu0 0.0
  %4445 = vmatpush2.msra.mxu0 0.0
  %4446 = vmatprep.subr.mxu0 0.0
  %4447 = vmatpush2.msra.mxu0 0.0
  %4448 = vmatprep.subr.mxu0 0.0
  %4449 = vmatpush2.msra.mxu0 0.0
  %4450 = vmatprep.subr.mxu0 0.0
  %4451 = vmatpush2.msra.mxu0 0.0
  %4452 = vmatprep.subr.mxu0 0.0
  %4453 = vmatpush2.msra.mxu0 0.0
  %4454 = vmatprep.mubr.f32.mxu0 0.0
  %4455 = vmatmul.mubr.f32.gmra.mxu0 %v4388
  %v4456 = vpop.f32.mrf.mxu0
  %v4457 = vadd.f32 %v100, %v4456
  %v4458 = vpop.f32.mrf.mxu0
  %4459 = vdwg.mxu0
  %v4460 = vxor.u32 %v4457, 2147483648
  %v4461 = vmul.f32 %v4460, 1.442695
  %v4462 = vpow.pop %v4461
  %v4463 = vadd.f32 %v4462, 1.0
  %v4464 = vrcp.pop %v4463
  %v4465 = vmul.f32 1.0, %v4464
  %v4466 = vtanh.pop %v4457
  %v4467 = vmul.f32 %v4465, %v3985
  %4469 = vrot.lane.b32.xlu0 %v4466, 64
  %v4470 = vpop.permute.xlu0 %4469
  %v4472 = vmul.f32 %v4465, %v4470
  %4474 = vrot.lane.b32.xlu0 %v4472, 32
  %v4475 = vpop.permute.xlu0 %4474
  %v4477 = vadd.f32 %v4467, %v4475
  %v4478 = vtanh.pop %v4477
  %4480 = vrot.lane.b32.xlu0 %v4478, 64
  %v4481 = vpop.permute.xlu0 %4480
  %v4483 = vmul.f32 %v4465, %v4481
  %4485 = vrot.lane.b32.xlu0 %v4483, 32
  %v4486 = vpop.permute.xlu0 %4485
  %v4488 = vsel %vm113, %v4486, %v4380
  %v4489 = vld [vmem:[%s12] sm:$0xff]
  %v4490 = vld [vmem:[%s12 + $0x8] sm:$0xff]
  %v4491 = vld [vmem:[%s12 + $0x10] sm:$0xff]
  %v4492 = vld [vmem:[%s12 + $0x18] sm:$0xff]
  %v4493 = vld [vmem:[%s12 + $0x20] sm:$0xff]
  %v4494 = vld [vmem:[%s12 + $0x28] sm:$0xff]
  %v4495 = vld [vmem:[%s12 + $0x30] sm:$0xff]
  %v4496 = vld [vmem:[%s12 + $0x38] sm:$0xff]
  %v4497 = vld [vmem:[%s13] sm:$0x1]
  %v4499 = vlaneseq
  %v4500 = vshrl.u32 %v4499, 7
  %v4501 = vsub.s32 0, %v4500
  %v4502 = vrot.slane %v4497, %v4501
  %v4512 = vcombine.low %v977, %v1481
  %v4513 = vcombine.low %v1984, %v2487
  %v4515 = vunpack.c.l.s4 1983009808
  %v4516 = vunpack.c.0.s8 %v4515
  %v4517 = vlaneseq
  %v4518 = vshrl.u32 %v4517, 7
  %v4519 = vsub.s32 %v4516, %v4518
  %v4520 = vrot.slane %v4512, %v4519
  %v4522 = vunpack.c.l.s4 1983009808
  %v4523 = vunpack.c.0.s8 %v4522
  %v4524 = vlaneseq
  %v4525 = vshrl.u32 %v4524, 7
  %v4526 = vsub.s32 %v4523, %v4525
  %v4527 = vrot.slane %v4513, %v4526
  %v4528 = vcombine.low %v4520, %v4527
  %v4529 = vcombine.low %v2990, %v3493
  %v4530 = vcombine.low %v3996, %v4488
  %v4532 = vunpack.c.l.s4 1983009808
  %v4533 = vunpack.c.0.s8 %v4532
  %v4534 = vlaneseq
  %v4535 = vshrl.u32 %v4534, 7
  %v4536 = vsub.s32 %v4533, %v4535
  %v4537 = vrot.slane %v4529, %v4536
  %v4539 = vunpack.c.l.s4 1983009808
  %v4540 = vunpack.c.0.s8 %v4539
  %v4541 = vlaneseq
  %v4542 = vshrl.u32 %v4541, 7
  %v4543 = vsub.s32 %v4540, %v4542
  %v4544 = vrot.slane %v4530, %v4543
  %v4545 = vcombine.low %v4537, %v4544
  %v4546 = vsel %vm466, %v4528, 0
  %v4548 = vsel %vm466, %v4545, 0
  %4550 = vmatprep.subr.mxu0 0.0
  %4551 = vmatpush1.msra.mxu0 0.0
  %4552 = vmatprep.subr.mxu0 0.0
  %4553 = vmatpush1.msra.mxu0 0.0
  %4554 = vmatprep.subr.mxu0 0.0
  %4555 = vmatpush1.msra.mxu0 0.0
  %4556 = vmatprep.subr.mxu0 0.0
  %4557 = vmatpush1.msra.mxu0 0.0
  %4558 = vmatprep.subr.mxu0 0.0
  %4559 = vmatpush1.msra.mxu0 0.0
  %4560 = vmatprep.subr.mxu0 0.0
  %4561 = vmatpush1.msra.mxu0 0.0
  %4562 = vmatprep.subr.mxu0 0.0
  %4563 = vmatpush1.msra.mxu0 0.0
  %4564 = vmatprep.subr.mxu0 0.0
  %4565 = vmatpush1.msra.mxu0 0.0
  %4566 = vmatprep.subr.mxu0 0.0
  %4567 = vmatpush1.msra.mxu0 %v4496
  %4568 = vmatprep.subr.mxu0 0.0
  %4569 = vmatpush1.msra.mxu0 %v4495
  %4570 = vmatprep.subr.mxu0 0.0
  %4571 = vmatpush1.msra.mxu0 %v4494
  %4572 = vmatprep.subr.mxu0 0.0
  %4573 = vmatpush1.msra.mxu0 %v4493
  %4574 = vmatprep.subr.mxu0 0.0
  %4575 = vmatpush1.msra.mxu0 %v4492
  %4576 = vmatprep.subr.mxu0 0.0
  %4577 = vmatpush1.msra.mxu0 %v4491
  %4578 = vmatprep.subr.mxu0 0.0
  %4579 = vmatpush1.msra.mxu0 %v4490
  %4580 = vmatprep.subr.mxu0 0.0
  %4581 = vmatpush1.msra.mxu0 %v4489
  %4582 = vmatprep.subr.mxu0 0.0
  %4583 = vmatpush2.msra.mxu0 0.0
  %4584 = vmatprep.subr.mxu0 0.0
  %4585 = vmatpush2.msra.mxu0 0.0
  %4586 = vmatprep.subr.mxu0 0.0
  %4587 = vmatpush2.msra.mxu0 0.0
  %4588 = vmatprep.subr.mxu0 0.0
  %4589 = vmatpush2.msra.mxu0 0.0
  %4590 = vmatprep.subr.mxu0 0.0
  %4591 = vmatpush2.msra.mxu0 0.0
  %4592 = vmatprep.subr.mxu0 0.0
  %4593 = vmatpush2.msra.mxu0 0.0
  %4594 = vmatprep.subr.mxu0 0.0
  %4595 = vmatpush2.msra.mxu0 0.0
  %4596 = vmatprep.subr.mxu0 0.0
  %4597 = vmatpush2.msra.mxu0 0.0
  %4598 = vmatprep.subr.mxu0 0.0
  %4599 = vmatpush2.msra.mxu0 0.0
  %4600 = vmatprep.subr.mxu0 0.0
  %4601 = vmatpush2.msra.mxu0 0.0
  %4602 = vmatprep.subr.mxu0 0.0
  %4603 = vmatpush2.msra.mxu0 0.0
  %4604 = vmatprep.subr.mxu0 0.0
  %4605 = vmatpush2.msra.mxu0 0.0
  %4606 = vmatprep.subr.mxu0 0.0
  %4607 = vmatpush2.msra.mxu0 0.0
  %4608 = vmatprep.subr.mxu0 0.0
  %4609 = vmatpush2.msra.mxu0 0.0
  %4610 = vmatprep.subr.mxu0 0.0
  %4611 = vmatpush2.msra.mxu0 0.0
  %4612 = vmatprep.subr.mxu0 0.0
  %4613 = vmatpush2.msra.mxu0 0.0
  %4614 = vmatprep.mubr.f32.mxu0 0.0
  %4615 = vmatmul.mubr.f32.gmra.mxu0 %v4546
  %v4616 = vpop.f32.mrf.mxu0
  %v4617 = vadd.f32 %v4502, %v4616
  %v4618 = vpop.f32.mrf.mxu0
  %4619 = vmatprep.mubr.f32.mxu0 0.0
  %4620 = vmatmul.mubr.f32.gmra.mxu0 %v4548
  %v4621 = vpop.f32.mrf.mxu0
  %v4622 = vadd.f32 %v4502, %v4621
  %v4623 = vpop.f32.mrf.mxu0
  %4624 = vdwg.mxu0
  %v4627 = vcombine.high %v4617, %v4617
  %v4629 = vunpack.c.l.s4 1983009808
  %v4630 = vunpack.c.0.s8 %v4629
  %v4631 = vlaneseq
  %v4632 = vshrl.u32 %v4631, 7
  %v4633 = vsub.s32 %v4630, %v4632
  %v4634 = vrot.slane %v4617, %v4633
  %v4636 = vunpack.c.l.s4 1983009808
  %v4637 = vunpack.c.0.s8 %v4636
  %v4638 = vlaneseq
  %v4639 = vshrl.u32 %v4638, 7
  %v4640 = vsub.s32 %v4637, %v4639
  %v4641 = vrot.slane %v4627, %v4640
  %v4642 = vcombine.high %v4634, %v4634
  %v4643 = vcombine.high %v4641, %v4641
  %v4644 = vcombine.high %v4622, %v4622
  %v4646 = vunpack.c.l.s4 1983009808
  %v4647 = vunpack.c.0.s8 %v4646
  %v4648 = vlaneseq
  %v4649 = vshrl.u32 %v4648, 7
  %v4650 = vsub.s32 %v4647, %v4649
  %v4651 = vrot.slane %v4622, %v4650
  %v4653 = vunpack.c.l.s4 1983009808
  %v4654 = vunpack.c.0.s8 %v4653
  %v4655 = vlaneseq
  %v4656 = vshrl.u32 %v4655, 7
  %v4657 = vsub.s32 %v4654, %v4656
  %v4658 = vrot.slane %v4644, %v4657
  %v4659 = vcombine.high %v4651, %v4651
  %v4660 = vcombine.high %v4658, %v4658
  %vm4669 = vcmask 254976
  %4670 = vst.msk [vmem:[%s14] sm:$0x3] %vm4669, %v4634
  %4671 = vst.msk [vmem:[%s14 + $0x2] sm:$0x3] %vm4669, %v4642
  %4672 = vst.msk [vmem:[%s14 + $0x4] sm:$0x3] %vm4669, %v4641
  %4673 = vst.msk [vmem:[%s14 + $0x6] sm:$0x3] %vm4669, %v4643
  %4674 = vst.msk [vmem:[%s14 + $0x8] sm:$0x3] %vm4669, %v4651
  %4675 = vst.msk [vmem:[%s14 + $0xa] sm:$0x3] %vm4669, %v4659
  %4676 = vst.msk [vmem:[%s14 + $0xc] sm:$0x3] %vm4669, %v4658
  %4677 = vst.msk [vmem:[%s14 + $0xe] sm:$0x3] %vm4669, %v4660
  %v4678 = vlaneseq
  %v4679 = vshrl.u32 %v4678, 7
  %v4680 = vsub.s32 %v462, %v4679
  %v4681 = vrot.slane %v4353, %v4680
  %v4682 = vlaneseq
  %v4683 = vshrl.u32 %v4682, 7
  %v4684 = vsub.s32 %v462, %v4683
  %v4685 = vrot.slane %v4358, %v4684
  %v4686 = vsel %vm772, %v4685, %v4681
  %4688 = vst.msk [vmem:[%s15] sm:$0x3] %vm775, %v865
  %4689 = vst.msk [vmem:[%s15 + $0x2] sm:$0x3] %vm775, %v1366
  %4690 = vst.msk [vmem:[%s15 + $0x4] sm:$0x3] %vm775, %v1869
  %4691 = vst.msk [vmem:[%s15 + $0x6] sm:$0x3] %vm775, %v2372
  %4692 = vst.msk [vmem:[%s15 + $0x8] sm:$0x3] %vm775, %v2875
  %4693 = vst.msk [vmem:[%s15 + $0xa] sm:$0x3] %vm775, %v3378
  %4694 = vst.msk [vmem:[%s15 + $0xc] sm:$0x3] %vm775, %v3881
  %4695 = vst.msk [vmem:[%s15 + $0xe] sm:$0x3] %vm775, %v4686
  // Predicated region
  $region58: #{decoder_train.1} parent=0 // pred_check
    _
  $region59: #{decoder_train.1} parent=0 // pred_check_branch
    %4697 = sbr.rel (0) target = $region61
  $region60: #{decoder_train.1} parent=0 // pred_region
    _
  $region61: #{decoder_train.1} parent=0 // pred_fallthru
    _
  // Predicated region
  $region62: #{decoder_train.1} parent=0 // pred_check
    _
  $region63: #{decoder_train.1} parent=0 // pred_check_branch
    %4699 = sbr.rel (0) target = $region65
  $region64: #{decoder_train.1} parent=0 // pred_region
    _
  $region65: #{decoder_train.1} parent=0 // pred_fallthru
    _
  // Predicated region
  $region66: #{decoder_train.1} parent=0 // pred_check
    _
  $region67: #{decoder_train.1} parent=0 // pred_check_branch
    %4701 = sbr.rel (0) target = $region69
  $region68: #{decoder_train.1} parent=0 // pred_region
    _
  $region69: #{decoder_train.1} parent=0 // pred_fallthru
    _
  // Predicated region
  $region70: #{decoder_train.1} parent=0 // pred_check
    _
  $region71: #{decoder_train.1} parent=0 // pred_check_branch
    %4703 = sbr.rel (0) target = $region73
  $region72: #{decoder_train.1} parent=0 // pred_region
    _
  $region73: #{decoder_train.1} parent=0 // pred_fallthru
    _

</llo_original>
